<compile_context>
chip_gen: v7x
topology: tpu7x:2x2x1
jax: 0.10.0
libtpu: 0.0.40
codegen_flags: <defaults>
</compile_context>

<pallas_src>
import functools
import math

import jax
import jax.numpy as jnp
from jax.experimental import pallas as pl
from jax.experimental.pallas import tpu as pltpu

# ----------------------------- config (small) -----------------------------
VOCAB = 64
MAX_POS = 16
HIDDEN = 32          # stands in for bert.config.hidden_size (768 in DNABERT-6)
N_HEADS = 4
HEAD_DIM = HIDDEN // N_HEADS
INTERMEDIATE = 64
N_LAYERS = 2
BATCH = 2
SEQ = 8
FC1_DIM = 512
FC2_DIM = 256
N_CLASSES = 2
BERT_LN_EPS = 1e-12  # BERT LayerNorm eps
HEAD_LN_EPS = 1e-5   # nn.LayerNorm default eps

W_DTYPE = jnp.bfloat16   # MXU operand dtype; all VPU/EUP math stays f32

# embedding-slab row offsets
EMB_WORD = 0
EMB_POS = VOCAB
EMB_LN_G = VOCAB + MAX_POS
EMB_LN_B = VOCAB + MAX_POS + 1

VEC_W = 3 * HIDDEN       # per-layer bias/LN slab width (qkv_b is the widest row)


# ------------------------------ kernel helpers ------------------------------
def _gelu(x):
    # exact (erf-based) GELU, matching nn.GELU() default
    return 0.5 * x * (1.0 + jax.lax.erf(x * (1.0 / math.sqrt(2.0))))


def _layernorm(x, g, b, eps):
    mu = jnp.mean(x, axis=-1, keepdims=True)
    var = jnp.mean(jnp.square(x - mu), axis=-1, keepdims=True)
    return (x - mu) * jax.lax.rsqrt(var + eps) * g + b


# ------------------------------ fused kernel ------------------------------
def fused_forward_kernel(
    # inputs
    ids_ref,        # (B*S, 1)  int32 token ids
    mask_ref,       # (B, 1, S) f32 additive attention mask
    emb_ref,        # (VOCAB+MAX_POS+2, H) f32: word_emb | pos+tok | ln_g | ln_b
    enc_w_ref,      # (L, H, 3H+H+I)  bf16: [qkv_w | o_w | ffn_in_w]
    enc_w2_ref,     # (L, I, H)       bf16: ffn_out_w
    enc_vec_ref,    # (L, 8, 3H)      f32 per-layer biases / LN params
    fc1_w_ref,      # (H, 512)  bf16
    fc2_w_ref,      # (512, 256) bf16
    cls_w_ref,      # (256, 2)  bf16
    head_vec_ref,   # (7, 512)  f32 head biases / LN params
    # output
    logits_ref,     # (B, 2) f32
    *, batch, seq,
):
    bs = batch * seq
    H, I = HIDDEN, INTERMEDIATE

    # --- embeddings: one-hot gather on the MXU + pos/token-type add + LN ---
    onehot = (ids_ref[...] ==
              jax.lax.broadcasted_iota(jnp.int32, (bs, VOCAB), 1)).astype(jnp.float32)
    h = jnp.dot(onehot, emb_ref[EMB_WORD:EMB_WORD + VOCAB, :],
                preferred_element_type=jnp.float32)                     # (bs, H)
    pos_tok = emb_ref[EMB_POS:EMB_POS + seq, :]                         # (seq, H)
    h = (h.reshape(batch, seq, H) + pos_tok[None, :, :]).reshape(bs, H)
    h = _layernorm(h, emb_ref[EMB_LN_G:EMB_LN_G + 1, :],
                   emb_ref[EMB_LN_B:EMB_LN_B + 1, :], BERT_LN_EPS)

    mask3 = mask_ref[...]                                               # (B, 1, S)

    # --- transformer encoder layers (unrolled; all weights VMEM-resident) ---
    for layer in range(N_LAYERS):
        w = enc_w_ref[layer]                                            # (H, 3H+H+I)
        w2 = enc_w2_ref[layer]                                          # (I, H)
        vec = enc_vec_ref[layer]                                        # (8, 3H)
        qkv_w = w[:, 0:3 * H]
        o_w = w[:, 3 * H:4 * H]
        fi_w = w[:, 4 * H:4 * H + I]
        qkv_b = vec[0:1, 0:3 * H]
        o_b = vec[1:2, 0:H]
        attn_g, attn_b = vec[2:3, 0:H], vec[3:4, 0:H]
        fi_b = vec[4:5, 0:I]
        fo_b = vec[5:6, 0:H]
        ffn_g, ffn_b = vec[6:7, 0:H], vec[7:8, 0:H]

        # fused QKV projection; 1/sqrt(head_dim) folded into Q columns at pack time
        qkv = jnp.dot(h.astype(W_DTYPE), qkv_w,
                      preferred_element_type=jnp.float32) + qkv_b       # (bs, 3H)
        q3 = qkv[:, 0:H].reshape(batch, seq, H)
        k3 = qkv[:, H:2 * H].reshape(batch, seq, H)
        v3 = qkv[:, 2 * H:3 * H].reshape(batch, seq, H)

        # attention: short unrolled head loop, each head batched over batch;
        # context stays in vregs (no VMEM scratch round trip).
        head_out = []
        for hh in range(N_HEADS):
            c = hh * HEAD_DIM
            qh = q3[:, :, c:c + HEAD_DIM].astype(W_DTYPE)
            kh = k3[:, :, c:c + HEAD_DIM].astype(W_DTYPE)
            vh = v3[:, :, c:c + HEAD_DIM].astype(W_DTYPE)
            s = jnp.einsum('bqd,bkd->bqk', qh, kh,
                           preferred_element_type=jnp.float32) + mask3
            s = s - jnp.max(s, axis=-1, keepdims=True)
            p = jnp.exp(s)
            p = p * pl.reciprocal(jnp.sum(p, axis=-1, keepdims=True), approx=True)
            head_out.append(jnp.einsum('bqk,bkd->bqd', p.astype(W_DTYPE), vh,
                                       preferred_element_type=jnp.float32))
        ctx = jnp.concatenate(head_out, axis=-1).reshape(bs, H)         # (bs, H)

        # attention output projection + residual + LayerNorm
        attn_out = jnp.dot(ctx.astype(W_DTYPE), o_w,
                           preferred_element_type=jnp.float32) + o_b
        h = _layernorm(attn_out + h, attn_g, attn_b, BERT_LN_EPS)

        # FFN + residual + LayerNorm
        ffn = _gelu(jnp.dot(h.astype(W_DTYPE), fi_w,
                            preferred_element_type=jnp.float32) + fi_b)
        ffn = jnp.dot(ffn.astype(W_DTYPE), w2,
                      preferred_element_type=jnp.float32) + fo_b
        h = _layernorm(ffn + h, ffn_g, ffn_b, BERT_LN_EPS)

    # --- [CLS] token selection (row 0 of every sequence), kept in vregs ---
    cls = jnp.concatenate([h[b * seq:b * seq + 1, :] for b in range(batch)], axis=0)

    # --- classifier head (dropout == identity at inference) ---
    hv = head_vec_ref[...]                                              # (7, 512)
    x = _gelu(jnp.dot(cls.astype(W_DTYPE), fc1_w_ref[...],
                      preferred_element_type=jnp.float32) + hv[0:1, 0:FC1_DIM])
    x = _layernorm(x, hv[1:2, 0:FC1_DIM], hv[2:3, 0:FC1_DIM], HEAD_LN_EPS)
    x = _gelu(jnp.dot(x.astype(W_DTYPE), fc2_w_ref[...],
                      preferred_element_type=jnp.float32) + hv[3:4, 0:FC2_DIM])
    x = _layernorm(x, hv[4:5, 0:FC2_DIM], hv[5:6, 0:FC2_DIM], HEAD_LN_EPS)
    logits_ref[...] = (jnp.dot(x.astype(W_DTYPE), cls_w_ref[...],
                               preferred_element_type=jnp.float32)
                       + hv[6:7, 0:N_CLASSES])


# ------------------------------ model forward ------------------------------
def forward(packed, input_ids, attention_mask):
    B, S = input_ids.shape

    # only trivial reshapes/casts outside the kernel; gather + all math is fused
    ids = input_ids.reshape(B * S, 1).astype(jnp.int32)
    mask3 = ((1.0 - attention_mask.astype(jnp.float32)) * -1e9)[:, None, :]  # (B,1,S)

    args = (
        ids, mask3,
        packed["emb_slab"],
        packed["enc_w"], packed["enc_w2"], packed["enc_vec"],
        packed["fc1_w"], packed["fc2_w"], packed["cls_w"], packed["head_vec"],
    )
    vmem = pl.BlockSpec(memory_space=pltpu.MemorySpace.VMEM)

    return pl.pallas_call(
        functools.partial(fused_forward_kernel, batch=B, seq=S),
        out_shape=jax.ShapeDtypeStruct((B, N_CLASSES), jnp.float32),
        in_specs=[vmem] * len(args),
        out_specs=vmem,
    )(*args)


# ------------------------------ param init / packing ------------------------------
def _dense(key, fan_in, fan_out):
    kw, _ = jax.random.split(key)
    w = jax.random.normal(kw, (fan_in, fan_out), jnp.float32) * 0.02
    b = jnp.zeros((1, fan_out), jnp.float32)
    return w, b


def init_params(key):
    keys = jax.random.split(key, 8 + N_LAYERS)
    params = {
        "word_emb": jax.random.normal(keys[0], (VOCAB, HIDDEN), jnp.float32) * 0.02,
        "pos_emb": jax.random.normal(keys[1], (MAX_POS, HIDDEN), jnp.float32) * 0.02,
        "tok_emb": jax.random.normal(keys[2], (2, HIDDEN), jnp.float32) * 0.02,
        "emb_ln_g": jnp.ones((1, HIDDEN), jnp.float32),
        "emb_ln_b": jnp.zeros((1, HIDDEN), jnp.float32),
        "layers": [],
    }
    for li in range(N_LAYERS):
        lk = jax.random.split(keys[3 + li], 6)
        q_w, q_b = _dense(lk[0], HIDDEN, HIDDEN)
        k_w, k_b = _dense(lk[1], HIDDEN, HIDDEN)
        v_w, v_b = _dense(lk[2], HIDDEN, HIDDEN)
        o_w, o_b = _dense(lk[3], HIDDEN, HIDDEN)
        fi_w, fi_b = _dense(lk[4], HIDDEN, INTERMEDIATE)
        fo_w, fo_b = _dense(lk[5], INTERMEDIATE, HIDDEN)
        params["layers"].append({
            "q_w": q_w, "q_b": q_b, "k_w": k_w, "k_b": k_b,
            "v_w": v_w, "v_b": v_b, "o_w": o_w, "o_b": o_b,
            "attn_ln_g": jnp.ones((1, HIDDEN), jnp.float32),
            "attn_ln_b": jnp.zeros((1, HIDDEN), jnp.float32),
            "ffn_in_w": fi_w, "ffn_in_b": fi_b,
            "ffn_out_w": fo_w, "ffn_out_b": fo_b,
            "ffn_ln_g": jnp.ones((1, HIDDEN), jnp.float32),
            "ffn_ln_b": jnp.zeros((1, HIDDEN), jnp.float32),
        })
    hk = jax.random.split(keys[3 + N_LAYERS], 3)
    params["fc1_w"], params["fc1_b"] = _dense(hk[0], HIDDEN, FC1_DIM)
    params["ln1_g"] = jnp.ones((1, FC1_DIM), jnp.float32)
    params["ln1_b"] = jnp.zeros((1, FC1_DIM), jnp.float32)
    params["fc2_w"], params["fc2_b"] = _dense(hk[1], FC1_DIM, FC2_DIM)
    params["ln2_g"] = jnp.ones((1, FC2_DIM), jnp.float32)
    params["ln2_b"] = jnp.zeros((1, FC2_DIM), jnp.float32)
    params["cls_w"], params["cls_b"] = _dense(hk[2], FC2_DIM, N_CLASSES)
    return params


def pack_params(params):
    """Coalesce parameters into a handful of padded slabs (few large DMAs),
    stack per-layer weights along a leading layer axis, fold 1/sqrt(head_dim)
    into the Q projection, and cast matmul weights to bf16."""
    scale = 1.0 / math.sqrt(HEAD_DIM)

    def pad_to(v, width):
        return jnp.pad(v, ((0, 0), (0, width - v.shape[1])))

    enc_w, enc_w2, enc_vec = [], [], []
    for p in params["layers"]:
        qkv_w = jnp.concatenate([p["q_w"] * scale, p["k_w"], p["v_w"]], axis=1)
        enc_w.append(jnp.concatenate([qkv_w, p["o_w"], p["ffn_in_w"]], axis=1))
        enc_w2.append(p["ffn_out_w"])
        qkv_b = jnp.concatenate([p["q_b"] * scale, p["k_b"], p["v_b"]], axis=1)
        enc_vec.append(jnp.concatenate([
            qkv_b,
            pad_to(p["o_b"], VEC_W), pad_to(p["attn_ln_g"], VEC_W),
            pad_to(p["attn_ln_b"], VEC_W), pad_to(p["ffn_in_b"], VEC_W),
            pad_to(p["ffn_out_b"], VEC_W), pad_to(p["ffn_ln_g"], VEC_W),
            pad_to(p["ffn_ln_b"], VEC_W)], axis=0))

    emb_slab = jnp.concatenate([
        params["word_emb"],
        params["pos_emb"] + params["tok_emb"][0][None, :],
        params["emb_ln_g"], params["emb_ln_b"]], axis=0)

    head_vec = jnp.concatenate([
        params["fc1_b"], params["ln1_g"], params["ln1_b"],
        pad_to(params["fc2_b"], FC1_DIM), pad_to(params["ln2_g"], FC1_DIM),
        pad_to(params["ln2_b"], FC1_DIM), pad_to(params["cls_b"], FC1_DIM)], axis=0)

    return {
        "emb_slab": emb_slab.astype(jnp.float32),            # (VOCAB+MAX_POS+2, H)
        "enc_w": jnp.stack(enc_w, axis=0).astype(W_DTYPE),   # (L, H, 3H+H+I)
        "enc_w2": jnp.stack(enc_w2, axis=0).astype(W_DTYPE), # (L, I, H)
        "enc_vec": jnp.stack(enc_vec, axis=0).astype(jnp.float32),  # (L, 8, 3H)
        "fc1_w": params["fc1_w"].astype(W_DTYPE),
        "fc2_w": params["fc2_w"].astype(W_DTYPE),
        "cls_w": params["cls_w"].astype(W_DTYPE),
        "head_vec": head_vec.astype(jnp.float32),             # (7, 512)
    }


# ------------------------------ main ------------------------------
if __name__ == "__main__":
    root = jax.random.PRNGKey(0)
    k_param, k_ids = jax.random.split(root)

    params = init_params(k_param)
    packed = pack_params(params)

    input_ids = jax.random.randint(k_ids, (BATCH, SEQ), 0, VOCAB, dtype=jnp.int32)
    attention_mask = jnp.ones((BATCH, SEQ), dtype=jnp.int32)
    attention_mask = attention_mask.at[1, 6:].set(0)   # exercise padding mask

    logits = jax.jit(forward)(packed, input_ids, attention_mask)
    logits = jax.block_until_ready(logits)

    assert logits.shape == (BATCH, N_CLASSES) and logits.dtype == jnp.float32
    print("KERNEL_OK")
</pallas_src>

<mosaic_0001>
module attributes {stable_mosaic.version = 11 : i64} {
  func.func @fused_forward_kernel(%arg0: memref<16x1xi32, #tpu.memory_space<vmem>>, %arg1: memref<2x1x8xf32, #tpu.memory_space<vmem>>, %arg2: memref<82x32xf32, #tpu.memory_space<vmem>>, %arg3: memref<2x32x192xbf16, #tpu.memory_space<vmem>>, %arg4: memref<2x64x32xbf16, #tpu.memory_space<vmem>>, %arg5: memref<2x8x96xf32, #tpu.memory_space<vmem>>, %arg6: memref<32x512xbf16, #tpu.memory_space<vmem>>, %arg7: memref<512x256xbf16, #tpu.memory_space<vmem>>, %arg8: memref<256x2xbf16, #tpu.memory_space<vmem>>, %arg9: memref<7x512xf32, #tpu.memory_space<vmem>>, %arg10: memref<2x2xf32, #tpu.memory_space<vmem>>) attributes {dimension_semantics = [], scalar_prefetch = 0 : i64, scratch_operands = 0 : i64, tpu.core_type = #tpu.core_type<tc>} {
    %c0 = arith.constant 0 : index
    %c0_0 = arith.constant 0 : index
    %0 = vector.load %arg0[%c0, %c0_0] : memref<16x1xi32, #tpu.memory_space<vmem>>, vector<16x1xi32>
    %1 = tpu.iota {dimensions = array<i32: 1>} : vector<16x64xi32>
    %2 = vector.broadcast %0 : vector<16x1xi32> to vector<16x64xi32>
    %3 = arith.cmpi eq, %2, %1 : vector<16x64xi32>
    %4 = arith.extui %3 : vector<16x64xi1> to vector<16x64xi32>
    %5 = arith.sitofp %4 : vector<16x64xi32> to vector<16x64xf32>
    %c0_1 = arith.constant 0 : index
    %c0_2 = arith.constant 0 : index
    %6 = vector.load %arg2[%c0_1, %c0_2] : memref<82x32xf32, #tpu.memory_space<vmem>>, vector<64x32xf32>
    %cst = arith.constant dense<0.000000e+00> : vector<16x32xf32>
    %7 = tpu.matmul %5, %6, %cst {dimension_numbers = #tpu.dot_dimension_numbers<[1], [0], [0], [1], [0, 0, 1, 1], [], []>} : vector<16x64xf32>, vector<64x32xf32>, vector<16x32xf32> -> vector<16x32xf32>
    %c64 = arith.constant 64 : index
    %c0_3 = arith.constant 0 : index
    %8 = vector.load %arg2[%c64, %c0_3] : memref<82x32xf32, #tpu.memory_space<vmem>>, vector<8x32xf32>
    %9 = vector.shape_cast %7 : vector<16x32xf32> to vector<2x8x32xf32>
    %10 = vector.shape_cast %8 : vector<8x32xf32> to vector<1x8x32xf32>
    %11 = vector.broadcast %10 : vector<1x8x32xf32> to vector<2x8x32xf32>
    %12 = arith.addf %9, %11 : vector<2x8x32xf32>
    %13 = vector.shape_cast %12 : vector<2x8x32xf32> to vector<16x32xf32>
    %c80 = arith.constant 80 : index
    %c0_4 = arith.constant 0 : index
    %14 = vector.load %arg2[%c80, %c0_4] : memref<82x32xf32, #tpu.memory_space<vmem>>, vector<1x32xf32>
    %c81 = arith.constant 81 : index
    %c0_5 = arith.constant 0 : index
    %15 = vector.load %arg2[%c81, %c0_5] : memref<82x32xf32, #tpu.memory_space<vmem>>, vector<1x32xf32>
    %cst_6 = arith.constant dense<0.000000e+00> : vector<16xf32>
    %16 = vector.multi_reduction <add>, %13, %cst_6 [1] : vector<16x32xf32> to vector<16xf32>
    %17 = vector.shape_cast %16 : vector<16xf32> to vector<16x1xf32>
    %cst_7 = arith.constant 3.200000e+01 : f32
    %18 = vector.broadcast %cst_7 : f32 to vector<16x1xf32>
    %19 = arith.divf %17, %18 : vector<16x1xf32>
    %20 = vector.broadcast %19 : vector<16x1xf32> to vector<16x32xf32>
    %21 = arith.subf %13, %20 : vector<16x32xf32>
    %22 = arith.mulf %21, %21 : vector<16x32xf32>
    %cst_8 = arith.constant dense<0.000000e+00> : vector<16xf32>
    %23 = vector.multi_reduction <add>, %22, %cst_8 [1] : vector<16x32xf32> to vector<16xf32>
    %24 = vector.shape_cast %23 : vector<16xf32> to vector<16x1xf32>
    %cst_9 = arith.constant 3.200000e+01 : f32
    %25 = vector.broadcast %cst_9 : f32 to vector<16x1xf32>
    %26 = arith.divf %24, %25 : vector<16x1xf32>
    %27 = vector.broadcast %19 : vector<16x1xf32> to vector<16x32xf32>
    %28 = arith.subf %13, %27 : vector<16x32xf32>
    %cst_10 = arith.constant 9.99999996E-13 : f32
    %29 = vector.broadcast %cst_10 : f32 to vector<16x1xf32>
    %30 = arith.addf %26, %29 : vector<16x1xf32>
    %31 = math.rsqrt %30 : vector<16x1xf32>
    %32 = vector.broadcast %31 : vector<16x1xf32> to vector<16x32xf32>
    %33 = arith.mulf %28, %32 : vector<16x32xf32>
    %34 = vector.broadcast %14 : vector<1x32xf32> to vector<16x32xf32>
    %35 = arith.mulf %33, %34 : vector<16x32xf32>
    %36 = vector.broadcast %15 : vector<1x32xf32> to vector<16x32xf32>
    %37 = arith.addf %35, %36 : vector<16x32xf32>
    %c0_11 = arith.constant 0 : index
    %c0_12 = arith.constant 0 : index
    %c0_13 = arith.constant 0 : index
    %38 = vector.load %arg1[%c0_11, %c0_12, %c0_13] : memref<2x1x8xf32, #tpu.memory_space<vmem>>, vector<2x1x8xf32>
    %c0_14 = arith.constant 0 : index
    %c0_15 = arith.constant 0 : index
    %c0_16 = arith.constant 0 : index
    %39 = vector.load %arg3[%c0_14, %c0_15, %c0_16] : memref<2x32x192xbf16, #tpu.memory_space<vmem>>, vector<1x32x192xbf16>
    %40 = vector.shape_cast %39 : vector<1x32x192xbf16> to vector<32x192xbf16>
    %c0_17 = arith.constant 0 : index
    %c0_18 = arith.constant 0 : index
    %c0_19 = arith.constant 0 : index
    %41 = vector.load %arg4[%c0_17, %c0_18, %c0_19] : memref<2x64x32xbf16, #tpu.memory_space<vmem>>, vector<1x64x32xbf16>
    %42 = vector.shape_cast %41 : vector<1x64x32xbf16> to vector<64x32xbf16>
    %c0_20 = arith.constant 0 : index
    %c0_21 = arith.constant 0 : index
    %c0_22 = arith.constant 0 : index
    %43 = vector.load %arg5[%c0_20, %c0_21, %c0_22] : memref<2x8x96xf32, #tpu.memory_space<vmem>>, vector<1x8x96xf32>
    %44 = vector.shape_cast %43 : vector<1x8x96xf32> to vector<8x96xf32>
    %45 = vector.extract_strided_slice %40 {offsets = [0, 0], sizes = [32, 96], strides = [1, 1]} : vector<32x192xbf16> to vector<32x96xbf16>
    %46 = vector.extract_strided_slice %40 {offsets = [0, 96], sizes = [32, 32], strides = [1, 1]} : vector<32x192xbf16> to vector<32x32xbf16>
    %47 = vector.extract_strided_slice %40 {offsets = [0, 128], sizes = [32, 64], strides = [1, 1]} : vector<32x192xbf16> to vector<32x64xbf16>
    %48 = vector.extract_strided_slice %44 {offsets = [0, 0], sizes = [1, 96], strides = [1, 1]} : vector<8x96xf32> to vector<1x96xf32>
    %49 = vector.extract_strided_slice %44 {offsets = [1, 0], sizes = [1, 32], strides = [1, 1]} : vector<8x96xf32> to vector<1x32xf32>
    %50 = vector.extract_strided_slice %44 {offsets = [2, 0], sizes = [1, 32], strides = [1, 1]} : vector<8x96xf32> to vector<1x32xf32>
    %51 = vector.extract_strided_slice %44 {offsets = [3, 0], sizes = [1, 32], strides = [1, 1]} : vector<8x96xf32> to vector<1x32xf32>
    %52 = vector.extract_strided_slice %44 {offsets = [4, 0], sizes = [1, 64], strides = [1, 1]} : vector<8x96xf32> to vector<1x64xf32>
    %53 = vector.extract_strided_slice %44 {offsets = [5, 0], sizes = [1, 32], strides = [1, 1]} : vector<8x96xf32> to vector<1x32xf32>
    %54 = vector.extract_strided_slice %44 {offsets = [6, 0], sizes = [1, 32], strides = [1, 1]} : vector<8x96xf32> to vector<1x32xf32>
    %55 = vector.extract_strided_slice %44 {offsets = [7, 0], sizes = [1, 32], strides = [1, 1]} : vector<8x96xf32> to vector<1x32xf32>
    %56 = arith.truncf %37 : vector<16x32xf32> to vector<16x32xbf16>
    %cst_23 = arith.constant dense<0.000000e+00> : vector<16x96xf32>
    %57 = tpu.matmul %56, %45, %cst_23 {dimension_numbers = #tpu.dot_dimension_numbers<[1], [0], [0], [1], [0, 0, 1, 1], [], []>} : vector<16x32xbf16>, vector<32x96xbf16>, vector<16x96xf32> -> vector<16x96xf32>
    %58 = vector.broadcast %48 : vector<1x96xf32> to vector<16x96xf32>
    %59 = arith.addf %57, %58 : vector<16x96xf32>
    %60 = vector.extract_strided_slice %59 {offsets = [0, 0], sizes = [16, 32], strides = [1, 1]} : vector<16x96xf32> to vector<16x32xf32>
    %61 = vector.shape_cast %60 : vector<16x32xf32> to vector<2x8x32xf32>
    %62 = vector.extract_strided_slice %59 {offsets = [0, 32], sizes = [16, 32], strides = [1, 1]} : vector<16x96xf32> to vector<16x32xf32>
    %63 = vector.shape_cast %62 : vector<16x32xf32> to vector<2x8x32xf32>
    %64 = vector.extract_strided_slice %59 {offsets = [0, 64], sizes = [16, 32], strides = [1, 1]} : vector<16x96xf32> to vector<16x32xf32>
    %65 = vector.shape_cast %64 : vector<16x32xf32> to vector<2x8x32xf32>
    %66 = vector.extract_strided_slice %61 {offsets = [0, 0, 0], sizes = [2, 8, 8], strides = [1, 1, 1]} : vector<2x8x32xf32> to vector<2x8x8xf32>
    %67 = arith.truncf %66 : vector<2x8x8xf32> to vector<2x8x8xbf16>
    %68 = vector.extract_strided_slice %63 {offsets = [0, 0, 0], sizes = [2, 8, 8], strides = [1, 1, 1]} : vector<2x8x32xf32> to vector<2x8x8xf32>
    %69 = arith.truncf %68 : vector<2x8x8xf32> to vector<2x8x8xbf16>
    %70 = vector.extract_strided_slice %65 {offsets = [0, 0, 0], sizes = [2, 8, 8], strides = [1, 1, 1]} : vector<2x8x32xf32> to vector<2x8x8xf32>
    %71 = arith.truncf %70 : vector<2x8x8xf32> to vector<2x8x8xbf16>
    "tpu.trace_start"() <{level = 10 : i32, message = "bqd,bkd->bqk"}> : () -> ()
    %cst_24 = arith.constant dense<0.000000e+00> : vector<2x8x8xf32>
    %72 = tpu.matmul %67, %69, %cst_24 {dimension_numbers = #tpu.dot_dimension_numbers<[2], [2], [1], [1], [0, 0, 0, 1, 1, 1], [0], [0]>} : vector<2x8x8xbf16>, vector<2x8x8xbf16>, vector<2x8x8xf32> -> vector<2x8x8xf32>
    "tpu.trace_stop"() : () -> ()
    %73 = vector.broadcast %38 : vector<2x1x8xf32> to vector<2x8x8xf32>
    %74 = arith.addf %72, %73 : vector<2x8x8xf32>
    %cst_25 = arith.constant dense<0xFF800000> : vector<2x8xf32>
    %75 = vector.multi_reduction <maximumf>, %74, %cst_25 [2] : vector<2x8x8xf32> to vector<2x8xf32>
    %76 = vector.shape_cast %75 : vector<2x8xf32> to vector<2x8x1xf32>
    %77 = vector.broadcast %76 : vector<2x8x1xf32> to vector<2x8x8xf32>
    %78 = arith.subf %74, %77 : vector<2x8x8xf32>
    %79 = math.exp %78 : vector<2x8x8xf32>
    %cst_26 = arith.constant dense<0.000000e+00> : vector<2x8xf32>
    %80 = vector.multi_reduction <add>, %79, %cst_26 [2] : vector<2x8x8xf32> to vector<2x8xf32>
    %81 = vector.shape_cast %80 : vector<2x8xf32> to vector<2x8x1xf32>
    %82 = tpu.reciprocal %81 {approx = true} : vector<2x8x1xf32> -> vector<2x8x1xf32>
    %83 = vector.broadcast %82 : vector<2x8x1xf32> to vector<2x8x8xf32>
    %84 = arith.mulf %79, %83 : vector<2x8x8xf32>
    %85 = arith.truncf %84 : vector<2x8x8xf32> to vector<2x8x8xbf16>
    "tpu.trace_start"() <{level = 10 : i32, message = "bqk,bkd->bqd"}> : () -> ()
    %cst_27 = arith.constant dense<0.000000e+00> : vector<2x8x8xf32>
    %86 = tpu.matmul %85, %71, %cst_27 {dimension_numbers = #tpu.dot_dimension_numbers<[2], [1], [1], [2], [0, 0, 0, 1, 1, 2], [0], [0]>} : vector<2x8x8xbf16>, vector<2x8x8xbf16>, vector<2x8x8xf32> -> vector<2x8x8xf32>
    "tpu.trace_stop"() : () -> ()
    %87 = vector.extract_strided_slice %61 {offsets = [0, 0, 8], sizes = [2, 8, 8], strides = [1, 1, 1]} : vector<2x8x32xf32> to vector<2x8x8xf32>
    %88 = arith.truncf %87 : vector<2x8x8xf32> to vector<2x8x8xbf16>
    %89 = vector.extract_strided_slice %63 {offsets = [0, 0, 8], sizes = [2, 8, 8], strides = [1, 1, 1]} : vector<2x8x32xf32> to vector<2x8x8xf32>
    %90 = arith.truncf %89 : vector<2x8x8xf32> to vector<2x8x8xbf16>
    %91 = vector.extract_strided_slice %65 {offsets = [0, 0, 8], sizes = [2, 8, 8], strides = [1, 1, 1]} : vector<2x8x32xf32> to vector<2x8x8xf32>
    %92 = arith.truncf %91 : vector<2x8x8xf32> to vector<2x8x8xbf16>
    "tpu.trace_start"() <{level = 10 : i32, message = "bqd,bkd->bqk"}> : () -> ()
    %cst_28 = arith.constant dense<0.000000e+00> : vector<2x8x8xf32>
    %93 = tpu.matmul %88, %90, %cst_28 {dimension_numbers = #tpu.dot_dimension_numbers<[2], [2], [1], [1], [0, 0, 0, 1, 1, 1], [0], [0]>} : vector<2x8x8xbf16>, vector<2x8x8xbf16>, vector<2x8x8xf32> -> vector<2x8x8xf32>
    "tpu.trace_stop"() : () -> ()
    %94 = vector.broadcast %38 : vector<2x1x8xf32> to vector<2x8x8xf32>
    %95 = arith.addf %93, %94 : vector<2x8x8xf32>
    %cst_29 = arith.constant dense<0xFF800000> : vector<2x8xf32>
    %96 = vector.multi_reduction <maximumf>, %95, %cst_29 [2] : vector<2x8x8xf32> to vector<2x8xf32>
    %97 = vector.shape_cast %96 : vector<2x8xf32> to vector<2x8x1xf32>
    %98 = vector.broadcast %97 : vector<2x8x1xf32> to vector<2x8x8xf32>
    %99 = arith.subf %95, %98 : vector<2x8x8xf32>
    %100 = math.exp %99 : vector<2x8x8xf32>
    %cst_30 = arith.constant dense<0.000000e+00> : vector<2x8xf32>
    %101 = vector.multi_reduction <add>, %100, %cst_30 [2] : vector<2x8x8xf32> to vector<2x8xf32>
    %102 = vector.shape_cast %101 : vector<2x8xf32> to vector<2x8x1xf32>
    %103 = tpu.reciprocal %102 {approx = true} : vector<2x8x1xf32> -> vector<2x8x1xf32>
    %104 = vector.broadcast %103 : vector<2x8x1xf32> to vector<2x8x8xf32>
    %105 = arith.mulf %100, %104 : vector<2x8x8xf32>
    %106 = arith.truncf %105 : vector<2x8x8xf32> to vector<2x8x8xbf16>
    "tpu.trace_start"() <{level = 10 : i32, message = "bqk,bkd->bqd"}> : () -> ()
    %cst_31 = arith.constant dense<0.000000e+00> : vector<2x8x8xf32>
    %107 = tpu.matmul %106, %92, %cst_31 {dimension_numbers = #tpu.dot_dimension_numbers<[2], [1], [1], [2], [0, 0, 0, 1, 1, 2], [0], [0]>} : vector<2x8x8xbf16>, vector<2x8x8xbf16>, vector<2x8x8xf32> -> vector<2x8x8xf32>
    "tpu.trace_stop"() : () -> ()
    %108 = vector.extract_strided_slice %61 {offsets = [0, 0, 16], sizes = [2, 8, 8], strides = [1, 1, 1]} : vector<2x8x32xf32> to vector<2x8x8xf32>
    %109 = arith.truncf %108 : vector<2x8x8xf32> to vector<2x8x8xbf16>
    %110 = vector.extract_strided_slice %63 {offsets = [0, 0, 16], sizes = [2, 8, 8], strides = [1, 1, 1]} : vector<2x8x32xf32> to vector<2x8x8xf32>
    %111 = arith.truncf %110 : vector<2x8x8xf32> to vector<2x8x8xbf16>
    %112 = vector.extract_strided_slice %65 {offsets = [0, 0, 16], sizes = [2, 8, 8], strides = [1, 1, 1]} : vector<2x8x32xf32> to vector<2x8x8xf32>
    %113 = arith.truncf %112 : vector<2x8x8xf32> to vector<2x8x8xbf16>
    "tpu.trace_start"() <{level = 10 : i32, message = "bqd,bkd->bqk"}> : () -> ()
    %cst_32 = arith.constant dense<0.000000e+00> : vector<2x8x8xf32>
    %114 = tpu.matmul %109, %111, %cst_32 {dimension_numbers = #tpu.dot_dimension_numbers<[2], [2], [1], [1], [0, 0, 0, 1, 1, 1], [0], [0]>} : vector<2x8x8xbf16>, vector<2x8x8xbf16>, vector<2x8x8xf32> -> vector<2x8x8xf32>
    "tpu.trace_stop"() : () -> ()
    %115 = vector.broadcast %38 : vector<2x1x8xf32> to vector<2x8x8xf32>
    %116 = arith.addf %114, %115 : vector<2x8x8xf32>
    %cst_33 = arith.constant dense<0xFF800000> : vector<2x8xf32>
    %117 = vector.multi_reduction <maximumf>, %116, %cst_33 [2] : vector<2x8x8xf32> to vector<2x8xf32>
    %118 = vector.shape_cast %117 : vector<2x8xf32> to vector<2x8x1xf32>
    %119 = vector.broadcast %118 : vector<2x8x1xf32> to vector<2x8x8xf32>
    %120 = arith.subf %116, %119 : vector<2x8x8xf32>
    %121 = math.exp %120 : vector<2x8x8xf32>
    %cst_34 = arith.constant dense<0.000000e+00> : vector<2x8xf32>
    %122 = vector.multi_reduction <add>, %121, %cst_34 [2] : vector<2x8x8xf32> to vector<2x8xf32>
    %123 = vector.shape_cast %122 : vector<2x8xf32> to vector<2x8x1xf32>
    %124 = tpu.reciprocal %123 {approx = true} : vector<2x8x1xf32> -> vector<2x8x1xf32>
    %125 = vector.broadcast %124 : vector<2x8x1xf32> to vector<2x8x8xf32>
    %126 = arith.mulf %121, %125 : vector<2x8x8xf32>
    %127 = arith.truncf %126 : vector<2x8x8xf32> to vector<2x8x8xbf16>
    "tpu.trace_start"() <{level = 10 : i32, message = "bqk,bkd->bqd"}> : () -> ()
    %cst_35 = arith.constant dense<0.000000e+00> : vector<2x8x8xf32>
    %128 = tpu.matmul %127, %113, %cst_35 {dimension_numbers = #tpu.dot_dimension_numbers<[2], [1], [1], [2], [0, 0, 0, 1, 1, 2], [0], [0]>} : vector<2x8x8xbf16>, vector<2x8x8xbf16>, vector<2x8x8xf32> -> vector<2x8x8xf32>
    "tpu.trace_stop"() : () -> ()
    %129 = vector.extract_strided_slice %61 {offsets = [0, 0, 24], sizes = [2, 8, 8], strides = [1, 1, 1]} : vector<2x8x32xf32> to vector<2x8x8xf32>
    %130 = arith.truncf %129 : vector<2x8x8xf32> to vector<2x8x8xbf16>
    %131 = vector.extract_strided_slice %63 {offsets = [0, 0, 24], sizes = [2, 8, 8], strides = [1, 1, 1]} : vector<2x8x32xf32> to vector<2x8x8xf32>
    %132 = arith.truncf %131 : vector<2x8x8xf32> to vector<2x8x8xbf16>
    %133 = vector.extract_strided_slice %65 {offsets = [0, 0, 24], sizes = [2, 8, 8], strides = [1, 1, 1]} : vector<2x8x32xf32> to vector<2x8x8xf32>
    %134 = arith.truncf %133 : vector<2x8x8xf32> to vector<2x8x8xbf16>
    "tpu.trace_start"() <{level = 10 : i32, message = "bqd,bkd->bqk"}> : () -> ()
    %cst_36 = arith.constant dense<0.000000e+00> : vector<2x8x8xf32>
    %135 = tpu.matmul %130, %132, %cst_36 {dimension_numbers = #tpu.dot_dimension_numbers<[2], [2], [1], [1], [0, 0, 0, 1, 1, 1], [0], [0]>} : vector<2x8x8xbf16>, vector<2x8x8xbf16>, vector<2x8x8xf32> -> vector<2x8x8xf32>
    "tpu.trace_stop"() : () -> ()
    %136 = vector.broadcast %38 : vector<2x1x8xf32> to vector<2x8x8xf32>
    %137 = arith.addf %135, %136 : vector<2x8x8xf32>
    %cst_37 = arith.constant dense<0xFF800000> : vector<2x8xf32>
    %138 = vector.multi_reduction <maximumf>, %137, %cst_37 [2] : vector<2x8x8xf32> to vector<2x8xf32>
    %139 = vector.shape_cast %138 : vector<2x8xf32> to vector<2x8x1xf32>
    %140 = vector.broadcast %139 : vector<2x8x1xf32> to vector<2x8x8xf32>
    %141 = arith.subf %137, %140 : vector<2x8x8xf32>
    %142 = math.exp %141 : vector<2x8x8xf32>
    %cst_38 = arith.constant dense<0.000000e+00> : vector<2x8xf32>
    %143 = vector.multi_reduction <add>, %142, %cst_38 [2] : vector<2x8x8xf32> to vector<2x8xf32>
    %144 = vector.shape_cast %143 : vector<2x8xf32> to vector<2x8x1xf32>
    %145 = tpu.reciprocal %144 {approx = true} : vector<2x8x1xf32> -> vector<2x8x1xf32>
    %146 = vector.broadcast %145 : vector<2x8x1xf32> to vector<2x8x8xf32>
    %147 = arith.mulf %142, %146 : vector<2x8x8xf32>
    %148 = arith.truncf %147 : vector<2x8x8xf32> to vector<2x8x8xbf16>
    "tpu.trace_start"() <{level = 10 : i32, message = "bqk,bkd->bqd"}> : () -> ()
    %cst_39 = arith.constant dense<0.000000e+00> : vector<2x8x8xf32>
    %149 = tpu.matmul %148, %134, %cst_39 {dimension_numbers = #tpu.dot_dimension_numbers<[2], [1], [1], [2], [0, 0, 0, 1, 1, 2], [0], [0]>} : vector<2x8x8xbf16>, vector<2x8x8xbf16>, vector<2x8x8xf32> -> vector<2x8x8xf32>
    "tpu.trace_stop"() : () -> ()
    %150 = tpu.concatenate %86, %107, %128, %149 in 2 : vector<2x8x8xf32>, vector<2x8x8xf32>, vector<2x8x8xf32>, vector<2x8x8xf32> -> vector<2x8x32xf32>
    %151 = vector.shape_cast %150 : vector<2x8x32xf32> to vector<16x32xf32>
    %152 = arith.truncf %151 : vector<16x32xf32> to vector<16x32xbf16>
    %cst_40 = arith.constant dense<0.000000e+00> : vector<16x32xf32>
    %153 = tpu.matmul %152, %46, %cst_40 {dimension_numbers = #tpu.dot_dimension_numbers<[1], [0], [0], [1], [0, 0, 1, 1], [], []>} : vector<16x32xbf16>, vector<32x32xbf16>, vector<16x32xf32> -> vector<16x32xf32>
    %154 = vector.broadcast %49 : vector<1x32xf32> to vector<16x32xf32>
    %155 = arith.addf %153, %154 : vector<16x32xf32>
    %156 = arith.addf %155, %37 : vector<16x32xf32>
    %cst_41 = arith.constant dense<0.000000e+00> : vector<16xf32>
    %157 = vector.multi_reduction <add>, %156, %cst_41 [1] : vector<16x32xf32> to vector<16xf32>
    %158 = vector.shape_cast %157 : vector<16xf32> to vector<16x1xf32>
    %cst_42 = arith.constant 3.200000e+01 : f32
    %159 = vector.broadcast %cst_42 : f32 to vector<16x1xf32>
    %160 = arith.divf %158, %159 : vector<16x1xf32>
    %161 = vector.broadcast %160 : vector<16x1xf32> to vector<16x32xf32>
    %162 = arith.subf %156, %161 : vector<16x32xf32>
    %163 = arith.mulf %162, %162 : vector<16x32xf32>
    %cst_43 = arith.constant dense<0.000000e+00> : vector<16xf32>
    %164 = vector.multi_reduction <add>, %163, %cst_43 [1] : vector<16x32xf32> to vector<16xf32>
    %165 = vector.shape_cast %164 : vector<16xf32> to vector<16x1xf32>
    %cst_44 = arith.constant 3.200000e+01 : f32
    %166 = vector.broadcast %cst_44 : f32 to vector<16x1xf32>
    %167 = arith.divf %165, %166 : vector<16x1xf32>
    %168 = vector.broadcast %160 : vector<16x1xf32> to vector<16x32xf32>
    %169 = arith.subf %156, %168 : vector<16x32xf32>
    %cst_45 = arith.constant 9.99999996E-13 : f32
    %170 = vector.broadcast %cst_45 : f32 to vector<16x1xf32>
    %171 = arith.addf %167, %170 : vector<16x1xf32>
    %172 = math.rsqrt %171 : vector<16x1xf32>
    %173 = vector.broadcast %172 : vector<16x1xf32> to vector<16x32xf32>
    %174 = arith.mulf %169, %173 : vector<16x32xf32>
    %175 = vector.broadcast %50 : vector<1x32xf32> to vector<16x32xf32>
    %176 = arith.mulf %174, %175 : vector<16x32xf32>
    %177 = vector.broadcast %51 : vector<1x32xf32> to vector<16x32xf32>
    %178 = arith.addf %176, %177 : vector<16x32xf32>
    %179 = arith.truncf %178 : vector<16x32xf32> to vector<16x32xbf16>
    %cst_46 = arith.constant dense<0.000000e+00> : vector<16x64xf32>
    %180 = tpu.matmul %179, %47, %cst_46 {dimension_numbers = #tpu.dot_dimension_numbers<[1], [0], [0], [1], [0, 0, 1, 1], [], []>} : vector<16x32xbf16>, vector<32x64xbf16>, vector<16x64xf32> -> vector<16x64xf32>
    %181 = vector.broadcast %52 : vector<1x64xf32> to vector<16x64xf32>
    %182 = arith.addf %180, %181 : vector<16x64xf32>
    %cst_47 = arith.constant 5.000000e-01 : f32
    %183 = vector.broadcast %cst_47 : f32 to vector<16x64xf32>
    %184 = arith.mulf %183, %182 : vector<16x64xf32>
    %cst_48 = arith.constant 0.707106769 : f32
    %185 = vector.broadcast %cst_48 : f32 to vector<16x64xf32>
    %186 = arith.mulf %182, %185 : vector<16x64xf32>
    %187 = math.erf %186 : vector<16x64xf32>
    %cst_49 = arith.constant 1.000000e+00 : f32
    %188 = vector.broadcast %cst_49 : f32 to vector<16x64xf32>
    %189 = arith.addf %188, %187 : vector<16x64xf32>
    %190 = arith.mulf %184, %189 : vector<16x64xf32>
    %191 = arith.truncf %190 : vector<16x64xf32> to vector<16x64xbf16>
    %cst_50 = arith.constant dense<0.000000e+00> : vector<16x32xf32>
    %192 = tpu.matmul %191, %42, %cst_50 {dimension_numbers = #tpu.dot_dimension_numbers<[1], [0], [0], [1], [0, 0, 1, 1], [], []>} : vector<16x64xbf16>, vector<64x32xbf16>, vector<16x32xf32> -> vector<16x32xf32>
    %193 = vector.broadcast %53 : vector<1x32xf32> to vector<16x32xf32>
    %194 = arith.addf %192, %193 : vector<16x32xf32>
    %195 = arith.addf %194, %178 : vector<16x32xf32>
    %cst_51 = arith.constant dense<0.000000e+00> : vector<16xf32>
    %196 = vector.multi_reduction <add>, %195, %cst_51 [1] : vector<16x32xf32> to vector<16xf32>
    %197 = vector.shape_cast %196 : vector<16xf32> to vector<16x1xf32>
    %cst_52 = arith.constant 3.200000e+01 : f32
    %198 = vector.broadcast %cst_52 : f32 to vector<16x1xf32>
    %199 = arith.divf %197, %198 : vector<16x1xf32>
    %200 = vector.broadcast %199 : vector<16x1xf32> to vector<16x32xf32>
    %201 = arith.subf %195, %200 : vector<16x32xf32>
    %202 = arith.mulf %201, %201 : vector<16x32xf32>
    %cst_53 = arith.constant dense<0.000000e+00> : vector<16xf32>
    %203 = vector.multi_reduction <add>, %202, %cst_53 [1] : vector<16x32xf32> to vector<16xf32>
    %204 = vector.shape_cast %203 : vector<16xf32> to vector<16x1xf32>
    %cst_54 = arith.constant 3.200000e+01 : f32
    %205 = vector.broadcast %cst_54 : f32 to vector<16x1xf32>
    %206 = arith.divf %204, %205 : vector<16x1xf32>
    %207 = vector.broadcast %199 : vector<16x1xf32> to vector<16x32xf32>
    %208 = arith.subf %195, %207 : vector<16x32xf32>
    %cst_55 = arith.constant 9.99999996E-13 : f32
    %209 = vector.broadcast %cst_55 : f32 to vector<16x1xf32>
    %210 = arith.addf %206, %209 : vector<16x1xf32>
    %211 = math.rsqrt %210 : vector<16x1xf32>
    %212 = vector.broadcast %211 : vector<16x1xf32> to vector<16x32xf32>
    %213 = arith.mulf %208, %212 : vector<16x32xf32>
    %214 = vector.broadcast %54 : vector<1x32xf32> to vector<16x32xf32>
    %215 = arith.mulf %213, %214 : vector<16x32xf32>
    %216 = vector.broadcast %55 : vector<1x32xf32> to vector<16x32xf32>
    %217 = arith.addf %215, %216 : vector<16x32xf32>
    %c1 = arith.constant 1 : index
    %c0_56 = arith.constant 0 : index
    %c0_57 = arith.constant 0 : index
    %218 = vector.load %arg3[%c1, %c0_56, %c0_57] : memref<2x32x192xbf16, #tpu.memory_space<vmem>>, vector<1x32x192xbf16>
    %219 = vector.shape_cast %218 : vector<1x32x192xbf16> to vector<32x192xbf16>
    %c1_58 = arith.constant 1 : index
    %c0_59 = arith.constant 0 : index
    %c0_60 = arith.constant 0 : index
    %220 = vector.load %arg4[%c1_58, %c0_59, %c0_60] : memref<2x64x32xbf16, #tpu.memory_space<vmem>>, vector<1x64x32xbf16>
    %221 = vector.shape_cast %220 : vector<1x64x32xbf16> to vector<64x32xbf16>
    %c1_61 = arith.constant 1 : index
    %c0_62 = arith.constant 0 : index
    %c0_63 = arith.constant 0 : index
    %222 = vector.load %arg5[%c1_61, %c0_62, %c0_63] : memref<2x8x96xf32, #tpu.memory_space<vmem>>, vector<1x8x96xf32>
    %223 = vector.shape_cast %222 : vector<1x8x96xf32> to vector<8x96xf32>
    %224 = vector.extract_strided_slice %219 {offsets = [0, 0], sizes = [32, 96], strides = [1, 1]} : vector<32x192xbf16> to vector<32x96xbf16>
    %225 = vector.extract_strided_slice %219 {offsets = [0, 96], sizes = [32, 32], strides = [1, 1]} : vector<32x192xbf16> to vector<32x32xbf16>
    %226 = vector.extract_strided_slice %219 {offsets = [0, 128], sizes = [32, 64], strides = [1, 1]} : vector<32x192xbf16> to vector<32x64xbf16>
    %227 = vector.extract_strided_slice %223 {offsets = [0, 0], sizes = [1, 96], strides = [1, 1]} : vector<8x96xf32> to vector<1x96xf32>
    %228 = vector.extract_strided_slice %223 {offsets = [1, 0], sizes = [1, 32], strides = [1, 1]} : vector<8x96xf32> to vector<1x32xf32>
    %229 = vector.extract_strided_slice %223 {offsets = [2, 0], sizes = [1, 32], strides = [1, 1]} : vector<8x96xf32> to vector<1x32xf32>
    %230 = vector.extract_strided_slice %223 {offsets = [3, 0], sizes = [1, 32], strides = [1, 1]} : vector<8x96xf32> to vector<1x32xf32>
    %231 = vector.extract_strided_slice %223 {offsets = [4, 0], sizes = [1, 64], strides = [1, 1]} : vector<8x96xf32> to vector<1x64xf32>
    %232 = vector.extract_strided_slice %223 {offsets = [5, 0], sizes = [1, 32], strides = [1, 1]} : vector<8x96xf32> to vector<1x32xf32>
    %233 = vector.extract_strided_slice %223 {offsets = [6, 0], sizes = [1, 32], strides = [1, 1]} : vector<8x96xf32> to vector<1x32xf32>
    %234 = vector.extract_strided_slice %223 {offsets = [7, 0], sizes = [1, 32], strides = [1, 1]} : vector<8x96xf32> to vector<1x32xf32>
    %235 = arith.truncf %217 : vector<16x32xf32> to vector<16x32xbf16>
    %cst_64 = arith.constant dense<0.000000e+00> : vector<16x96xf32>
    %236 = tpu.matmul %235, %224, %cst_64 {dimension_numbers = #tpu.dot_dimension_numbers<[1], [0], [0], [1], [0, 0, 1, 1], [], []>} : vector<16x32xbf16>, vector<32x96xbf16>, vector<16x96xf32> -> vector<16x96xf32>
    %237 = vector.broadcast %227 : vector<1x96xf32> to vector<16x96xf32>
    %238 = arith.addf %236, %237 : vector<16x96xf32>
    %239 = vector.extract_strided_slice %238 {offsets = [0, 0], sizes = [16, 32], strides = [1, 1]} : vector<16x96xf32> to vector<16x32xf32>
    %240 = vector.shape_cast %239 : vector<16x32xf32> to vector<2x8x32xf32>
    %241 = vector.extract_strided_slice %238 {offsets = [0, 32], sizes = [16, 32], strides = [1, 1]} : vector<16x96xf32> to vector<16x32xf32>
    %242 = vector.shape_cast %241 : vector<16x32xf32> to vector<2x8x32xf32>
    %243 = vector.extract_strided_slice %238 {offsets = [0, 64], sizes = [16, 32], strides = [1, 1]} : vector<16x96xf32> to vector<16x32xf32>
    %244 = vector.shape_cast %243 : vector<16x32xf32> to vector<2x8x32xf32>
    %245 = vector.extract_strided_slice %240 {offsets = [0, 0, 0], sizes = [2, 8, 8], strides = [1, 1, 1]} : vector<2x8x32xf32> to vector<2x8x8xf32>
    %246 = arith.truncf %245 : vector<2x8x8xf32> to vector<2x8x8xbf16>
    %247 = vector.extract_strided_slice %242 {offsets = [0, 0, 0], sizes = [2, 8, 8], strides = [1, 1, 1]} : vector<2x8x32xf32> to vector<2x8x8xf32>
    %248 = arith.truncf %247 : vector<2x8x8xf32> to vector<2x8x8xbf16>
    %249 = vector.extract_strided_slice %244 {offsets = [0, 0, 0], sizes = [2, 8, 8], strides = [1, 1, 1]} : vector<2x8x32xf32> to vector<2x8x8xf32>
    %250 = arith.truncf %249 : vector<2x8x8xf32> to vector<2x8x8xbf16>
    "tpu.trace_start"() <{level = 10 : i32, message = "bqd,bkd->bqk"}> : () -> ()
    %cst_65 = arith.constant dense<0.000000e+00> : vector<2x8x8xf32>
    %251 = tpu.matmul %246, %248, %cst_65 {dimension_numbers = #tpu.dot_dimension_numbers<[2], [2], [1], [1], [0, 0, 0, 1, 1, 1], [0], [0]>} : vector<2x8x8xbf16>, vector<2x8x8xbf16>, vector<2x8x8xf32> -> vector<2x8x8xf32>
    "tpu.trace_stop"() : () -> ()
    %252 = vector.broadcast %38 : vector<2x1x8xf32> to vector<2x8x8xf32>
    %253 = arith.addf %251, %252 : vector<2x8x8xf32>
    %cst_66 = arith.constant dense<0xFF800000> : vector<2x8xf32>
    %254 = vector.multi_reduction <maximumf>, %253, %cst_66 [2] : vector<2x8x8xf32> to vector<2x8xf32>
    %255 = vector.shape_cast %254 : vector<2x8xf32> to vector<2x8x1xf32>
    %256 = vector.broadcast %255 : vector<2x8x1xf32> to vector<2x8x8xf32>
    %257 = arith.subf %253, %256 : vector<2x8x8xf32>
    %258 = math.exp %257 : vector<2x8x8xf32>
    %cst_67 = arith.constant dense<0.000000e+00> : vector<2x8xf32>
    %259 = vector.multi_reduction <add>, %258, %cst_67 [2] : vector<2x8x8xf32> to vector<2x8xf32>
    %260 = vector.shape_cast %259 : vector<2x8xf32> to vector<2x8x1xf32>
    %261 = tpu.reciprocal %260 {approx = true} : vector<2x8x1xf32> -> vector<2x8x1xf32>
    %262 = vector.broadcast %261 : vector<2x8x1xf32> to vector<2x8x8xf32>
    %263 = arith.mulf %258, %262 : vector<2x8x8xf32>
    %264 = arith.truncf %263 : vector<2x8x8xf32> to vector<2x8x8xbf16>
    "tpu.trace_start"() <{level = 10 : i32, message = "bqk,bkd->bqd"}> : () -> ()
    %cst_68 = arith.constant dense<0.000000e+00> : vector<2x8x8xf32>
    %265 = tpu.matmul %264, %250, %cst_68 {dimension_numbers = #tpu.dot_dimension_numbers<[2], [1], [1], [2], [0, 0, 0, 1, 1, 2], [0], [0]>} : vector<2x8x8xbf16>, vector<2x8x8xbf16>, vector<2x8x8xf32> -> vector<2x8x8xf32>
    "tpu.trace_stop"() : () -> ()
    %266 = vector.extract_strided_slice %240 {offsets = [0, 0, 8], sizes = [2, 8, 8], strides = [1, 1, 1]} : vector<2x8x32xf32> to vector<2x8x8xf32>
    %267 = arith.truncf %266 : vector<2x8x8xf32> to vector<2x8x8xbf16>
    %268 = vector.extract_strided_slice %242 {offsets = [0, 0, 8], sizes = [2, 8, 8], strides = [1, 1, 1]} : vector<2x8x32xf32> to vector<2x8x8xf32>
    %269 = arith.truncf %268 : vector<2x8x8xf32> to vector<2x8x8xbf16>
    %270 = vector.extract_strided_slice %244 {offsets = [0, 0, 8], sizes = [2, 8, 8], strides = [1, 1, 1]} : vector<2x8x32xf32> to vector<2x8x8xf32>
    %271 = arith.truncf %270 : vector<2x8x8xf32> to vector<2x8x8xbf16>
    "tpu.trace_start"() <{level = 10 : i32, message = "bqd,bkd->bqk"}> : () -> ()
    %cst_69 = arith.constant dense<0.000000e+00> : vector<2x8x8xf32>
    %272 = tpu.matmul %267, %269, %cst_69 {dimension_numbers = #tpu.dot_dimension_numbers<[2], [2], [1], [1], [0, 0, 0, 1, 1, 1], [0], [0]>} : vector<2x8x8xbf16>, vector<2x8x8xbf16>, vector<2x8x8xf32> -> vector<2x8x8xf32>
    "tpu.trace_stop"() : () -> ()
    %273 = vector.broadcast %38 : vector<2x1x8xf32> to vector<2x8x8xf32>
    %274 = arith.addf %272, %273 : vector<2x8x8xf32>
    %cst_70 = arith.constant dense<0xFF800000> : vector<2x8xf32>
    %275 = vector.multi_reduction <maximumf>, %274, %cst_70 [2] : vector<2x8x8xf32> to vector<2x8xf32>
    %276 = vector.shape_cast %275 : vector<2x8xf32> to vector<2x8x1xf32>
    %277 = vector.broadcast %276 : vector<2x8x1xf32> to vector<2x8x8xf32>
    %278 = arith.subf %274, %277 : vector<2x8x8xf32>
    %279 = math.exp %278 : vector<2x8x8xf32>
    %cst_71 = arith.constant dense<0.000000e+00> : vector<2x8xf32>
    %280 = vector.multi_reduction <add>, %279, %cst_71 [2] : vector<2x8x8xf32> to vector<2x8xf32>
    %281 = vector.shape_cast %280 : vector<2x8xf32> to vector<2x8x1xf32>
    %282 = tpu.reciprocal %281 {approx = true} : vector<2x8x1xf32> -> vector<2x8x1xf32>
    %283 = vector.broadcast %282 : vector<2x8x1xf32> to vector<2x8x8xf32>
    %284 = arith.mulf %279, %283 : vector<2x8x8xf32>
    %285 = arith.truncf %284 : vector<2x8x8xf32> to vector<2x8x8xbf16>
    "tpu.trace_start"() <{level = 10 : i32, message = "bqk,bkd->bqd"}> : () -> ()
    %cst_72 = arith.constant dense<0.000000e+00> : vector<2x8x8xf32>
    %286 = tpu.matmul %285, %271, %cst_72 {dimension_numbers = #tpu.dot_dimension_numbers<[2], [1], [1], [2], [0, 0, 0, 1, 1, 2], [0], [0]>} : vector<2x8x8xbf16>, vector<2x8x8xbf16>, vector<2x8x8xf32> -> vector<2x8x8xf32>
    "tpu.trace_stop"() : () -> ()
    %287 = vector.extract_strided_slice %240 {offsets = [0, 0, 16], sizes = [2, 8, 8], strides = [1, 1, 1]} : vector<2x8x32xf32> to vector<2x8x8xf32>
    %288 = arith.truncf %287 : vector<2x8x8xf32> to vector<2x8x8xbf16>
    %289 = vector.extract_strided_slice %242 {offsets = [0, 0, 16], sizes = [2, 8, 8], strides = [1, 1, 1]} : vector<2x8x32xf32> to vector<2x8x8xf32>
    %290 = arith.truncf %289 : vector<2x8x8xf32> to vector<2x8x8xbf16>
    %291 = vector.extract_strided_slice %244 {offsets = [0, 0, 16], sizes = [2, 8, 8], strides = [1, 1, 1]} : vector<2x8x32xf32> to vector<2x8x8xf32>
    %292 = arith.truncf %291 : vector<2x8x8xf32> to vector<2x8x8xbf16>
    "tpu.trace_start"() <{level = 10 : i32, message = "bqd,bkd->bqk"}> : () -> ()
    %cst_73 = arith.constant dense<0.000000e+00> : vector<2x8x8xf32>
    %293 = tpu.matmul %288, %290, %cst_73 {dimension_numbers = #tpu.dot_dimension_numbers<[2], [2], [1], [1], [0, 0, 0, 1, 1, 1], [0], [0]>} : vector<2x8x8xbf16>, vector<2x8x8xbf16>, vector<2x8x8xf32> -> vector<2x8x8xf32>
    "tpu.trace_stop"() : () -> ()
    %294 = vector.broadcast %38 : vector<2x1x8xf32> to vector<2x8x8xf32>
    %295 = arith.addf %293, %294 : vector<2x8x8xf32>
    %cst_74 = arith.constant dense<0xFF800000> : vector<2x8xf32>
    %296 = vector.multi_reduction <maximumf>, %295, %cst_74 [2] : vector<2x8x8xf32> to vector<2x8xf32>
    %297 = vector.shape_cast %296 : vector<2x8xf32> to vector<2x8x1xf32>
    %298 = vector.broadcast %297 : vector<2x8x1xf32> to vector<2x8x8xf32>
    %299 = arith.subf %295, %298 : vector<2x8x8xf32>
    %300 = math.exp %299 : vector<2x8x8xf32>
    %cst_75 = arith.constant dense<0.000000e+00> : vector<2x8xf32>
    %301 = vector.multi_reduction <add>, %300, %cst_75 [2] : vector<2x8x8xf32> to vector<2x8xf32>
    %302 = vector.shape_cast %301 : vector<2x8xf32> to vector<2x8x1xf32>
    %303 = tpu.reciprocal %302 {approx = true} : vector<2x8x1xf32> -> vector<2x8x1xf32>
    %304 = vector.broadcast %303 : vector<2x8x1xf32> to vector<2x8x8xf32>
    %305 = arith.mulf %300, %304 : vector<2x8x8xf32>
    %306 = arith.truncf %305 : vector<2x8x8xf32> to vector<2x8x8xbf16>
    "tpu.trace_start"() <{level = 10 : i32, message = "bqk,bkd->bqd"}> : () -> ()
    %cst_76 = arith.constant dense<0.000000e+00> : vector<2x8x8xf32>
    %307 = tpu.matmul %306, %292, %cst_76 {dimension_numbers = #tpu.dot_dimension_numbers<[2], [1], [1], [2], [0, 0, 0, 1, 1, 2], [0], [0]>} : vector<2x8x8xbf16>, vector<2x8x8xbf16>, vector<2x8x8xf32> -> vector<2x8x8xf32>
    "tpu.trace_stop"() : () -> ()
    %308 = vector.extract_strided_slice %240 {offsets = [0, 0, 24], sizes = [2, 8, 8], strides = [1, 1, 1]} : vector<2x8x32xf32> to vector<2x8x8xf32>
    %309 = arith.truncf %308 : vector<2x8x8xf32> to vector<2x8x8xbf16>
    %310 = vector.extract_strided_slice %242 {offsets = [0, 0, 24], sizes = [2, 8, 8], strides = [1, 1, 1]} : vector<2x8x32xf32> to vector<2x8x8xf32>
    %311 = arith.truncf %310 : vector<2x8x8xf32> to vector<2x8x8xbf16>
    %312 = vector.extract_strided_slice %244 {offsets = [0, 0, 24], sizes = [2, 8, 8], strides = [1, 1, 1]} : vector<2x8x32xf32> to vector<2x8x8xf32>
    %313 = arith.truncf %312 : vector<2x8x8xf32> to vector<2x8x8xbf16>
    "tpu.trace_start"() <{level = 10 : i32, message = "bqd,bkd->bqk"}> : () -> ()
    %cst_77 = arith.constant dense<0.000000e+00> : vector<2x8x8xf32>
    %314 = tpu.matmul %309, %311, %cst_77 {dimension_numbers = #tpu.dot_dimension_numbers<[2], [2], [1], [1], [0, 0, 0, 1, 1, 1], [0], [0]>} : vector<2x8x8xbf16>, vector<2x8x8xbf16>, vector<2x8x8xf32> -> vector<2x8x8xf32>
    "tpu.trace_stop"() : () -> ()
    %315 = vector.broadcast %38 : vector<2x1x8xf32> to vector<2x8x8xf32>
    %316 = arith.addf %314, %315 : vector<2x8x8xf32>
    %cst_78 = arith.constant dense<0xFF800000> : vector<2x8xf32>
    %317 = vector.multi_reduction <maximumf>, %316, %cst_78 [2] : vector<2x8x8xf32> to vector<2x8xf32>
    %318 = vector.shape_cast %317 : vector<2x8xf32> to vector<2x8x1xf32>
    %319 = vector.broadcast %318 : vector<2x8x1xf32> to vector<2x8x8xf32>
    %320 = arith.subf %316, %319 : vector<2x8x8xf32>
    %321 = math.exp %320 : vector<2x8x8xf32>
    %cst_79 = arith.constant dense<0.000000e+00> : vector<2x8xf32>
    %322 = vector.multi_reduction <add>, %321, %cst_79 [2] : vector<2x8x8xf32> to vector<2x8xf32>
    %323 = vector.shape_cast %322 : vector<2x8xf32> to vector<2x8x1xf32>
    %324 = tpu.reciprocal %323 {approx = true} : vector<2x8x1xf32> -> vector<2x8x1xf32>
    %325 = vector.broadcast %324 : vector<2x8x1xf32> to vector<2x8x8xf32>
    %326 = arith.mulf %321, %325 : vector<2x8x8xf32>
    %327 = arith.truncf %326 : vector<2x8x8xf32> to vector<2x8x8xbf16>
    "tpu.trace_start"() <{level = 10 : i32, message = "bqk,bkd->bqd"}> : () -> ()
    %cst_80 = arith.constant dense<0.000000e+00> : vector<2x8x8xf32>
    %328 = tpu.matmul %327, %313, %cst_80 {dimension_numbers = #tpu.dot_dimension_numbers<[2], [1], [1], [2], [0, 0, 0, 1, 1, 2], [0], [0]>} : vector<2x8x8xbf16>, vector<2x8x8xbf16>, vector<2x8x8xf32> -> vector<2x8x8xf32>
    "tpu.trace_stop"() : () -> ()
    %329 = tpu.concatenate %265, %286, %307, %328 in 2 : vector<2x8x8xf32>, vector<2x8x8xf32>, vector<2x8x8xf32>, vector<2x8x8xf32> -> vector<2x8x32xf32>
    %330 = vector.shape_cast %329 : vector<2x8x32xf32> to vector<16x32xf32>
    %331 = arith.truncf %330 : vector<16x32xf32> to vector<16x32xbf16>
    %cst_81 = arith.constant dense<0.000000e+00> : vector<16x32xf32>
    %332 = tpu.matmul %331, %225, %cst_81 {dimension_numbers = #tpu.dot_dimension_numbers<[1], [0], [0], [1], [0, 0, 1, 1], [], []>} : vector<16x32xbf16>, vector<32x32xbf16>, vector<16x32xf32> -> vector<16x32xf32>
    %333 = vector.broadcast %228 : vector<1x32xf32> to vector<16x32xf32>
    %334 = arith.addf %332, %333 : vector<16x32xf32>
    %335 = arith.addf %334, %217 : vector<16x32xf32>
    %cst_82 = arith.constant dense<0.000000e+00> : vector<16xf32>
    %336 = vector.multi_reduction <add>, %335, %cst_82 [1] : vector<16x32xf32> to vector<16xf32>
    %337 = vector.shape_cast %336 : vector<16xf32> to vector<16x1xf32>
    %cst_83 = arith.constant 3.200000e+01 : f32
    %338 = vector.broadcast %cst_83 : f32 to vector<16x1xf32>
    %339 = arith.divf %337, %338 : vector<16x1xf32>
    %340 = vector.broadcast %339 : vector<16x1xf32> to vector<16x32xf32>
    %341 = arith.subf %335, %340 : vector<16x32xf32>
    %342 = arith.mulf %341, %341 : vector<16x32xf32>
    %cst_84 = arith.constant dense<0.000000e+00> : vector<16xf32>
    %343 = vector.multi_reduction <add>, %342, %cst_84 [1] : vector<16x32xf32> to vector<16xf32>
    %344 = vector.shape_cast %343 : vector<16xf32> to vector<16x1xf32>
    %cst_85 = arith.constant 3.200000e+01 : f32
    %345 = vector.broadcast %cst_85 : f32 to vector<16x1xf32>
    %346 = arith.divf %344, %345 : vector<16x1xf32>
    %347 = vector.broadcast %339 : vector<16x1xf32> to vector<16x32xf32>
    %348 = arith.subf %335, %347 : vector<16x32xf32>
    %cst_86 = arith.constant 9.99999996E-13 : f32
    %349 = vector.broadcast %cst_86 : f32 to vector<16x1xf32>
    %350 = arith.addf %346, %349 : vector<16x1xf32>
    %351 = math.rsqrt %350 : vector<16x1xf32>
    %352 = vector.broadcast %351 : vector<16x1xf32> to vector<16x32xf32>
    %353 = arith.mulf %348, %352 : vector<16x32xf32>
    %354 = vector.broadcast %229 : vector<1x32xf32> to vector<16x32xf32>
    %355 = arith.mulf %353, %354 : vector<16x32xf32>
    %356 = vector.broadcast %230 : vector<1x32xf32> to vector<16x32xf32>
    %357 = arith.addf %355, %356 : vector<16x32xf32>
    %358 = arith.truncf %357 : vector<16x32xf32> to vector<16x32xbf16>
    %cst_87 = arith.constant dense<0.000000e+00> : vector<16x64xf32>
    %359 = tpu.matmul %358, %226, %cst_87 {dimension_numbers = #tpu.dot_dimension_numbers<[1], [0], [0], [1], [0, 0, 1, 1], [], []>} : vector<16x32xbf16>, vector<32x64xbf16>, vector<16x64xf32> -> vector<16x64xf32>
    %360 = vector.broadcast %231 : vector<1x64xf32> to vector<16x64xf32>
    %361 = arith.addf %359, %360 : vector<16x64xf32>
    %cst_88 = arith.constant 5.000000e-01 : f32
    %362 = vector.broadcast %cst_88 : f32 to vector<16x64xf32>
    %363 = arith.mulf %362, %361 : vector<16x64xf32>
    %cst_89 = arith.constant 0.707106769 : f32
    %364 = vector.broadcast %cst_89 : f32 to vector<16x64xf32>
    %365 = arith.mulf %361, %364 : vector<16x64xf32>
    %366 = math.erf %365 : vector<16x64xf32>
    %cst_90 = arith.constant 1.000000e+00 : f32
    %367 = vector.broadcast %cst_90 : f32 to vector<16x64xf32>
    %368 = arith.addf %367, %366 : vector<16x64xf32>
    %369 = arith.mulf %363, %368 : vector<16x64xf32>
    %370 = arith.truncf %369 : vector<16x64xf32> to vector<16x64xbf16>
    %cst_91 = arith.constant dense<0.000000e+00> : vector<16x32xf32>
    %371 = tpu.matmul %370, %221, %cst_91 {dimension_numbers = #tpu.dot_dimension_numbers<[1], [0], [0], [1], [0, 0, 1, 1], [], []>} : vector<16x64xbf16>, vector<64x32xbf16>, vector<16x32xf32> -> vector<16x32xf32>
    %372 = vector.broadcast %232 : vector<1x32xf32> to vector<16x32xf32>
    %373 = arith.addf %371, %372 : vector<16x32xf32>
    %374 = arith.addf %373, %357 : vector<16x32xf32>
    %cst_92 = arith.constant dense<0.000000e+00> : vector<16xf32>
    %375 = vector.multi_reduction <add>, %374, %cst_92 [1] : vector<16x32xf32> to vector<16xf32>
    %376 = vector.shape_cast %375 : vector<16xf32> to vector<16x1xf32>
    %cst_93 = arith.constant 3.200000e+01 : f32
    %377 = vector.broadcast %cst_93 : f32 to vector<16x1xf32>
    %378 = arith.divf %376, %377 : vector<16x1xf32>
    %379 = vector.broadcast %378 : vector<16x1xf32> to vector<16x32xf32>
    %380 = arith.subf %374, %379 : vector<16x32xf32>
    %381 = arith.mulf %380, %380 : vector<16x32xf32>
    %cst_94 = arith.constant dense<0.000000e+00> : vector<16xf32>
    %382 = vector.multi_reduction <add>, %381, %cst_94 [1] : vector<16x32xf32> to vector<16xf32>
    %383 = vector.shape_cast %382 : vector<16xf32> to vector<16x1xf32>
    %cst_95 = arith.constant 3.200000e+01 : f32
    %384 = vector.broadcast %cst_95 : f32 to vector<16x1xf32>
    %385 = arith.divf %383, %384 : vector<16x1xf32>
    %386 = vector.broadcast %378 : vector<16x1xf32> to vector<16x32xf32>
    %387 = arith.subf %374, %386 : vector<16x32xf32>
    %cst_96 = arith.constant 9.99999996E-13 : f32
    %388 = vector.broadcast %cst_96 : f32 to vector<16x1xf32>
    %389 = arith.addf %385, %388 : vector<16x1xf32>
    %390 = math.rsqrt %389 : vector<16x1xf32>
    %391 = vector.broadcast %390 : vector<16x1xf32> to vector<16x32xf32>
    %392 = arith.mulf %387, %391 : vector<16x32xf32>
    %393 = vector.broadcast %233 : vector<1x32xf32> to vector<16x32xf32>
    %394 = arith.mulf %392, %393 : vector<16x32xf32>
    %395 = vector.broadcast %234 : vector<1x32xf32> to vector<16x32xf32>
    %396 = arith.addf %394, %395 : vector<16x32xf32>
    %397 = vector.extract_strided_slice %396 {offsets = [0, 0], sizes = [1, 32], strides = [1, 1]} : vector<16x32xf32> to vector<1x32xf32>
    %398 = vector.extract_strided_slice %396 {offsets = [8, 0], sizes = [1, 32], strides = [1, 1]} : vector<16x32xf32> to vector<1x32xf32>
    %399 = tpu.concatenate %397, %398 in 0 : vector<1x32xf32>, vector<1x32xf32> -> vector<2x32xf32>
    %c0_97 = arith.constant 0 : index
    %c0_98 = arith.constant 0 : index
    %400 = vector.load %arg9[%c0_97, %c0_98] : memref<7x512xf32, #tpu.memory_space<vmem>>, vector<7x512xf32>
    %401 = arith.truncf %399 : vector<2x32xf32> to vector<2x32xbf16>
    %c0_99 = arith.constant 0 : index
    %c0_100 = arith.constant 0 : index
    %402 = vector.load %arg6[%c0_99, %c0_100] : memref<32x512xbf16, #tpu.memory_space<vmem>>, vector<32x512xbf16>
    %cst_101 = arith.constant dense<0.000000e+00> : vector<2x512xf32>
    %403 = tpu.matmul %401, %402, %cst_101 {dimension_numbers = #tpu.dot_dimension_numbers<[1], [0], [0], [1], [0, 0, 1, 1], [], []>} : vector<2x32xbf16>, vector<32x512xbf16>, vector<2x512xf32> -> vector<2x512xf32>
    %404 = vector.extract_strided_slice %400 {offsets = [0, 0], sizes = [1, 512], strides = [1, 1]} : vector<7x512xf32> to vector<1x512xf32>
    %405 = vector.broadcast %404 : vector<1x512xf32> to vector<2x512xf32>
    %406 = arith.addf %403, %405 : vector<2x512xf32>
    %cst_102 = arith.constant 5.000000e-01 : f32
    %407 = vector.broadcast %cst_102 : f32 to vector<2x512xf32>
    %408 = arith.mulf %407, %406 : vector<2x512xf32>
    %cst_103 = arith.constant 0.707106769 : f32
    %409 = vector.broadcast %cst_103 : f32 to vector<2x512xf32>
    %410 = arith.mulf %406, %409 : vector<2x512xf32>
    %411 = math.erf %410 : vector<2x512xf32>
    %cst_104 = arith.constant 1.000000e+00 : f32
    %412 = vector.broadcast %cst_104 : f32 to vector<2x512xf32>
    %413 = arith.addf %412, %411 : vector<2x512xf32>
    %414 = arith.mulf %408, %413 : vector<2x512xf32>
    %415 = vector.extract_strided_slice %400 {offsets = [1, 0], sizes = [1, 512], strides = [1, 1]} : vector<7x512xf32> to vector<1x512xf32>
    %416 = vector.extract_strided_slice %400 {offsets = [2, 0], sizes = [1, 512], strides = [1, 1]} : vector<7x512xf32> to vector<1x512xf32>
    %cst_105 = arith.constant dense<0.000000e+00> : vector<2xf32>
    %417 = vector.multi_reduction <add>, %414, %cst_105 [1] : vector<2x512xf32> to vector<2xf32>
    %418 = vector.shape_cast %417 : vector<2xf32> to vector<2x1xf32>
    %cst_106 = arith.constant 5.120000e+02 : f32
    %419 = vector.broadcast %cst_106 : f32 to vector<2x1xf32>
    %420 = arith.divf %418, %419 : vector<2x1xf32>
    %421 = vector.broadcast %420 : vector<2x1xf32> to vector<2x512xf32>
    %422 = arith.subf %414, %421 : vector<2x512xf32>
    %423 = arith.mulf %422, %422 : vector<2x512xf32>
    %cst_107 = arith.constant dense<0.000000e+00> : vector<2xf32>
    %424 = vector.multi_reduction <add>, %423, %cst_107 [1] : vector<2x512xf32> to vector<2xf32>
    %425 = vector.shape_cast %424 : vector<2xf32> to vector<2x1xf32>
    %cst_108 = arith.constant 5.120000e+02 : f32
    %426 = vector.broadcast %cst_108 : f32 to vector<2x1xf32>
    %427 = arith.divf %425, %426 : vector<2x1xf32>
    %428 = vector.broadcast %420 : vector<2x1xf32> to vector<2x512xf32>
    %429 = arith.subf %414, %428 : vector<2x512xf32>
    %cst_109 = arith.constant 9.99999974E-6 : f32
    %430 = vector.broadcast %cst_109 : f32 to vector<2x1xf32>
    %431 = arith.addf %427, %430 : vector<2x1xf32>
    %432 = math.rsqrt %431 : vector<2x1xf32>
    %433 = vector.broadcast %432 : vector<2x1xf32> to vector<2x512xf32>
    %434 = arith.mulf %429, %433 : vector<2x512xf32>
    %435 = vector.broadcast %415 : vector<1x512xf32> to vector<2x512xf32>
    %436 = arith.mulf %434, %435 : vector<2x512xf32>
    %437 = vector.broadcast %416 : vector<1x512xf32> to vector<2x512xf32>
    %438 = arith.addf %436, %437 : vector<2x512xf32>
    %439 = arith.truncf %438 : vector<2x512xf32> to vector<2x512xbf16>
    %c0_110 = arith.constant 0 : index
    %c0_111 = arith.constant 0 : index
    %440 = vector.load %arg7[%c0_110, %c0_111] : memref<512x256xbf16, #tpu.memory_space<vmem>>, vector<512x256xbf16>
    %cst_112 = arith.constant dense<0.000000e+00> : vector<2x256xf32>
    %441 = tpu.matmul %439, %440, %cst_112 {dimension_numbers = #tpu.dot_dimension_numbers<[1], [0], [0], [1], [0, 0, 1, 1], [], []>} : vector<2x512xbf16>, vector<512x256xbf16>, vector<2x256xf32> -> vector<2x256xf32>
    %442 = vector.extract_strided_slice %400 {offsets = [3, 0], sizes = [1, 256], strides = [1, 1]} : vector<7x512xf32> to vector<1x256xf32>
    %443 = vector.broadcast %442 : vector<1x256xf32> to vector<2x256xf32>
    %444 = arith.addf %441, %443 : vector<2x256xf32>
    %cst_113 = arith.constant 5.000000e-01 : f32
    %445 = vector.broadcast %cst_113 : f32 to vector<2x256xf32>
    %446 = arith.mulf %445, %444 : vector<2x256xf32>
    %cst_114 = arith.constant 0.707106769 : f32
    %447 = vector.broadcast %cst_114 : f32 to vector<2x256xf32>
    %448 = arith.mulf %444, %447 : vector<2x256xf32>
    %449 = math.erf %448 : vector<2x256xf32>
    %cst_115 = arith.constant 1.000000e+00 : f32
    %450 = vector.broadcast %cst_115 : f32 to vector<2x256xf32>
    %451 = arith.addf %450, %449 : vector<2x256xf32>
    %452 = arith.mulf %446, %451 : vector<2x256xf32>
    %453 = vector.extract_strided_slice %400 {offsets = [4, 0], sizes = [1, 256], strides = [1, 1]} : vector<7x512xf32> to vector<1x256xf32>
    %454 = vector.extract_strided_slice %400 {offsets = [5, 0], sizes = [1, 256], strides = [1, 1]} : vector<7x512xf32> to vector<1x256xf32>
    %cst_116 = arith.constant dense<0.000000e+00> : vector<2xf32>
    %455 = vector.multi_reduction <add>, %452, %cst_116 [1] : vector<2x256xf32> to vector<2xf32>
    %456 = vector.shape_cast %455 : vector<2xf32> to vector<2x1xf32>
    %cst_117 = arith.constant 2.560000e+02 : f32
    %457 = vector.broadcast %cst_117 : f32 to vector<2x1xf32>
    %458 = arith.divf %456, %457 : vector<2x1xf32>
    %459 = vector.broadcast %458 : vector<2x1xf32> to vector<2x256xf32>
    %460 = arith.subf %452, %459 : vector<2x256xf32>
    %461 = arith.mulf %460, %460 : vector<2x256xf32>
    %cst_118 = arith.constant dense<0.000000e+00> : vector<2xf32>
    %462 = vector.multi_reduction <add>, %461, %cst_118 [1] : vector<2x256xf32> to vector<2xf32>
    %463 = vector.shape_cast %462 : vector<2xf32> to vector<2x1xf32>
    %cst_119 = arith.constant 2.560000e+02 : f32
    %464 = vector.broadcast %cst_119 : f32 to vector<2x1xf32>
    %465 = arith.divf %463, %464 : vector<2x1xf32>
    %466 = vector.broadcast %458 : vector<2x1xf32> to vector<2x256xf32>
    %467 = arith.subf %452, %466 : vector<2x256xf32>
    %cst_120 = arith.constant 9.99999974E-6 : f32
    %468 = vector.broadcast %cst_120 : f32 to vector<2x1xf32>
    %469 = arith.addf %465, %468 : vector<2x1xf32>
    %470 = math.rsqrt %469 : vector<2x1xf32>
    %471 = vector.broadcast %470 : vector<2x1xf32> to vector<2x256xf32>
    %472 = arith.mulf %467, %471 : vector<2x256xf32>
    %473 = vector.broadcast %453 : vector<1x256xf32> to vector<2x256xf32>
    %474 = arith.mulf %472, %473 : vector<2x256xf32>
    %475 = vector.broadcast %454 : vector<1x256xf32> to vector<2x256xf32>
    %476 = arith.addf %474, %475 : vector<2x256xf32>
    %477 = arith.truncf %476 : vector<2x256xf32> to vector<2x256xbf16>
    %c0_121 = arith.constant 0 : index
    %c0_122 = arith.constant 0 : index
    %478 = vector.load %arg8[%c0_121, %c0_122] : memref<256x2xbf16, #tpu.memory_space<vmem>>, vector<256x2xbf16>
    %cst_123 = arith.constant dense<0.000000e+00> : vector<2x2xf32>
    %479 = tpu.matmul %477, %478, %cst_123 {dimension_numbers = #tpu.dot_dimension_numbers<[1], [0], [0], [1], [0, 0, 1, 1], [], []>} : vector<2x256xbf16>, vector<256x2xbf16>, vector<2x2xf32> -> vector<2x2xf32>
    %480 = vector.extract_strided_slice %400 {offsets = [6, 0], sizes = [1, 2], strides = [1, 1]} : vector<7x512xf32> to vector<1x2xf32>
    %481 = vector.broadcast %480 : vector<1x2xf32> to vector<2x2xf32>
    %482 = arith.addf %479, %481 : vector<2x2xf32>
    %c0_124 = arith.constant 0 : index
    %c0_125 = arith.constant 0 : index
    %483 = vector.load %arg10[%c0_124, %c0_125] : memref<2x2xf32, #tpu.memory_space<vmem>>, vector<2x2xf32>
    tpu.vector_store %arg10[%c0_124, %c0_125], %482 {strides = array<i32>} : memref<2x2xf32, #tpu.memory_space<vmem>>, vector<2x2xf32>,
    return
  }
}

</mosaic_0001>

<llo_original>
// kernel: forward.1
$region0: #{forward.1}
  #allocation0 [shape = 'u32[]', space=smem, size = 0x4, offset = 0x4, fixed_abs, tag = 'smem constant byte address 0x4 - core index']
  #allocation1 [shape = 'u32[144,128]{1,0:T(1,128)}', space=vmem, size = 0x12000, scoped, tag = 'internal scratch']
  %s0 = inlined_call_operand.vmem [shape: s32[16,1], index: 0, kind: input, shape index: {}]
  %s1 = inlined_call_operand.vmem [shape: f32[2,1,8], index: 1, kind: input, shape index: {}]
  %s2 = inlined_call_operand.vmem [shape: f32[82,32], index: 2, kind: input, shape index: {}]
  %s3 = inlined_call_operand.vmem [shape: bf16[2,32,192], index: 3, kind: input, shape index: {}]
  %s4 = inlined_call_operand.vmem [shape: bf16[2,64,32], index: 4, kind: input, shape index: {}]
  %s5 = inlined_call_operand.vmem [shape: f32[2,8,96], index: 5, kind: input, shape index: {}]
  %s6 = inlined_call_operand.vmem [shape: bf16[32,512], index: 6, kind: input, shape index: {}]
  %s7 = inlined_call_operand.hbm [shape: bf16[512,256], index: 7, kind: input, shape index: {}]
  %s8 = inlined_call_operand.vmem [shape: bf16[256,2], index: 8, kind: input, shape index: {}]
  %s9 = inlined_call_operand.vmem [shape: f32[7,512], index: 9, kind: input, shape index: {}]
  %s10 = inlined_call_operand.hbm [shape: f32[2,2], index: 10, kind: output, shape index: {}]
  %s11 = sld [smem:[#allocation0]]
  $region54: #{forward.1} parent=0
    _
  %s13 = ssub.s32 1, %s11
  %s14 = scalar_select 0, %s13, %s11
  $region1: #{forward.1} parent=0
    #allocation2 [shape = 'u8[262144]{0}', space=vmem, size = 0x40000, scoped, tag = 'input window, operand 7, single buffered']
    #allocation3 [shape = 's32[1]{0}', space=sflag, size = 0x4, scoped, tag = 'scoped memory for forward.1']
    #allocation4 [shape = 's32[1]{0}', space=sflag, size = 0x4, scoped, tag = 'scoped memory for forward.1']
    #allocation5 [shape = 'u8[1024]{0}', space=vmem, size = 0x400, scoped, tag = 'output window, operand 0, single buffered']
    %15 = vsyncpa [#allocation3], 0
    %16 = vsyncpa [#allocation4], 0
    // Predicated region
    $region2: #{forward.1} parent=1 // pred_check
      _
    $region3: #{forward.1} parent=1 // pred_check_branch
      %18 = sbr.rel (0) target = $region5
    $region4: #{forward.1} parent=1 // pred_region
      _
    $region5: #{forward.1} parent=1 // pred_fallthru
      _
    // Predicated region
    $region6: #{forward.1} parent=1 // pred_check
      _
    $region7: #{forward.1} parent=1 // pred_check_branch
      %20 = sbr.rel (0) target = $region9
    $region8: #{forward.1} parent=1 // pred_region
      _
    $region9: #{forward.1} parent=1 // pred_fallthru
      _
    // Predicated region
    $region10: #{forward.1} parent=1 // pred_check
      _
    $region11: #{forward.1} parent=1 // pred_check_branch
      %22 = sbr.rel (0) target = $region13
    $region12: #{forward.1} parent=1 // pred_region
      _
    $region13: #{forward.1} parent=1 // pred_fallthru
      _
    // Predicated region
    $region14: #{forward.1} parent=1 // pred_check
      _
    $region15: #{forward.1} parent=1 // pred_check_branch
      %24 = sbr.rel (0) target = $region17
    $region16: #{forward.1} parent=1 // pred_region
      _
    $region17: #{forward.1} parent=1 // pred_fallthru
      _
    // Predicated region
    $region18: #{forward.1} parent=1 // pred_check
      _
    $region19: #{forward.1} parent=1 // pred_check_branch
      %26 = sbr.rel (0) target = $region21
    $region20: #{forward.1} parent=1 // pred_region
      _
    $region21: #{forward.1} parent=1 // pred_fallthru
      _
    // Predicated region
    $region22: #{forward.1} parent=1 // pred_check
      _
    $region23: #{forward.1} parent=1 // pred_check_branch
      %28 = sbr.rel (0) target = $region25
    $region24: #{forward.1} parent=1 // pred_region
      _
    $region25: #{forward.1} parent=1 // pred_fallthru
      _
    // Predicated region
    $region26: #{forward.1} parent=1 // pred_check
      _
    $region27: #{forward.1} parent=1 // pred_check_branch
      %30 = sbr.rel (0) target = $region29
    $region28: #{forward.1} parent=1 // pred_region
      _
    $region29: #{forward.1} parent=1 // pred_fallthru
      _
    // Predicated region
    $region30: #{forward.1} parent=1 // pred_check
      _
    $region31: #{forward.1} parent=1 // pred_check_branch
      %32 = sbr.rel (0) target = $region33
    $region32: #{forward.1} parent=1 // pred_region
      %s34 = ssub.s32 8192, 8192
      %35 = vsyncadd [#allocation3], %s34
      %s36 = sshll.u32 [#allocation2], 4
      %s37 = int_to_ptr.vmem [resolvable:$true] %s36
      %42 = dma.hbm_to_vmem [thread:$0]  %s7, 8192, %s37, [#allocation3], 128, 128, 8
    $region33: #{forward.1} parent=1 // pred_fallthru
      _
    // Predicated region
    $region34: #{forward.1} parent=1 // pred_check
      _
    $region35: #{forward.1} parent=1 // pred_check_branch
      %44 = sbr.rel (0) target = $region37
    $region36: #{forward.1} parent=1 // pred_region
      _
    $region37: #{forward.1} parent=1 // pred_fallthru
      _
    // Predicated region
    $region38: #{forward.1} parent=1 // pred_check
      _
    $region39: #{forward.1} parent=1 // pred_check_branch
      %46 = sbr.rel (0) target = $region41
    $region40: #{forward.1} parent=1 // pred_region
      _
    $region41: #{forward.1} parent=1 // pred_fallthru
      _
    // Predicated region
    $region42: #{forward.1} parent=1 // pred_check
      _
    $region43: #{forward.1} parent=1 // pred_check_branch
      %48 = sbr.rel (0) target = $region45
    $region44: #{forward.1} parent=1 // pred_region
      %49 = dma.done [#allocation3], 8192
    $region45: #{forward.1} parent=1 // pred_fallthru
      _
    %v51 = vld [vmem:[%s0] sm:$0xff]
    %v52 = vld [vmem:[%s0 + $0x8] sm:$0xff]
    %v53 = vlaneseq
    %v54 = vand.u32 %v53, 127
    %55 = vset.pattern.permute.xlu0 0
    %56 = vperm.xlu0 %55, %v51
    %v57 = vpop.permute.xlu0 %56
    %58 = vset.pattern.permute.xlu0 0
    %59 = vperm.xlu0 %58, %v52
    %v60 = vpop.permute.xlu0 %59
    %vm61 = vcmp.eq.s32.totalorder %v57, %v54
    %vm62 = vcmp.eq.s32.totalorder %v60, %v54
    %v63 = vsel %vm61, 1, 0
    %v64 = vsel %vm62, 1, 0
    %v65 = vcvt.s32.f32 %v63
    %v66 = vcvt.s32.f32 %v64
    %v67 = vld [vmem:[%s2] sm:$0xff]
    %v68 = vld [vmem:[%s2 + $0x8] sm:$0xff]
    %v69 = vld [vmem:[%s2 + $0x10] sm:$0xff]
    %v70 = vld [vmem:[%s2 + $0x18] sm:$0xff]
    %v71 = vld [vmem:[%s2 + $0x20] sm:$0xff]
    %v72 = vld [vmem:[%s2 + $0x28] sm:$0xff]
    %v73 = vld [vmem:[%s2 + $0x30] sm:$0xff]
    %v74 = vld [vmem:[%s2 + $0x38] sm:$0xff]
    %vm75 = vcmask 523264
    %v77 = vsel %vm75, %v65, 0
    %v80 = vsel %vm75, %v66, 0
    %82 = vmatprep.subr.mxu0 0.0
    %83 = vmatpush1.msra.mxu0 %v67
    %84 = vmatprep.subr.mxu0 0.0
    %85 = vmatpush1.msra.mxu0 %v68
    %86 = vmatprep.subr.mxu0 0.0
    %87 = vmatpush1.msra.mxu0 %v69
    %88 = vmatprep.subr.mxu0 0.0
    %89 = vmatpush1.msra.mxu0 %v70
    %90 = vmatprep.subr.mxu0 0.0
    %91 = vmatpush1.msra.mxu0 %v71
    %92 = vmatprep.subr.mxu0 0.0
    %93 = vmatpush1.msra.mxu0 %v72
    %94 = vmatprep.subr.mxu0 0.0
    %95 = vmatpush1.msra.mxu0 %v73
    %96 = vmatprep.subr.mxu0 0.0
    %97 = vmatpush1.msra.mxu0 %v74
    %98 = vmatprep.subr.mxu0 0.0
    %99 = vmatpush1.msra.mxu0 0.0
    %100 = vmatprep.subr.mxu0 0.0
    %101 = vmatpush1.msra.mxu0 0.0
    %102 = vmatprep.subr.mxu0 0.0
    %103 = vmatpush1.msra.mxu0 0.0
    %104 = vmatprep.subr.mxu0 0.0
    %105 = vmatpush1.msra.mxu0 0.0
    %106 = vmatprep.subr.mxu0 0.0
    %107 = vmatpush1.msra.mxu0 0.0
    %108 = vmatprep.subr.mxu0 0.0
    %109 = vmatpush1.msra.mxu0 0.0
    %110 = vmatprep.subr.mxu0 0.0
    %111 = vmatpush1.msra.mxu0 0.0
    %112 = vmatprep.subr.mxu0 0.0
    %113 = vmatpush1.msra.mxu0 0.0
    %114 = vmatprep.subr.mxu0 0.0
    %115 = vmatpush1.msra.mxu0 0.0
    %116 = vmatprep.subr.mxu0 0.0
    %117 = vmatpush1.msra.mxu0 0.0
    %118 = vmatprep.subr.mxu0 0.0
    %119 = vmatpush1.msra.mxu0 0.0
    %120 = vmatprep.subr.mxu0 0.0
    %121 = vmatpush1.msra.mxu0 0.0
    %122 = vmatprep.subr.mxu0 0.0
    %123 = vmatpush1.msra.mxu0 0.0
    %124 = vmatprep.subr.mxu0 0.0
    %125 = vmatpush1.msra.mxu0 0.0
    %126 = vmatprep.subr.mxu0 0.0
    %127 = vmatpush1.msra.mxu0 0.0
    %128 = vmatprep.subr.mxu0 0.0
    %129 = vmatpush1.msra.mxu0 0.0
    %130 = vmatprep.subr.mxu0 0.0
    %131 = vmatpush1.msra.mxu0 0.0
    %132 = vmatprep.subr.mxu0 0.0
    %133 = vmatpush1.msra.mxu0 0.0
    %134 = vmatprep.subr.mxu0 0.0
    %135 = vmatpush1.msra.mxu0 0.0
    %136 = vmatprep.subr.mxu0 0.0
    %137 = vmatpush1.msra.mxu0 0.0
    %138 = vmatprep.subr.mxu0 0.0
    %139 = vmatpush1.msra.mxu0 0.0
    %140 = vmatprep.subr.mxu0 0.0
    %141 = vmatpush1.msra.mxu0 0.0
    %142 = vmatprep.subr.mxu0 0.0
    %143 = vmatpush1.msra.mxu0 0.0
    %144 = vmatprep.subr.mxu0 0.0
    %145 = vmatpush1.msra.mxu0 0.0
    %146 = vmatprep.mubr.f32.mxu0 0.0
    %147 = vmatmul.mubr.f32.gmra.mrb[0].mxu0 %v77
    %v148 = vpop.f32.mrb[0].mxu0
    %v149 = vadd.f32 0.0, %v148
    %v150 = vpop.f32.mrb[0].mxu0
    %151 = vmatprep.mubr.f32.mxu0 0.0
    %152 = vmatmul.mubr.f32.gmra.mrb[0].mxu0 %v80
    %v153 = vpop.f32.mrb[0].mxu0
    %v154 = vadd.f32 0.0, %v153
    %v155 = vpop.f32.mrb[0].mxu0
    %156 = vdwg.mxu0
    %v157 = vld [vmem:[%s2 + $0x40] sm:$0xff]
    %v158 = vadd.f32 %v149, %v157
    %v159 = vadd.f32 %v154, %v157
    %v160 = vld [vmem:[%s2 + $0x50] sm:$0x1]
    %v161 = vld [vmem:[%s2 + $0x51] sm:$0x1]
    %vm162 = vcmask 261120
    %v163 = vsel %vm162, %v158, 0.0
    %164 = vadd.xlane.f32.xlu0 %v163
    %v165 = vpop.xlane.xlu0 %164
    %v166 = vsel %vm162, %v159, 0.0
    %167 = vadd.xlane.f32.xlu0 %v166
    %v168 = vpop.xlane.xlu0 %167
    %v169 = vrcp.pop 32.0
    %v170 = vmul.f32 %v165, %v169
    %v171 = vmul.f32 %v168, %v169
    %v172 = vsub.f32 %v158, %v170
    %v173 = vsub.f32 %v159, %v171
    %v174 = vmul.f32 %v172, %v172
    %v175 = vmul.f32 %v173, %v173
    %v176 = vsel %vm162, %v174, 0.0
    %177 = vadd.xlane.f32.xlu0 %v176
    %v178 = vpop.xlane.xlu0 %177
    %v179 = vsel %vm162, %v175, 0.0
    %180 = vadd.xlane.f32.xlu0 %v179
    %v181 = vpop.xlane.xlu0 %180
    %v182 = vmul.f32 %v178, %v169
    %v183 = vmul.f32 %v181, %v169
    %v184 = vadd.f32 %v182, 1e-12
    %v185 = vadd.f32 %v183, 1e-12
    %v186 = vrsqrt.pop %v184
    %v187 = vrsqrt.pop %v185
    %v188 = vmul.f32 %v172, %v186
    %v189 = vmul.f32 %v173, %v187
    %v190 = vlaneseq
    %v191 = vshrl.u32 %v190, 7
    %v192 = vsub.s32 0, %v191
    %v193 = vrot.slane %v160, %v192
    %v194 = vmul.f32 %v188, %v193
    %v195 = vmul.f32 %v189, %v193
    %v196 = vlaneseq
    %v197 = vshrl.u32 %v196, 7
    %v198 = vsub.s32 0, %v197
    %v199 = vrot.slane %v161, %v198
    %v200 = vadd.f32 %v194, %v199
    %v201 = vadd.f32 %v195, %v199
    %v202 = vld [vmem:[%s1] sm:$0x1]
    %v203 = vld [vmem:[%s1 + $0x1] sm:$0x1]
    %v204 = vld [vmem:[%s3] sm:$0xff]
    %v205 = vld [vmem:[%s3 + $0x8] sm:$0xff]
    %v206 = vld [vmem:[%s3 + $0x10] sm:$0xff]
    %v207 = vld [vmem:[%s3 + $0x18] sm:$0xff]
    %v208 = vld [vmem:[%s4] sm:$0xf]
    %v209 = vld [vmem:[%s4 + $0x4] sm:$0xf]
    %v210 = vld [vmem:[%s4 + $0x8] sm:$0xf]
    %v211 = vld [vmem:[%s4 + $0xc] sm:$0xf]
    %v212 = vld [vmem:[%s4 + $0x10] sm:$0xf]
    %v213 = vld [vmem:[%s4 + $0x14] sm:$0xf]
    %v214 = vld [vmem:[%s4 + $0x18] sm:$0xf]
    %v215 = vld [vmem:[%s4 + $0x1c] sm:$0xf]
    %v216 = vld [vmem:[%s5] sm:$0xff]
    %v217 = vpack.c.bf16 %v201, %v200
    %v218 = vlaneseq
    %v219 = vshrl.u32 %v218, 7
    %v220 = vsub.s32 0, %v219
    %v221 = vrot.slane %v216, %v220
    %v226 = vunpack.c.l.b16 %v204
    %v227 = vunpack.c.l.b16 %v205
    %v228 = vunpack.c.l.b16 %v206
    %v229 = vunpack.c.l.b16 %v207
    %v230 = vpack.c.b16 %v227, %v226
    %v231 = vpack.c.b16 %v229, %v228
    %v235 = vsel %vm162, %v217, 0
    %237 = vmatprep.subr.bf16.mxu0 0
    %238 = vmatpush1.bf16.msra.mxu0 %v230
    %239 = vmatprep.subr.bf16.mxu0 0
    %240 = vmatpush1.bf16.msra.mxu0 %v231
    %241 = vmatprep.subr.bf16.mxu0 0
    %242 = vmatpush1.bf16.msra.mxu0 0
    %243 = vmatprep.subr.bf16.mxu0 0
    %244 = vmatpush1.bf16.msra.mxu0 0
    %245 = vmatprep.subr.bf16.mxu0 0
    %246 = vmatpush1.bf16.msra.mxu0 0
    %247 = vmatprep.subr.bf16.mxu0 0
    %248 = vmatpush1.bf16.msra.mxu0 0
    %249 = vmatprep.subr.bf16.mxu0 0
    %250 = vmatpush1.bf16.msra.mxu0 0
    %251 = vmatprep.subr.bf16.mxu0 0
    %252 = vmatpush1.bf16.msra.mxu0 0
    %253 = vmatprep.subr.bf16.mxu0 0
    %254 = vmatpush1.bf16.msra.mxu0 0
    %255 = vmatprep.subr.bf16.mxu0 0
    %256 = vmatpush1.bf16.msra.mxu0 0
    %257 = vmatprep.subr.bf16.mxu0 0
    %258 = vmatpush1.bf16.msra.mxu0 0
    %259 = vmatprep.subr.bf16.mxu0 0
    %260 = vmatpush1.bf16.msra.mxu0 0
    %261 = vmatprep.subr.bf16.mxu0 0
    %262 = vmatpush1.bf16.msra.mxu0 0
    %263 = vmatprep.subr.bf16.mxu0 0
    %264 = vmatpush1.bf16.msra.mxu0 0
    %265 = vmatprep.subr.bf16.mxu0 0
    %266 = vmatpush1.bf16.msra.mxu0 0
    %267 = vmatprep.subr.bf16.mxu0 0
    %268 = vmatpush1.bf16.msra.mxu0 0
    %269 = vmatprep.mubr.bf16.mxu0 0
    %270 = vmatmul.mubr.bf16.gmra.mrb[0].mxu0 %v235
    %v271 = vpop.f32.mrb[0].mxu0
    %v272 = vadd.f32 %v221, %v271
    %v273 = vpop.f32.mrb[0].mxu0
    %v274 = vpop.f32.mrb[0].mxu0
    %v275 = vadd.f32 %v221, %v274
    %v276 = vpop.f32.mrb[0].mxu0
    %277 = vdwg.mxu0
    %v278 = vpack.c.bf16 %v272, %v272
    %v279 = vpack.c.bf16 %v275, %v275
    %v282 = vlaneseq
    %v283 = vshrl.u32 %v282, 7
    %v284 = vsub.s32 0, %v283
    %v285 = vrot.slane %v202, %v284
    %v286 = vlaneseq
    %v287 = vshrl.u32 %v286, 7
    %v288 = vsub.s32 0, %v287
    %v289 = vrot.slane %v203, %v288
    %293 = vrot.lane.b32.xlu0 %v278, 96
    %v294 = vpop.permute.xlu0 %293
    %vm295 = vcmask 64512
    %v297 = vsel %vm295, %v278, 0
    %v300 = vsel %vm295, %v294, 0
    %302 = vmatprep.subr.bf16.mxu0 0
    %303 = vmatpush1.bf16.xpose.msra.mxu0 %v300
    %304 = vmatprep.subr.bf16.mxu0 0
    %305 = vmatpush1.bf16.xpose.msra.mxu0 0
    %306 = vmatprep.subr.bf16.mxu0 0
    %307 = vmatpush1.bf16.xpose.msra.mxu0 0
    %308 = vmatprep.subr.bf16.mxu0 0
    %309 = vmatpush1.bf16.xpose.msra.mxu0 0
    %310 = vmatprep.subr.bf16.mxu0 0
    %311 = vmatpush1.bf16.xpose.msra.mxu0 0
    %312 = vmatprep.subr.bf16.mxu0 0
    %313 = vmatpush1.bf16.xpose.msra.mxu0 0
    %314 = vmatprep.subr.bf16.mxu0 0
    %315 = vmatpush1.bf16.xpose.msra.mxu0 0
    %316 = vmatprep.subr.bf16.mxu0 0
    %317 = vmatpush1.bf16.xpose.msra.mxu0 0
    %318 = vmatprep.subr.bf16.mxu0 0
    %319 = vmatpush1.bf16.xpose.msra.mxu0 0
    %320 = vmatprep.subr.bf16.mxu0 0
    %321 = vmatpush1.bf16.xpose.msra.mxu0 0
    %322 = vmatprep.subr.bf16.mxu0 0
    %323 = vmatpush1.bf16.xpose.msra.mxu0 0
    %324 = vmatprep.subr.bf16.mxu0 0
    %325 = vmatpush1.bf16.xpose.msra.mxu0 0
    %326 = vmatprep.subr.bf16.mxu0 0
    %327 = vmatpush1.bf16.xpose.msra.mxu0 0
    %328 = vmatprep.subr.bf16.mxu0 0
    %329 = vmatpush1.bf16.xpose.msra.mxu0 0
    %330 = vmatprep.subr.bf16.mxu0 0
    %331 = vmatpush1.bf16.xpose.msra.mxu0 0
    %332 = vmatprep.subr.bf16.mxu0 0
    %333 = vmatpush1.bf16.xpose.msra.mxu0 0
    %334 = vmatprep.mubr.bf16.mxu0 0
    %335 = vmatmul.mubr.bf16.gmra.mrb[0].mxu0 %v297
    %v336 = vpop.f32.mrb[0].mxu0
    %v337 = vadd.f32 %v285, %v336
    %v338 = vpop.f32.mrb[0].mxu0
    %v339 = vpop.f32.mrb[0].mxu0
    %v340 = vpop.f32.mrb[0].mxu0
    %341 = vdwg.mxu0
    %343 = vrot.lane.b32.xlu0 %v279, 96
    %v344 = vpop.permute.xlu0 %343
    %v346 = vsel %vm295, %v279, 0
    %v349 = vsel %vm295, %v344, 0
    %351 = vmatprep.subr.bf16.mxu0 0
    %352 = vmatpush1.bf16.xpose.msra.mxu0 %v349
    %353 = vmatprep.subr.bf16.mxu0 0
    %354 = vmatpush1.bf16.xpose.msra.mxu0 0
    %355 = vmatprep.subr.bf16.mxu0 0
    %356 = vmatpush1.bf16.xpose.msra.mxu0 0
    %357 = vmatprep.subr.bf16.mxu0 0
    %358 = vmatpush1.bf16.xpose.msra.mxu0 0
    %359 = vmatprep.subr.bf16.mxu0 0
    %360 = vmatpush1.bf16.xpose.msra.mxu0 0
    %361 = vmatprep.subr.bf16.mxu0 0
    %362 = vmatpush1.bf16.xpose.msra.mxu0 0
    %363 = vmatprep.subr.bf16.mxu0 0
    %364 = vmatpush1.bf16.xpose.msra.mxu0 0
    %365 = vmatprep.subr.bf16.mxu0 0
    %366 = vmatpush1.bf16.xpose.msra.mxu0 0
    %367 = vmatprep.subr.bf16.mxu0 0
    %368 = vmatpush1.bf16.xpose.msra.mxu0 0
    %369 = vmatprep.subr.bf16.mxu0 0
    %370 = vmatpush1.bf16.xpose.msra.mxu0 0
    %371 = vmatprep.subr.bf16.mxu0 0
    %372 = vmatpush1.bf16.xpose.msra.mxu0 0
    %373 = vmatprep.subr.bf16.mxu0 0
    %374 = vmatpush1.bf16.xpose.msra.mxu0 0
    %375 = vmatprep.subr.bf16.mxu0 0
    %376 = vmatpush1.bf16.xpose.msra.mxu0 0
    %377 = vmatprep.subr.bf16.mxu0 0
    %378 = vmatpush1.bf16.xpose.msra.mxu0 0
    %379 = vmatprep.subr.bf16.mxu0 0
    %380 = vmatpush1.bf16.xpose.msra.mxu0 0
    %381 = vmatprep.subr.bf16.mxu0 0
    %382 = vmatpush1.bf16.xpose.msra.mxu0 0
    %383 = vmatprep.mubr.bf16.mxu0 0
    %384 = vmatmul.mubr.bf16.gmra.mrb[0].mxu0 %v346
    %v385 = vpop.f32.mrb[0].mxu0
    %v386 = vadd.f32 %v289, %v385
    %v387 = vpop.f32.mrb[0].mxu0
    %v388 = vpop.f32.mrb[0].mxu0
    %v389 = vpop.f32.mrb[0].mxu0
    %390 = vdwg.mxu0
    %v391 = vsel %vm295, %v337, -inf
    %392 = vmax.xlane.f32.xlu0 %v391
    %v393 = vpop.xlane.xlu0 %392
    %v394 = vsel %vm295, %v386, -inf
    %395 = vmax.xlane.f32.xlu0 %v394
    %v396 = vpop.xlane.xlu0 %395
    %v397 = vsub.f32 %v337, %v393
    %v398 = vsub.f32 %v386, %v396
    %v399 = vmul.f32 %v397, 1.442695
    %v400 = vpow.pop %v399
    %v401 = vmul.f32 %v398, 1.442695
    %v402 = vpow.pop %v401
    %v403 = vsel %vm295, %v400, 0.0
    %404 = vadd.xlane.f32.xlu0 %v403
    %v405 = vpop.xlane.xlu0 %404
    %v406 = vsel %vm295, %v402, 0.0
    %407 = vadd.xlane.f32.xlu0 %v406
    %v408 = vpop.xlane.xlu0 %407
    %v409 = vrcp.pop %v405
    %v410 = vrcp.pop %v408
    %v411 = vmul.f32 %v400, %v409
    %v412 = vmul.f32 %v402, %v410
    %v413 = vpack.c.bf16 %v411, %v411
    %v414 = vpack.c.bf16 %v412, %v412
    %415 = vrot.lane.b32.xlu0 %v278, 64
    %v416 = vpop.permute.xlu0 %415
    %v418 = vsel %vm295, %v413, 0
    %vm420 = vcmask 1043456
    %v422 = vsel %vm420, %v416, 0
    %424 = vmatprep.subr.bf16.mxu0 0
    %425 = vmatpush1.bf16.msra.mxu0 %v422
    %426 = vmatprep.subr.bf16.mxu0 0
    %427 = vmatpush1.bf16.msra.mxu0 0
    %428 = vmatprep.subr.bf16.mxu0 0
    %429 = vmatpush1.bf16.msra.mxu0 0
    %430 = vmatprep.subr.bf16.mxu0 0
    %431 = vmatpush1.bf16.msra.mxu0 0
    %432 = vmatprep.subr.bf16.mxu0 0
    %433 = vmatpush1.bf16.msra.mxu0 0
    %434 = vmatprep.subr.bf16.mxu0 0
    %435 = vmatpush1.bf16.msra.mxu0 0
    %436 = vmatprep.subr.bf16.mxu0 0
    %437 = vmatpush1.bf16.msra.mxu0 0
    %438 = vmatprep.subr.bf16.mxu0 0
    %439 = vmatpush1.bf16.msra.mxu0 0
    %440 = vmatprep.subr.bf16.mxu0 0
    %441 = vmatpush1.bf16.msra.mxu0 0
    %442 = vmatprep.subr.bf16.mxu0 0
    %443 = vmatpush1.bf16.msra.mxu0 0
    %444 = vmatprep.subr.bf16.mxu0 0
    %445 = vmatpush1.bf16.msra.mxu0 0
    %446 = vmatprep.subr.bf16.mxu0 0
    %447 = vmatpush1.bf16.msra.mxu0 0
    %448 = vmatprep.subr.bf16.mxu0 0
    %449 = vmatpush1.bf16.msra.mxu0 0
    %450 = vmatprep.subr.bf16.mxu0 0
    %451 = vmatpush1.bf16.msra.mxu0 0
    %452 = vmatprep.subr.bf16.mxu0 0
    %453 = vmatpush1.bf16.msra.mxu0 0
    %454 = vmatprep.subr.bf16.mxu0 0
    %455 = vmatpush1.bf16.msra.mxu0 0
    %456 = vmatprep.mubr.bf16.mxu0 0
    %457 = vmatmul.mubr.bf16.gmra.mrb[0].mxu0 %v418
    %v458 = vpop.f32.mrb[0].mxu0
    %v459 = vadd.f32 0.0, %v458
    %v460 = vpop.f32.mrb[0].mxu0
    %v461 = vpop.f32.mrb[0].mxu0
    %v462 = vpop.f32.mrb[0].mxu0
    %463 = vdwg.mxu0
    %464 = vrot.lane.b32.xlu0 %v279, 64
    %v465 = vpop.permute.xlu0 %464
    %v467 = vsel %vm295, %v414, 0
    %v470 = vsel %vm420, %v465, 0
    %472 = vmatprep.subr.bf16.mxu0 0
    %473 = vmatpush1.bf16.msra.mxu0 %v470
    %474 = vmatprep.subr.bf16.mxu0 0
    %475 = vmatpush1.bf16.msra.mxu0 0
    %476 = vmatprep.subr.bf16.mxu0 0
    %477 = vmatpush1.bf16.msra.mxu0 0
    %478 = vmatprep.subr.bf16.mxu0 0
    %479 = vmatpush1.bf16.msra.mxu0 0
    %480 = vmatprep.subr.bf16.mxu0 0
    %481 = vmatpush1.bf16.msra.mxu0 0
    %482 = vmatprep.subr.bf16.mxu0 0
    %483 = vmatpush1.bf16.msra.mxu0 0
    %484 = vmatprep.subr.bf16.mxu0 0
    %485 = vmatpush1.bf16.msra.mxu0 0
    %486 = vmatprep.subr.bf16.mxu0 0
    %487 = vmatpush1.bf16.msra.mxu0 0
    %488 = vmatprep.subr.bf16.mxu0 0
    %489 = vmatpush1.bf16.msra.mxu0 0
    %490 = vmatprep.subr.bf16.mxu0 0
    %491 = vmatpush1.bf16.msra.mxu0 0
    %492 = vmatprep.subr.bf16.mxu0 0
    %493 = vmatpush1.bf16.msra.mxu0 0
    %494 = vmatprep.subr.bf16.mxu0 0
    %495 = vmatpush1.bf16.msra.mxu0 0
    %496 = vmatprep.subr.bf16.mxu0 0
    %497 = vmatpush1.bf16.msra.mxu0 0
    %498 = vmatprep.subr.bf16.mxu0 0
    %499 = vmatpush1.bf16.msra.mxu0 0
    %500 = vmatprep.subr.bf16.mxu0 0
    %501 = vmatpush1.bf16.msra.mxu0 0
    %502 = vmatprep.subr.bf16.mxu0 0
    %503 = vmatpush1.bf16.msra.mxu0 0
    %504 = vmatprep.mubr.bf16.mxu0 0
    %505 = vmatmul.mubr.bf16.gmra.mrb[0].mxu0 %v467
    %v506 = vpop.f32.mrb[0].mxu0
    %v507 = vadd.f32 0.0, %v506
    %v508 = vpop.f32.mrb[0].mxu0
    %v509 = vpop.f32.mrb[0].mxu0
    %v510 = vpop.f32.mrb[0].mxu0
    %511 = vdwg.mxu0
    %512 = vrot.lane.b32.xlu0 %v278, 120
    %v513 = vpop.permute.xlu0 %512
    %514 = vrot.lane.b32.xlu0 %v278, 88
    %v515 = vpop.permute.xlu0 %514
    %v517 = vsel %vm295, %v513, 0
    %v520 = vsel %vm295, %v515, 0
    %522 = vmatprep.subr.bf16.mxu0 0
    %523 = vmatpush1.bf16.xpose.msra.mxu0 %v520
    %524 = vmatprep.subr.bf16.mxu0 0
    %525 = vmatpush1.bf16.xpose.msra.mxu0 0
    %526 = vmatprep.subr.bf16.mxu0 0
    %527 = vmatpush1.bf16.xpose.msra.mxu0 0
    %528 = vmatprep.subr.bf16.mxu0 0
    %529 = vmatpush1.bf16.xpose.msra.mxu0 0
    %530 = vmatprep.subr.bf16.mxu0 0
    %531 = vmatpush1.bf16.xpose.msra.mxu0 0
    %532 = vmatprep.subr.bf16.mxu0 0
    %533 = vmatpush1.bf16.xpose.msra.mxu0 0
    %534 = vmatprep.subr.bf16.mxu0 0
    %535 = vmatpush1.bf16.xpose.msra.mxu0 0
    %536 = vmatprep.subr.bf16.mxu0 0
    %537 = vmatpush1.bf16.xpose.msra.mxu0 0
    %538 = vmatprep.subr.bf16.mxu0 0
    %539 = vmatpush1.bf16.xpose.msra.mxu0 0
    %540 = vmatprep.subr.bf16.mxu0 0
    %541 = vmatpush1.bf16.xpose.msra.mxu0 0
    %542 = vmatprep.subr.bf16.mxu0 0
    %543 = vmatpush1.bf16.xpose.msra.mxu0 0
    %544 = vmatprep.subr.bf16.mxu0 0
    %545 = vmatpush1.bf16.xpose.msra.mxu0 0
    %546 = vmatprep.subr.bf16.mxu0 0
    %547 = vmatpush1.bf16.xpose.msra.mxu0 0
    %548 = vmatprep.subr.bf16.mxu0 0
    %549 = vmatpush1.bf16.xpose.msra.mxu0 0
    %550 = vmatprep.subr.bf16.mxu0 0
    %551 = vmatpush1.bf16.xpose.msra.mxu0 0
    %552 = vmatprep.subr.bf16.mxu0 0
    %553 = vmatpush1.bf16.xpose.msra.mxu0 0
    %554 = vmatprep.mubr.bf16.mxu0 0
    %555 = vmatmul.mubr.bf16.gmra.mrb[0].mxu0 %v517
    %v556 = vpop.f32.mrb[0].mxu0
    %v557 = vadd.f32 %v285, %v556
    %v558 = vpop.f32.mrb[0].mxu0
    %v559 = vpop.f32.mrb[0].mxu0
    %v560 = vpop.f32.mrb[0].mxu0
    %561 = vdwg.mxu0
    %562 = vrot.lane.b32.xlu0 %v279, 120
    %v563 = vpop.permute.xlu0 %562
    %564 = vrot.lane.b32.xlu0 %v279, 88
    %v565 = vpop.permute.xlu0 %564
    %v567 = vsel %vm295, %v563, 0
    %v570 = vsel %vm295, %v565, 0
    %572 = vmatprep.subr.bf16.mxu0 0
    %573 = vmatpush1.bf16.xpose.msra.mxu0 %v570
    %574 = vmatprep.subr.bf16.mxu0 0
    %575 = vmatpush1.bf16.xpose.msra.mxu0 0
    %576 = vmatprep.subr.bf16.mxu0 0
    %577 = vmatpush1.bf16.xpose.msra.mxu0 0
    %578 = vmatprep.subr.bf16.mxu0 0
    %579 = vmatpush1.bf16.xpose.msra.mxu0 0
    %580 = vmatprep.subr.bf16.mxu0 0
    %581 = vmatpush1.bf16.xpose.msra.mxu0 0
    %582 = vmatprep.subr.bf16.mxu0 0
    %583 = vmatpush1.bf16.xpose.msra.mxu0 0
    %584 = vmatprep.subr.bf16.mxu0 0
    %585 = vmatpush1.bf16.xpose.msra.mxu0 0
    %586 = vmatprep.subr.bf16.mxu0 0
    %587 = vmatpush1.bf16.xpose.msra.mxu0 0
    %588 = vmatprep.subr.bf16.mxu0 0
    %589 = vmatpush1.bf16.xpose.msra.mxu0 0
    %590 = vmatprep.subr.bf16.mxu0 0
    %591 = vmatpush1.bf16.xpose.msra.mxu0 0
    %592 = vmatprep.subr.bf16.mxu0 0
    %593 = vmatpush1.bf16.xpose.msra.mxu0 0
    %594 = vmatprep.subr.bf16.mxu0 0
    %595 = vmatpush1.bf16.xpose.msra.mxu0 0
    %596 = vmatprep.subr.bf16.mxu0 0
    %597 = vmatpush1.bf16.xpose.msra.mxu0 0
    %598 = vmatprep.subr.bf16.mxu0 0
    %599 = vmatpush1.bf16.xpose.msra.mxu0 0
    %600 = vmatprep.subr.bf16.mxu0 0
    %601 = vmatpush1.bf16.xpose.msra.mxu0 0
    %602 = vmatprep.subr.bf16.mxu0 0
    %603 = vmatpush1.bf16.xpose.msra.mxu0 0
    %604 = vmatprep.mubr.bf16.mxu0 0
    %605 = vmatmul.mubr.bf16.gmra.mrb[0].mxu0 %v567
    %v606 = vpop.f32.mrb[0].mxu0
    %v607 = vadd.f32 %v289, %v606
    %v608 = vpop.f32.mrb[0].mxu0
    %v609 = vpop.f32.mrb[0].mxu0
    %v610 = vpop.f32.mrb[0].mxu0
    %611 = vdwg.mxu0
    %v612 = vsel %vm295, %v557, -inf
    %613 = vmax.xlane.f32.xlu0 %v612
    %v614 = vpop.xlane.xlu0 %613
    %v615 = vsel %vm295, %v607, -inf
    %616 = vmax.xlane.f32.xlu0 %v615
    %v617 = vpop.xlane.xlu0 %616
    %v618 = vsub.f32 %v557, %v614
    %v619 = vsub.f32 %v607, %v617
    %v620 = vmul.f32 %v618, 1.442695
    %v621 = vpow.pop %v620
    %v622 = vmul.f32 %v619, 1.442695
    %v623 = vpow.pop %v622
    %v624 = vsel %vm295, %v621, 0.0
    %625 = vadd.xlane.f32.xlu0 %v624
    %v626 = vpop.xlane.xlu0 %625
    %v627 = vsel %vm295, %v623, 0.0
    %628 = vadd.xlane.f32.xlu0 %v627
    %v629 = vpop.xlane.xlu0 %628
    %v630 = vrcp.pop %v626
    %v631 = vrcp.pop %v629
    %v632 = vmul.f32 %v621, %v630
    %v633 = vmul.f32 %v623, %v631
    %v634 = vpack.c.bf16 %v632, %v632
    %v635 = vpack.c.bf16 %v633, %v633
    %636 = vrot.lane.b32.xlu0 %v278, 56
    %v637 = vpop.permute.xlu0 %636
    %v639 = vsel %vm295, %v634, 0
    %v642 = vsel %vm420, %v637, 0
    %644 = vmatprep.subr.bf16.mxu0 0
    %645 = vmatpush1.bf16.msra.mxu0 %v642
    %646 = vmatprep.subr.bf16.mxu0 0
    %647 = vmatpush1.bf16.msra.mxu0 0
    %648 = vmatprep.subr.bf16.mxu0 0
    %649 = vmatpush1.bf16.msra.mxu0 0
    %650 = vmatprep.subr.bf16.mxu0 0
    %651 = vmatpush1.bf16.msra.mxu0 0
    %652 = vmatprep.subr.bf16.mxu0 0
    %653 = vmatpush1.bf16.msra.mxu0 0
    %654 = vmatprep.subr.bf16.mxu0 0
    %655 = vmatpush1.bf16.msra.mxu0 0
    %656 = vmatprep.subr.bf16.mxu0 0
    %657 = vmatpush1.bf16.msra.mxu0 0
    %658 = vmatprep.subr.bf16.mxu0 0
    %659 = vmatpush1.bf16.msra.mxu0 0
    %660 = vmatprep.subr.bf16.mxu0 0
    %661 = vmatpush1.bf16.msra.mxu0 0
    %662 = vmatprep.subr.bf16.mxu0 0
    %663 = vmatpush1.bf16.msra.mxu0 0
    %664 = vmatprep.subr.bf16.mxu0 0
    %665 = vmatpush1.bf16.msra.mxu0 0
    %666 = vmatprep.subr.bf16.mxu0 0
    %667 = vmatpush1.bf16.msra.mxu0 0
    %668 = vmatprep.subr.bf16.mxu0 0
    %669 = vmatpush1.bf16.msra.mxu0 0
    %670 = vmatprep.subr.bf16.mxu0 0
    %671 = vmatpush1.bf16.msra.mxu0 0
    %672 = vmatprep.subr.bf16.mxu0 0
    %673 = vmatpush1.bf16.msra.mxu0 0
    %674 = vmatprep.subr.bf16.mxu0 0
    %675 = vmatpush1.bf16.msra.mxu0 0
    %676 = vmatprep.mubr.bf16.mxu0 0
    %677 = vmatmul.mubr.bf16.gmra.mrb[0].mxu0 %v639
    %v678 = vpop.f32.mrb[0].mxu0
    %v679 = vadd.f32 0.0, %v678
    %v680 = vpop.f32.mrb[0].mxu0
    %v681 = vpop.f32.mrb[0].mxu0
    %v682 = vpop.f32.mrb[0].mxu0
    %683 = vdwg.mxu0
    %684 = vrot.lane.b32.xlu0 %v279, 56
    %v685 = vpop.permute.xlu0 %684
    %v687 = vsel %vm295, %v635, 0
    %v690 = vsel %vm420, %v685, 0
    %692 = vmatprep.subr.bf16.mxu0 0
    %693 = vmatpush1.bf16.msra.mxu0 %v690
    %694 = vmatprep.subr.bf16.mxu0 0
    %695 = vmatpush1.bf16.msra.mxu0 0
    %696 = vmatprep.subr.bf16.mxu0 0
    %697 = vmatpush1.bf16.msra.mxu0 0
    %698 = vmatprep.subr.bf16.mxu0 0
    %699 = vmatpush1.bf16.msra.mxu0 0
    %700 = vmatprep.subr.bf16.mxu0 0
    %701 = vmatpush1.bf16.msra.mxu0 0
    %702 = vmatprep.subr.bf16.mxu0 0
    %703 = vmatpush1.bf16.msra.mxu0 0
    %704 = vmatprep.subr.bf16.mxu0 0
    %705 = vmatpush1.bf16.msra.mxu0 0
    %706 = vmatprep.subr.bf16.mxu0 0
    %707 = vmatpush1.bf16.msra.mxu0 0
    %708 = vmatprep.subr.bf16.mxu0 0
    %709 = vmatpush1.bf16.msra.mxu0 0
    %710 = vmatprep.subr.bf16.mxu0 0
    %711 = vmatpush1.bf16.msra.mxu0 0
    %712 = vmatprep.subr.bf16.mxu0 0
    %713 = vmatpush1.bf16.msra.mxu0 0
    %714 = vmatprep.subr.bf16.mxu0 0
    %715 = vmatpush1.bf16.msra.mxu0 0
    %716 = vmatprep.subr.bf16.mxu0 0
    %717 = vmatpush1.bf16.msra.mxu0 0
    %718 = vmatprep.subr.bf16.mxu0 0
    %719 = vmatpush1.bf16.msra.mxu0 0
    %720 = vmatprep.subr.bf16.mxu0 0
    %721 = vmatpush1.bf16.msra.mxu0 0
    %722 = vmatprep.subr.bf16.mxu0 0
    %723 = vmatpush1.bf16.msra.mxu0 0
    %724 = vmatprep.mubr.bf16.mxu0 0
    %725 = vmatmul.mubr.bf16.gmra.mrb[0].mxu0 %v687
    %v726 = vpop.f32.mrb[0].mxu0
    %v727 = vadd.f32 0.0, %v726
    %v728 = vpop.f32.mrb[0].mxu0
    %v729 = vpop.f32.mrb[0].mxu0
    %v730 = vpop.f32.mrb[0].mxu0
    %731 = vdwg.mxu0
    %732 = vrot.lane.b32.xlu0 %v278, 112
    %v733 = vpop.permute.xlu0 %732
    %734 = vrot.lane.b32.xlu0 %v278, 80
    %v735 = vpop.permute.xlu0 %734
    %v737 = vsel %vm295, %v733, 0
    %v740 = vsel %vm295, %v735, 0
    %742 = vmatprep.subr.bf16.mxu0 0
    %743 = vmatpush1.bf16.xpose.msra.mxu0 %v740
    %744 = vmatprep.subr.bf16.mxu0 0
    %745 = vmatpush1.bf16.xpose.msra.mxu0 0
    %746 = vmatprep.subr.bf16.mxu0 0
    %747 = vmatpush1.bf16.xpose.msra.mxu0 0
    %748 = vmatprep.subr.bf16.mxu0 0
    %749 = vmatpush1.bf16.xpose.msra.mxu0 0
    %750 = vmatprep.subr.bf16.mxu0 0
    %751 = vmatpush1.bf16.xpose.msra.mxu0 0
    %752 = vmatprep.subr.bf16.mxu0 0
    %753 = vmatpush1.bf16.xpose.msra.mxu0 0
    %754 = vmatprep.subr.bf16.mxu0 0
    %755 = vmatpush1.bf16.xpose.msra.mxu0 0
    %756 = vmatprep.subr.bf16.mxu0 0
    %757 = vmatpush1.bf16.xpose.msra.mxu0 0
    %758 = vmatprep.subr.bf16.mxu0 0
    %759 = vmatpush1.bf16.xpose.msra.mxu0 0
    %760 = vmatprep.subr.bf16.mxu0 0
    %761 = vmatpush1.bf16.xpose.msra.mxu0 0
    %762 = vmatprep.subr.bf16.mxu0 0
    %763 = vmatpush1.bf16.xpose.msra.mxu0 0
    %764 = vmatprep.subr.bf16.mxu0 0
    %765 = vmatpush1.bf16.xpose.msra.mxu0 0
    %766 = vmatprep.subr.bf16.mxu0 0
    %767 = vmatpush1.bf16.xpose.msra.mxu0 0
    %768 = vmatprep.subr.bf16.mxu0 0
    %769 = vmatpush1.bf16.xpose.msra.mxu0 0
    %770 = vmatprep.subr.bf16.mxu0 0
    %771 = vmatpush1.bf16.xpose.msra.mxu0 0
    %772 = vmatprep.subr.bf16.mxu0 0
    %773 = vmatpush1.bf16.xpose.msra.mxu0 0
    %774 = vmatprep.mubr.bf16.mxu0 0
    %775 = vmatmul.mubr.bf16.gmra.mrb[0].mxu0 %v737
    %v776 = vpop.f32.mrb[0].mxu0
    %v777 = vadd.f32 %v285, %v776
    %v778 = vpop.f32.mrb[0].mxu0
    %v779 = vpop.f32.mrb[0].mxu0
    %v780 = vpop.f32.mrb[0].mxu0
    %781 = vdwg.mxu0
    %782 = vrot.lane.b32.xlu0 %v279, 112
    %v783 = vpop.permute.xlu0 %782
    %784 = vrot.lane.b32.xlu0 %v279, 80
    %v785 = vpop.permute.xlu0 %784
    %v787 = vsel %vm295, %v783, 0
    %v790 = vsel %vm295, %v785, 0
    %792 = vmatprep.subr.bf16.mxu0 0
    %793 = vmatpush1.bf16.xpose.msra.mxu0 %v790
    %794 = vmatprep.subr.bf16.mxu0 0
    %795 = vmatpush1.bf16.xpose.msra.mxu0 0
    %796 = vmatprep.subr.bf16.mxu0 0
    %797 = vmatpush1.bf16.xpose.msra.mxu0 0
    %798 = vmatprep.subr.bf16.mxu0 0
    %799 = vmatpush1.bf16.xpose.msra.mxu0 0
    %800 = vmatprep.subr.bf16.mxu0 0
    %801 = vmatpush1.bf16.xpose.msra.mxu0 0
    %802 = vmatprep.subr.bf16.mxu0 0
    %803 = vmatpush1.bf16.xpose.msra.mxu0 0
    %804 = vmatprep.subr.bf16.mxu0 0
    %805 = vmatpush1.bf16.xpose.msra.mxu0 0
    %806 = vmatprep.subr.bf16.mxu0 0
    %807 = vmatpush1.bf16.xpose.msra.mxu0 0
    %808 = vmatprep.subr.bf16.mxu0 0
    %809 = vmatpush1.bf16.xpose.msra.mxu0 0
    %810 = vmatprep.subr.bf16.mxu0 0
    %811 = vmatpush1.bf16.xpose.msra.mxu0 0
    %812 = vmatprep.subr.bf16.mxu0 0
    %813 = vmatpush1.bf16.xpose.msra.mxu0 0
    %814 = vmatprep.subr.bf16.mxu0 0
    %815 = vmatpush1.bf16.xpose.msra.mxu0 0
    %816 = vmatprep.subr.bf16.mxu0 0
    %817 = vmatpush1.bf16.xpose.msra.mxu0 0
    %818 = vmatprep.subr.bf16.mxu0 0
    %819 = vmatpush1.bf16.xpose.msra.mxu0 0
    %820 = vmatprep.subr.bf16.mxu0 0
    %821 = vmatpush1.bf16.xpose.msra.mxu0 0
    %822 = vmatprep.subr.bf16.mxu0 0
    %823 = vmatpush1.bf16.xpose.msra.mxu0 0
    %824 = vmatprep.mubr.bf16.mxu0 0
    %825 = vmatmul.mubr.bf16.gmra.mrb[0].mxu0 %v787
    %v826 = vpop.f32.mrb[0].mxu0
    %v827 = vadd.f32 %v289, %v826
    %v828 = vpop.f32.mrb[0].mxu0
    %v829 = vpop.f32.mrb[0].mxu0
    %v830 = vpop.f32.mrb[0].mxu0
    %831 = vdwg.mxu0
    %v832 = vsel %vm295, %v777, -inf
    %833 = vmax.xlane.f32.xlu0 %v832
    %v834 = vpop.xlane.xlu0 %833
    %v835 = vsel %vm295, %v827, -inf
    %836 = vmax.xlane.f32.xlu0 %v835
    %v837 = vpop.xlane.xlu0 %836
    %v838 = vsub.f32 %v777, %v834
    %v839 = vsub.f32 %v827, %v837
    %v840 = vmul.f32 %v838, 1.442695
    %v841 = vpow.pop %v840
    %v842 = vmul.f32 %v839, 1.442695
    %v843 = vpow.pop %v842
    %v844 = vsel %vm295, %v841, 0.0
    %845 = vadd.xlane.f32.xlu0 %v844
    %v846 = vpop.xlane.xlu0 %845
    %v847 = vsel %vm295, %v843, 0.0
    %848 = vadd.xlane.f32.xlu0 %v847
    %v849 = vpop.xlane.xlu0 %848
    %v850 = vrcp.pop %v846
    %v851 = vrcp.pop %v849
    %v852 = vmul.f32 %v841, %v850
    %v853 = vmul.f32 %v843, %v851
    %v854 = vpack.c.bf16 %v852, %v852
    %v855 = vpack.c.bf16 %v853, %v853
    %856 = vrot.lane.b32.xlu0 %v278, 48
    %v857 = vpop.permute.xlu0 %856
    %v859 = vsel %vm295, %v854, 0
    %v862 = vsel %vm420, %v857, 0
    %864 = vmatprep.subr.bf16.mxu0 0
    %865 = vmatpush1.bf16.msra.mxu0 %v862
    %866 = vmatprep.subr.bf16.mxu0 0
    %867 = vmatpush1.bf16.msra.mxu0 0
    %868 = vmatprep.subr.bf16.mxu0 0
    %869 = vmatpush1.bf16.msra.mxu0 0
    %870 = vmatprep.subr.bf16.mxu0 0
    %871 = vmatpush1.bf16.msra.mxu0 0
    %872 = vmatprep.subr.bf16.mxu0 0
    %873 = vmatpush1.bf16.msra.mxu0 0
    %874 = vmatprep.subr.bf16.mxu0 0
    %875 = vmatpush1.bf16.msra.mxu0 0
    %876 = vmatprep.subr.bf16.mxu0 0
    %877 = vmatpush1.bf16.msra.mxu0 0
    %878 = vmatprep.subr.bf16.mxu0 0
    %879 = vmatpush1.bf16.msra.mxu0 0
    %880 = vmatprep.subr.bf16.mxu0 0
    %881 = vmatpush1.bf16.msra.mxu0 0
    %882 = vmatprep.subr.bf16.mxu0 0
    %883 = vmatpush1.bf16.msra.mxu0 0
    %884 = vmatprep.subr.bf16.mxu0 0
    %885 = vmatpush1.bf16.msra.mxu0 0
    %886 = vmatprep.subr.bf16.mxu0 0
    %887 = vmatpush1.bf16.msra.mxu0 0
    %888 = vmatprep.subr.bf16.mxu0 0
    %889 = vmatpush1.bf16.msra.mxu0 0
    %890 = vmatprep.subr.bf16.mxu0 0
    %891 = vmatpush1.bf16.msra.mxu0 0
    %892 = vmatprep.subr.bf16.mxu0 0
    %893 = vmatpush1.bf16.msra.mxu0 0
    %894 = vmatprep.subr.bf16.mxu0 0
    %895 = vmatpush1.bf16.msra.mxu0 0
    %896 = vmatprep.mubr.bf16.mxu0 0
    %897 = vmatmul.mubr.bf16.gmra.mrb[0].mxu0 %v859
    %v898 = vpop.f32.mrb[0].mxu0
    %v899 = vadd.f32 0.0, %v898
    %v900 = vpop.f32.mrb[0].mxu0
    %v901 = vpop.f32.mrb[0].mxu0
    %v902 = vpop.f32.mrb[0].mxu0
    %903 = vdwg.mxu0
    %904 = vrot.lane.b32.xlu0 %v279, 48
    %v905 = vpop.permute.xlu0 %904
    %v907 = vsel %vm295, %v855, 0
    %v910 = vsel %vm420, %v905, 0
    %912 = vmatprep.subr.bf16.mxu0 0
    %913 = vmatpush1.bf16.msra.mxu0 %v910
    %914 = vmatprep.subr.bf16.mxu0 0
    %915 = vmatpush1.bf16.msra.mxu0 0
    %916 = vmatprep.subr.bf16.mxu0 0
    %917 = vmatpush1.bf16.msra.mxu0 0
    %918 = vmatprep.subr.bf16.mxu0 0
    %919 = vmatpush1.bf16.msra.mxu0 0
    %920 = vmatprep.subr.bf16.mxu0 0
    %921 = vmatpush1.bf16.msra.mxu0 0
    %922 = vmatprep.subr.bf16.mxu0 0
    %923 = vmatpush1.bf16.msra.mxu0 0
    %924 = vmatprep.subr.bf16.mxu0 0
    %925 = vmatpush1.bf16.msra.mxu0 0
    %926 = vmatprep.subr.bf16.mxu0 0
    %927 = vmatpush1.bf16.msra.mxu0 0
    %928 = vmatprep.subr.bf16.mxu0 0
    %929 = vmatpush1.bf16.msra.mxu0 0
    %930 = vmatprep.subr.bf16.mxu0 0
    %931 = vmatpush1.bf16.msra.mxu0 0
    %932 = vmatprep.subr.bf16.mxu0 0
    %933 = vmatpush1.bf16.msra.mxu0 0
    %934 = vmatprep.subr.bf16.mxu0 0
    %935 = vmatpush1.bf16.msra.mxu0 0
    %936 = vmatprep.subr.bf16.mxu0 0
    %937 = vmatpush1.bf16.msra.mxu0 0
    %938 = vmatprep.subr.bf16.mxu0 0
    %939 = vmatpush1.bf16.msra.mxu0 0
    %940 = vmatprep.subr.bf16.mxu0 0
    %941 = vmatpush1.bf16.msra.mxu0 0
    %942 = vmatprep.subr.bf16.mxu0 0
    %943 = vmatpush1.bf16.msra.mxu0 0
    %944 = vmatprep.mubr.bf16.mxu0 0
    %945 = vmatmul.mubr.bf16.gmra.mrb[0].mxu0 %v907
    %v946 = vpop.f32.mrb[0].mxu0
    %v947 = vadd.f32 0.0, %v946
    %v948 = vpop.f32.mrb[0].mxu0
    %v949 = vpop.f32.mrb[0].mxu0
    %v950 = vpop.f32.mrb[0].mxu0
    %951 = vdwg.mxu0
    %952 = vrot.lane.b32.xlu0 %v278, 104
    %v953 = vpop.permute.xlu0 %952
    %954 = vrot.lane.b32.xlu0 %v278, 72
    %v955 = vpop.permute.xlu0 %954
    %v957 = vsel %vm295, %v953, 0
    %v960 = vsel %vm295, %v955, 0
    %962 = vmatprep.subr.bf16.mxu0 0
    %963 = vmatpush1.bf16.xpose.msra.mxu0 %v960
    %964 = vmatprep.subr.bf16.mxu0 0
    %965 = vmatpush1.bf16.xpose.msra.mxu0 0
    %966 = vmatprep.subr.bf16.mxu0 0
    %967 = vmatpush1.bf16.xpose.msra.mxu0 0
    %968 = vmatprep.subr.bf16.mxu0 0
    %969 = vmatpush1.bf16.xpose.msra.mxu0 0
    %970 = vmatprep.subr.bf16.mxu0 0
    %971 = vmatpush1.bf16.xpose.msra.mxu0 0
    %972 = vmatprep.subr.bf16.mxu0 0
    %973 = vmatpush1.bf16.xpose.msra.mxu0 0
    %974 = vmatprep.subr.bf16.mxu0 0
    %975 = vmatpush1.bf16.xpose.msra.mxu0 0
    %976 = vmatprep.subr.bf16.mxu0 0
    %977 = vmatpush1.bf16.xpose.msra.mxu0 0
    %978 = vmatprep.subr.bf16.mxu0 0
    %979 = vmatpush1.bf16.xpose.msra.mxu0 0
    %980 = vmatprep.subr.bf16.mxu0 0
    %981 = vmatpush1.bf16.xpose.msra.mxu0 0
    %982 = vmatprep.subr.bf16.mxu0 0
    %983 = vmatpush1.bf16.xpose.msra.mxu0 0
    %984 = vmatprep.subr.bf16.mxu0 0
    %985 = vmatpush1.bf16.xpose.msra.mxu0 0
    %986 = vmatprep.subr.bf16.mxu0 0
    %987 = vmatpush1.bf16.xpose.msra.mxu0 0
    %988 = vmatprep.subr.bf16.mxu0 0
    %989 = vmatpush1.bf16.xpose.msra.mxu0 0
    %990 = vmatprep.subr.bf16.mxu0 0
    %991 = vmatpush1.bf16.xpose.msra.mxu0 0
    %992 = vmatprep.subr.bf16.mxu0 0
    %993 = vmatpush1.bf16.xpose.msra.mxu0 0
    %994 = vmatprep.mubr.bf16.mxu0 0
    %995 = vmatmul.mubr.bf16.gmra.mrb[0].mxu0 %v957
    %v996 = vpop.f32.mrb[0].mxu0
    %v997 = vadd.f32 %v285, %v996
    %v998 = vpop.f32.mrb[0].mxu0
    %v999 = vpop.f32.mrb[0].mxu0
    %v1000 = vpop.f32.mrb[0].mxu0
    %1001 = vdwg.mxu0
    %1002 = vrot.lane.b32.xlu0 %v279, 104
    %v1003 = vpop.permute.xlu0 %1002
    %1004 = vrot.lane.b32.xlu0 %v279, 72
    %v1005 = vpop.permute.xlu0 %1004
    %v1007 = vsel %vm295, %v1003, 0
    %v1010 = vsel %vm295, %v1005, 0
    %1012 = vmatprep.subr.bf16.mxu0 0
    %1013 = vmatpush1.bf16.xpose.msra.mxu0 %v1010
    %1014 = vmatprep.subr.bf16.mxu0 0
    %1015 = vmatpush1.bf16.xpose.msra.mxu0 0
    %1016 = vmatprep.subr.bf16.mxu0 0
    %1017 = vmatpush1.bf16.xpose.msra.mxu0 0
    %1018 = vmatprep.subr.bf16.mxu0 0
    %1019 = vmatpush1.bf16.xpose.msra.mxu0 0
    %1020 = vmatprep.subr.bf16.mxu0 0
    %1021 = vmatpush1.bf16.xpose.msra.mxu0 0
    %1022 = vmatprep.subr.bf16.mxu0 0
    %1023 = vmatpush1.bf16.xpose.msra.mxu0 0
    %1024 = vmatprep.subr.bf16.mxu0 0
    %1025 = vmatpush1.bf16.xpose.msra.mxu0 0
    %1026 = vmatprep.subr.bf16.mxu0 0
    %1027 = vmatpush1.bf16.xpose.msra.mxu0 0
    %1028 = vmatprep.subr.bf16.mxu0 0
    %1029 = vmatpush1.bf16.xpose.msra.mxu0 0
    %1030 = vmatprep.subr.bf16.mxu0 0
    %1031 = vmatpush1.bf16.xpose.msra.mxu0 0
    %1032 = vmatprep.subr.bf16.mxu0 0
    %1033 = vmatpush1.bf16.xpose.msra.mxu0 0
    %1034 = vmatprep.subr.bf16.mxu0 0
    %1035 = vmatpush1.bf16.xpose.msra.mxu0 0
    %1036 = vmatprep.subr.bf16.mxu0 0
    %1037 = vmatpush1.bf16.xpose.msra.mxu0 0
    %1038 = vmatprep.subr.bf16.mxu0 0
    %1039 = vmatpush1.bf16.xpose.msra.mxu0 0
    %1040 = vmatprep.subr.bf16.mxu0 0
    %1041 = vmatpush1.bf16.xpose.msra.mxu0 0
    %1042 = vmatprep.subr.bf16.mxu0 0
    %1043 = vmatpush1.bf16.xpose.msra.mxu0 0
    %1044 = vmatprep.mubr.bf16.mxu0 0
    %1045 = vmatmul.mubr.bf16.gmra.mrb[0].mxu0 %v1007
    %v1046 = vpop.f32.mrb[0].mxu0
    %v1047 = vadd.f32 %v289, %v1046
    %v1048 = vpop.f32.mrb[0].mxu0
    %v1049 = vpop.f32.mrb[0].mxu0
    %v1050 = vpop.f32.mrb[0].mxu0
    %1051 = vdwg.mxu0
    %v1052 = vsel %vm295, %v997, -inf
    %1053 = vmax.xlane.f32.xlu0 %v1052
    %v1054 = vpop.xlane.xlu0 %1053
    %v1055 = vsel %vm295, %v1047, -inf
    %1056 = vmax.xlane.f32.xlu0 %v1055
    %v1057 = vpop.xlane.xlu0 %1056
    %v1058 = vsub.f32 %v997, %v1054
    %v1059 = vsub.f32 %v1047, %v1057
    %v1060 = vmul.f32 %v1058, 1.442695
    %v1061 = vpow.pop %v1060
    %v1062 = vmul.f32 %v1059, 1.442695
    %v1063 = vpow.pop %v1062
    %v1064 = vsel %vm295, %v1061, 0.0
    %1065 = vadd.xlane.f32.xlu0 %v1064
    %v1066 = vpop.xlane.xlu0 %1065
    %v1067 = vsel %vm295, %v1063, 0.0
    %1068 = vadd.xlane.f32.xlu0 %v1067
    %v1069 = vpop.xlane.xlu0 %1068
    %v1070 = vrcp.pop %v1066
    %v1071 = vrcp.pop %v1069
    %v1072 = vmul.f32 %v1061, %v1070
    %v1073 = vmul.f32 %v1063, %v1071
    %v1074 = vpack.c.bf16 %v1072, %v1072
    %v1075 = vpack.c.bf16 %v1073, %v1073
    %1076 = vrot.lane.b32.xlu0 %v278, 40
    %v1077 = vpop.permute.xlu0 %1076
    %v1079 = vsel %vm295, %v1074, 0
    %v1082 = vsel %vm420, %v1077, 0
    %1084 = vmatprep.subr.bf16.mxu0 0
    %1085 = vmatpush1.bf16.msra.mxu0 %v1082
    %1086 = vmatprep.subr.bf16.mxu0 0
    %1087 = vmatpush1.bf16.msra.mxu0 0
    %1088 = vmatprep.subr.bf16.mxu0 0
    %1089 = vmatpush1.bf16.msra.mxu0 0
    %1090 = vmatprep.subr.bf16.mxu0 0
    %1091 = vmatpush1.bf16.msra.mxu0 0
    %1092 = vmatprep.subr.bf16.mxu0 0
    %1093 = vmatpush1.bf16.msra.mxu0 0
    %1094 = vmatprep.subr.bf16.mxu0 0
    %1095 = vmatpush1.bf16.msra.mxu0 0
    %1096 = vmatprep.subr.bf16.mxu0 0
    %1097 = vmatpush1.bf16.msra.mxu0 0
    %1098 = vmatprep.subr.bf16.mxu0 0
    %1099 = vmatpush1.bf16.msra.mxu0 0
    %1100 = vmatprep.subr.bf16.mxu0 0
    %1101 = vmatpush1.bf16.msra.mxu0 0
    %1102 = vmatprep.subr.bf16.mxu0 0
    %1103 = vmatpush1.bf16.msra.mxu0 0
    %1104 = vmatprep.subr.bf16.mxu0 0
    %1105 = vmatpush1.bf16.msra.mxu0 0
    %1106 = vmatprep.subr.bf16.mxu0 0
    %1107 = vmatpush1.bf16.msra.mxu0 0
    %1108 = vmatprep.subr.bf16.mxu0 0
    %1109 = vmatpush1.bf16.msra.mxu0 0
    %1110 = vmatprep.subr.bf16.mxu0 0
    %1111 = vmatpush1.bf16.msra.mxu0 0
    %1112 = vmatprep.subr.bf16.mxu0 0
    %1113 = vmatpush1.bf16.msra.mxu0 0
    %1114 = vmatprep.subr.bf16.mxu0 0
    %1115 = vmatpush1.bf16.msra.mxu0 0
    %1116 = vmatprep.mubr.bf16.mxu0 0
    %1117 = vmatmul.mubr.bf16.gmra.mrb[0].mxu0 %v1079
    %v1118 = vpop.f32.mrb[0].mxu0
    %v1119 = vadd.f32 0.0, %v1118
    %v1120 = vpop.f32.mrb[0].mxu0
    %v1121 = vpop.f32.mrb[0].mxu0
    %v1122 = vpop.f32.mrb[0].mxu0
    %1123 = vdwg.mxu0
    %1124 = vrot.lane.b32.xlu0 %v279, 40
    %v1125 = vpop.permute.xlu0 %1124
    %v1127 = vsel %vm295, %v1075, 0
    %v1130 = vsel %vm420, %v1125, 0
    %1132 = vmatprep.subr.bf16.mxu0 0
    %1133 = vmatpush1.bf16.msra.mxu0 %v1130
    %1134 = vmatprep.subr.bf16.mxu0 0
    %1135 = vmatpush1.bf16.msra.mxu0 0
    %1136 = vmatprep.subr.bf16.mxu0 0
    %1137 = vmatpush1.bf16.msra.mxu0 0
    %1138 = vmatprep.subr.bf16.mxu0 0
    %1139 = vmatpush1.bf16.msra.mxu0 0
    %1140 = vmatprep.subr.bf16.mxu0 0
    %1141 = vmatpush1.bf16.msra.mxu0 0
    %1142 = vmatprep.subr.bf16.mxu0 0
    %1143 = vmatpush1.bf16.msra.mxu0 0
    %1144 = vmatprep.subr.bf16.mxu0 0
    %1145 = vmatpush1.bf16.msra.mxu0 0
    %1146 = vmatprep.subr.bf16.mxu0 0
    %1147 = vmatpush1.bf16.msra.mxu0 0
    %1148 = vmatprep.subr.bf16.mxu0 0
    %1149 = vmatpush1.bf16.msra.mxu0 0
    %1150 = vmatprep.subr.bf16.mxu0 0
    %1151 = vmatpush1.bf16.msra.mxu0 0
    %1152 = vmatprep.subr.bf16.mxu0 0
    %1153 = vmatpush1.bf16.msra.mxu0 0
    %1154 = vmatprep.subr.bf16.mxu0 0
    %1155 = vmatpush1.bf16.msra.mxu0 0
    %1156 = vmatprep.subr.bf16.mxu0 0
    %1157 = vmatpush1.bf16.msra.mxu0 0
    %1158 = vmatprep.subr.bf16.mxu0 0
    %1159 = vmatpush1.bf16.msra.mxu0 0
    %1160 = vmatprep.subr.bf16.mxu0 0
    %1161 = vmatpush1.bf16.msra.mxu0 0
    %1162 = vmatprep.subr.bf16.mxu0 0
    %1163 = vmatpush1.bf16.msra.mxu0 0
    %1164 = vmatprep.mubr.bf16.mxu0 0
    %1165 = vmatmul.mubr.bf16.gmra.mrb[0].mxu0 %v1127
    %v1166 = vpop.f32.mrb[0].mxu0
    %v1167 = vadd.f32 0.0, %v1166
    %v1168 = vpop.f32.mrb[0].mxu0
    %v1169 = vpop.f32.mrb[0].mxu0
    %v1170 = vpop.f32.mrb[0].mxu0
    %1171 = vdwg.mxu0
    %1174 = vrot.lane.b32.xlu0 %v679, 8
    %v1175 = vpop.permute.xlu0 %1174
    %1176 = vrot.lane.b32.xlu0 %v727, 8
    %v1177 = vpop.permute.xlu0 %1176
    %1182 = vrot.lane.b32.xlu0 %v899, 16
    %v1183 = vpop.permute.xlu0 %1182
    %1184 = vrot.lane.b32.xlu0 %v947, 16
    %v1185 = vpop.permute.xlu0 %1184
    %1190 = vrot.lane.b32.xlu0 %v1119, 24
    %v1191 = vpop.permute.xlu0 %1190
    %1192 = vrot.lane.b32.xlu0 %v1167, 24
    %v1193 = vpop.permute.xlu0 %1192
    %v1196 = vsel %vm295, %v459, %v1175
    %v1197 = vsel %vm295, %v507, %v1177
    %vm1198 = vcmask 130048
    %v1199 = vsel %vm1198, %v1196, %v1183
    %v1200 = vsel %vm1198, %v1197, %v1185
    %vm1201 = vcmask 195584
    %v1202 = vsel %vm1201, %v1199, %v1191
    %v1203 = vsel %vm1201, %v1200, %v1193
    %v1204 = vpack.c.bf16 %v1203, %v1202
    %v1205 = vlaneseq
    %v1206 = vshrl.u32 %v1205, 7
    %v1207 = vsub.s32 1, %v1206
    %v1208 = vrot.slane %v216, %v1207
    %1209 = vrot.lane.b32.xlu0 %v230, 32
    %v1210 = vpop.permute.xlu0 %1209
    %1211 = vrot.lane.b32.xlu0 %v231, 32
    %v1212 = vpop.permute.xlu0 %1211
    %v1216 = vsel %vm162, %v1204, 0
    %1218 = vmatprep.subr.bf16.mxu0 0
    %1219 = vmatpush1.bf16.msra.mxu0 %v1210
    %1220 = vmatprep.subr.bf16.mxu0 0
    %1221 = vmatpush1.bf16.msra.mxu0 %v1212
    %1222 = vmatprep.subr.bf16.mxu0 0
    %1223 = vmatpush1.bf16.msra.mxu0 0
    %1224 = vmatprep.subr.bf16.mxu0 0
    %1225 = vmatpush1.bf16.msra.mxu0 0
    %1226 = vmatprep.subr.bf16.mxu0 0
    %1227 = vmatpush1.bf16.msra.mxu0 0
    %1228 = vmatprep.subr.bf16.mxu0 0
    %1229 = vmatpush1.bf16.msra.mxu0 0
    %1230 = vmatprep.subr.bf16.mxu0 0
    %1231 = vmatpush1.bf16.msra.mxu0 0
    %1232 = vmatprep.subr.bf16.mxu0 0
    %1233 = vmatpush1.bf16.msra.mxu0 0
    %1234 = vmatprep.subr.bf16.mxu0 0
    %1235 = vmatpush1.bf16.msra.mxu0 0
    %1236 = vmatprep.subr.bf16.mxu0 0
    %1237 = vmatpush1.bf16.msra.mxu0 0
    %1238 = vmatprep.subr.bf16.mxu0 0
    %1239 = vmatpush1.bf16.msra.mxu0 0
    %1240 = vmatprep.subr.bf16.mxu0 0
    %1241 = vmatpush1.bf16.msra.mxu0 0
    %1242 = vmatprep.subr.bf16.mxu0 0
    %1243 = vmatpush1.bf16.msra.mxu0 0
    %1244 = vmatprep.subr.bf16.mxu0 0
    %1245 = vmatpush1.bf16.msra.mxu0 0
    %1246 = vmatprep.subr.bf16.mxu0 0
    %1247 = vmatpush1.bf16.msra.mxu0 0
    %1248 = vmatprep.subr.bf16.mxu0 0
    %1249 = vmatpush1.bf16.msra.mxu0 0
    %1250 = vmatprep.mubr.bf16.mxu0 0
    %1251 = vmatmul.mubr.bf16.gmra.mrb[0].mxu0 %v1216
    %v1252 = vpop.f32.mrb[0].mxu0
    %v1253 = vadd.f32 %v1208, %v1252
    %v1254 = vpop.f32.mrb[0].mxu0
    %v1255 = vpop.f32.mrb[0].mxu0
    %v1256 = vadd.f32 %v1208, %v1255
    %v1257 = vpop.f32.mrb[0].mxu0
    %1258 = vdwg.mxu0
    %v1259 = vadd.f32 %v1253, %v200
    %v1260 = vadd.f32 %v1256, %v201
    %v1261 = vsel %vm162, %v1259, 0.0
    %1262 = vadd.xlane.f32.xlu0 %v1261
    %v1263 = vpop.xlane.xlu0 %1262
    %v1264 = vsel %vm162, %v1260, 0.0
    %1265 = vadd.xlane.f32.xlu0 %v1264
    %v1266 = vpop.xlane.xlu0 %1265
    %v1267 = vmul.f32 %v1263, %v169
    %v1268 = vmul.f32 %v1266, %v169
    %v1269 = vsub.f32 %v1259, %v1267
    %v1270 = vsub.f32 %v1260, %v1268
    %v1271 = vmul.f32 %v1269, %v1269
    %v1272 = vmul.f32 %v1270, %v1270
    %v1273 = vsel %vm162, %v1271, 0.0
    %1274 = vadd.xlane.f32.xlu0 %v1273
    %v1275 = vpop.xlane.xlu0 %1274
    %v1276 = vsel %vm162, %v1272, 0.0
    %1277 = vadd.xlane.f32.xlu0 %v1276
    %v1278 = vpop.xlane.xlu0 %1277
    %v1279 = vmul.f32 %v1275, %v169
    %v1280 = vmul.f32 %v1278, %v169
    %v1281 = vadd.f32 %v1279, 1e-12
    %v1282 = vadd.f32 %v1280, 1e-12
    %v1283 = vrsqrt.pop %v1281
    %v1284 = vrsqrt.pop %v1282
    %v1285 = vmul.f32 %v1269, %v1283
    %v1286 = vmul.f32 %v1270, %v1284
    %v1287 = vlaneseq
    %v1288 = vshrl.u32 %v1287, 7
    %v1289 = vsub.s32 2, %v1288
    %v1290 = vrot.slane %v216, %v1289
    %v1291 = vmul.f32 %v1285, %v1290
    %v1292 = vmul.f32 %v1286, %v1290
    %v1293 = vlaneseq
    %v1294 = vshrl.u32 %v1293, 7
    %v1295 = vsub.s32 3, %v1294
    %v1296 = vrot.slane %v216, %v1295
    %v1297 = vadd.f32 %v1291, %v1296
    %v1298 = vadd.f32 %v1292, %v1296
    %v1299 = vpack.c.bf16 %v1298, %v1297
    %v1300 = vlaneseq
    %v1301 = vshrl.u32 %v1300, 7
    %v1302 = vsub.s32 4, %v1301
    %v1303 = vrot.slane %v216, %v1302
    %v1304 = vunpack.c.h.b16 %v204
    %v1305 = vunpack.c.h.b16 %v205
    %v1306 = vunpack.c.h.b16 %v206
    %v1307 = vunpack.c.h.b16 %v207
    %v1308 = vpack.c.b16 %v1305, %v1304
    %v1309 = vpack.c.b16 %v1307, %v1306
    %v1313 = vsel %vm162, %v1299, 0
    %1315 = vmatprep.subr.bf16.mxu0 0
    %1316 = vmatpush1.bf16.msra.mxu0 %v1308
    %1317 = vmatprep.subr.bf16.mxu0 0
    %1318 = vmatpush1.bf16.msra.mxu0 %v1309
    %1319 = vmatprep.subr.bf16.mxu0 0
    %1320 = vmatpush1.bf16.msra.mxu0 0
    %1321 = vmatprep.subr.bf16.mxu0 0
    %1322 = vmatpush1.bf16.msra.mxu0 0
    %1323 = vmatprep.subr.bf16.mxu0 0
    %1324 = vmatpush1.bf16.msra.mxu0 0
    %1325 = vmatprep.subr.bf16.mxu0 0
    %1326 = vmatpush1.bf16.msra.mxu0 0
    %1327 = vmatprep.subr.bf16.mxu0 0
    %1328 = vmatpush1.bf16.msra.mxu0 0
    %1329 = vmatprep.subr.bf16.mxu0 0
    %1330 = vmatpush1.bf16.msra.mxu0 0
    %1331 = vmatprep.subr.bf16.mxu0 0
    %1332 = vmatpush1.bf16.msra.mxu0 0
    %1333 = vmatprep.subr.bf16.mxu0 0
    %1334 = vmatpush1.bf16.msra.mxu0 0
    %1335 = vmatprep.subr.bf16.mxu0 0
    %1336 = vmatpush1.bf16.msra.mxu0 0
    %1337 = vmatprep.subr.bf16.mxu0 0
    %1338 = vmatpush1.bf16.msra.mxu0 0
    %1339 = vmatprep.subr.bf16.mxu0 0
    %1340 = vmatpush1.bf16.msra.mxu0 0
    %1341 = vmatprep.subr.bf16.mxu0 0
    %1342 = vmatpush1.bf16.msra.mxu0 0
    %1343 = vmatprep.subr.bf16.mxu0 0
    %1344 = vmatpush1.bf16.msra.mxu0 0
    %1345 = vmatprep.subr.bf16.mxu0 0
    %1346 = vmatpush1.bf16.msra.mxu0 0
    %1347 = vmatprep.mubr.bf16.mxu0 0
    %1348 = vmatmul.mubr.bf16.gmra.mrb[0].mxu0 %v1313
    %v1349 = vpop.f32.mrb[0].mxu0
    %v1350 = vadd.f32 %v1303, %v1349
    %v1351 = vpop.f32.mrb[0].mxu0
    %v1352 = vpop.f32.mrb[0].mxu0
    %v1353 = vadd.f32 %v1303, %v1352
    %v1354 = vpop.f32.mrb[0].mxu0
    %1355 = vdwg.mxu0
    %v1356 = vmul.f32 %v1350, 0.5
    %v1357 = vmul.f32 %v1353, 0.5
    %v1358 = vmul.f32 %v1350, 0.70710677
    %v1359 = vmul.f32 %v1353, 0.70710677
    %v1360 = verf.f32.pop %v1358
    %v1361 = verf.f32.pop %v1359
    %v1362 = vadd.f32 %v1360, 1.0
    %v1363 = vadd.f32 %v1361, 1.0
    %v1364 = vmul.f32 %v1356, %v1362
    %v1365 = vmul.f32 %v1357, %v1363
    %v1366 = vpack.c.bf16 %v1365, %v1364
    %v1367 = vlaneseq
    %v1368 = vshrl.u32 %v1367, 7
    %v1369 = vsub.s32 5, %v1368
    %v1370 = vrot.slane %v216, %v1369
    %v1379 = vunpack.c.l.b16 %v208
    %v1380 = vunpack.c.l.b16 %v209
    %v1381 = vunpack.c.l.b16 %v210
    %v1382 = vunpack.c.l.b16 %v211
    %v1383 = vunpack.c.l.b16 %v212
    %v1384 = vunpack.c.l.b16 %v213
    %v1385 = vunpack.c.l.b16 %v214
    %v1386 = vunpack.c.l.b16 %v215
    %v1387 = vpack.c.b16 %v1380, %v1379
    %v1388 = vpack.c.b16 %v1382, %v1381
    %v1389 = vpack.c.b16 %v1384, %v1383
    %v1390 = vpack.c.b16 %v1386, %v1385
    %v1396 = vsel %vm75, %v1366, 0
    %1398 = vmatprep.subr.bf16.mxu0 0
    %1399 = vmatpush1.bf16.msra.mxu0 %v1387
    %1400 = vmatprep.subr.bf16.mxu0 0
    %1401 = vmatpush1.bf16.msra.mxu0 %v1388
    %1402 = vmatprep.subr.bf16.mxu0 0
    %1403 = vmatpush1.bf16.msra.mxu0 %v1389
    %1404 = vmatprep.subr.bf16.mxu0 0
    %1405 = vmatpush1.bf16.msra.mxu0 %v1390
    %1406 = vmatprep.subr.bf16.mxu0 0
    %1407 = vmatpush1.bf16.msra.mxu0 0
    %1408 = vmatprep.subr.bf16.mxu0 0
    %1409 = vmatpush1.bf16.msra.mxu0 0
    %1410 = vmatprep.subr.bf16.mxu0 0
    %1411 = vmatpush1.bf16.msra.mxu0 0
    %1412 = vmatprep.subr.bf16.mxu0 0
    %1413 = vmatpush1.bf16.msra.mxu0 0
    %1414 = vmatprep.subr.bf16.mxu0 0
    %1415 = vmatpush1.bf16.msra.mxu0 0
    %1416 = vmatprep.subr.bf16.mxu0 0
    %1417 = vmatpush1.bf16.msra.mxu0 0
    %1418 = vmatprep.subr.bf16.mxu0 0
    %1419 = vmatpush1.bf16.msra.mxu0 0
    %1420 = vmatprep.subr.bf16.mxu0 0
    %1421 = vmatpush1.bf16.msra.mxu0 0
    %1422 = vmatprep.subr.bf16.mxu0 0
    %1423 = vmatpush1.bf16.msra.mxu0 0
    %1424 = vmatprep.subr.bf16.mxu0 0
    %1425 = vmatpush1.bf16.msra.mxu0 0
    %1426 = vmatprep.subr.bf16.mxu0 0
    %1427 = vmatpush1.bf16.msra.mxu0 0
    %1428 = vmatprep.subr.bf16.mxu0 0
    %1429 = vmatpush1.bf16.msra.mxu0 0
    %1430 = vmatprep.mubr.bf16.mxu0 0
    %1431 = vmatmul.mubr.bf16.gmra.mrb[0].mxu0 %v1396
    %v1432 = vpop.f32.mrb[0].mxu0
    %v1433 = vadd.f32 %v1370, %v1432
    %v1434 = vpop.f32.mrb[0].mxu0
    %v1435 = vpop.f32.mrb[0].mxu0
    %v1436 = vadd.f32 %v1370, %v1435
    %v1437 = vpop.f32.mrb[0].mxu0
    %1438 = vdwg.mxu0
    %v1439 = vadd.f32 %v1433, %v1297
    %v1440 = vadd.f32 %v1436, %v1298
    %v1441 = vsel %vm162, %v1439, 0.0
    %1442 = vadd.xlane.f32.xlu0 %v1441
    %v1443 = vpop.xlane.xlu0 %1442
    %v1444 = vsel %vm162, %v1440, 0.0
    %1445 = vadd.xlane.f32.xlu0 %v1444
    %v1446 = vpop.xlane.xlu0 %1445
    %v1447 = vmul.f32 %v1443, %v169
    %v1448 = vmul.f32 %v1446, %v169
    %v1449 = vsub.f32 %v1439, %v1447
    %v1450 = vsub.f32 %v1440, %v1448
    %v1451 = vmul.f32 %v1449, %v1449
    %v1452 = vmul.f32 %v1450, %v1450
    %v1453 = vsel %vm162, %v1451, 0.0
    %1454 = vadd.xlane.f32.xlu0 %v1453
    %v1455 = vpop.xlane.xlu0 %1454
    %v1456 = vsel %vm162, %v1452, 0.0
    %1457 = vadd.xlane.f32.xlu0 %v1456
    %v1458 = vpop.xlane.xlu0 %1457
    %v1459 = vmul.f32 %v1455, %v169
    %v1460 = vmul.f32 %v1458, %v169
    %v1461 = vadd.f32 %v1459, 1e-12
    %v1462 = vadd.f32 %v1460, 1e-12
    %v1463 = vrsqrt.pop %v1461
    %v1464 = vrsqrt.pop %v1462
    %v1465 = vmul.f32 %v1449, %v1463
    %v1466 = vmul.f32 %v1450, %v1464
    %v1467 = vlaneseq
    %v1468 = vshrl.u32 %v1467, 7
    %v1469 = vsub.s32 6, %v1468
    %v1470 = vrot.slane %v216, %v1469
    %v1471 = vmul.f32 %v1465, %v1470
    %v1472 = vmul.f32 %v1466, %v1470
    %v1473 = vlaneseq
    %v1474 = vshrl.u32 %v1473, 7
    %v1475 = vsub.s32 7, %v1474
    %v1476 = vrot.slane %v216, %v1475
    %v1477 = vadd.f32 %v1471, %v1476
    %v1478 = vadd.f32 %v1472, %v1476
    %s1479 = scalar_lea.vmem %s3, 32
    %v1480 = vld [vmem:[%s1479] sm:$0xff]
    %v1481 = vld [vmem:[%s1479 + $0x8] sm:$0xff]
    %v1482 = vld [vmem:[%s1479 + $0x10] sm:$0xff]
    %v1483 = vld [vmem:[%s1479 + $0x18] sm:$0xff]
    %s1484 = scalar_lea.vmem %s4, 32
    %v1485 = vld [vmem:[%s1484] sm:$0xf]
    %v1486 = vld [vmem:[%s1484 + $0x4] sm:$0xf]
    %v1487 = vld [vmem:[%s1484 + $0x8] sm:$0xf]
    %v1488 = vld [vmem:[%s1484 + $0xc] sm:$0xf]
    %v1489 = vld [vmem:[%s1484 + $0x10] sm:$0xf]
    %v1490 = vld [vmem:[%s1484 + $0x14] sm:$0xf]
    %v1491 = vld [vmem:[%s1484 + $0x18] sm:$0xf]
    %v1492 = vld [vmem:[%s1484 + $0x1c] sm:$0xf]
    %s1493 = scalar_lea.vmem %s5, 8
    %v1494 = vld [vmem:[%s1493] sm:$0xff]
    %v1495 = vpack.c.bf16 %v1478, %v1477
    %v1496 = vlaneseq
    %v1497 = vshrl.u32 %v1496, 7
    %v1498 = vsub.s32 0, %v1497
    %v1499 = vrot.slane %v1494, %v1498
    %v1504 = vunpack.c.l.b16 %v1480
    %v1505 = vunpack.c.l.b16 %v1481
    %v1506 = vunpack.c.l.b16 %v1482
    %v1507 = vunpack.c.l.b16 %v1483
    %v1508 = vpack.c.b16 %v1505, %v1504
    %v1509 = vpack.c.b16 %v1507, %v1506
    %v1513 = vsel %vm162, %v1495, 0
    %1515 = vmatprep.subr.bf16.mxu0 0
    %1516 = vmatpush1.bf16.msra.mxu0 %v1508
    %1517 = vmatprep.subr.bf16.mxu0 0
    %1518 = vmatpush1.bf16.msra.mxu0 %v1509
    %1519 = vmatprep.subr.bf16.mxu0 0
    %1520 = vmatpush1.bf16.msra.mxu0 0
    %1521 = vmatprep.subr.bf16.mxu0 0
    %1522 = vmatpush1.bf16.msra.mxu0 0
    %1523 = vmatprep.subr.bf16.mxu0 0
    %1524 = vmatpush1.bf16.msra.mxu0 0
    %1525 = vmatprep.subr.bf16.mxu0 0
    %1526 = vmatpush1.bf16.msra.mxu0 0
    %1527 = vmatprep.subr.bf16.mxu0 0
    %1528 = vmatpush1.bf16.msra.mxu0 0
    %1529 = vmatprep.subr.bf16.mxu0 0
    %1530 = vmatpush1.bf16.msra.mxu0 0
    %1531 = vmatprep.subr.bf16.mxu0 0
    %1532 = vmatpush1.bf16.msra.mxu0 0
    %1533 = vmatprep.subr.bf16.mxu0 0
    %1534 = vmatpush1.bf16.msra.mxu0 0
    %1535 = vmatprep.subr.bf16.mxu0 0
    %1536 = vmatpush1.bf16.msra.mxu0 0
    %1537 = vmatprep.subr.bf16.mxu0 0
    %1538 = vmatpush1.bf16.msra.mxu0 0
    %1539 = vmatprep.subr.bf16.mxu0 0
    %1540 = vmatpush1.bf16.msra.mxu0 0
    %1541 = vmatprep.subr.bf16.mxu0 0
    %1542 = vmatpush1.bf16.msra.mxu0 0
    %1543 = vmatprep.subr.bf16.mxu0 0
    %1544 = vmatpush1.bf16.msra.mxu0 0
    %1545 = vmatprep.subr.bf16.mxu0 0
    %1546 = vmatpush1.bf16.msra.mxu0 0
    %1547 = vmatprep.mubr.bf16.mxu0 0
    %1548 = vmatmul.mubr.bf16.gmra.mrb[0].mxu0 %v1513
    %v1549 = vpop.f32.mrb[0].mxu0
    %v1550 = vadd.f32 %v1499, %v1549
    %v1551 = vpop.f32.mrb[0].mxu0
    %v1552 = vpop.f32.mrb[0].mxu0
    %v1553 = vadd.f32 %v1499, %v1552
    %v1554 = vpop.f32.mrb[0].mxu0
    %1555 = vdwg.mxu0
    %v1556 = vpack.c.bf16 %v1550, %v1550
    %v1557 = vpack.c.bf16 %v1553, %v1553
    %1559 = vrot.lane.b32.xlu0 %v1556, 96
    %v1560 = vpop.permute.xlu0 %1559
    %v1562 = vsel %vm295, %v1556, 0
    %v1565 = vsel %vm295, %v1560, 0
    %1567 = vmatprep.subr.bf16.mxu0 0
    %1568 = vmatpush1.bf16.xpose.msra.mxu0 %v1565
    %1569 = vmatprep.subr.bf16.mxu0 0
    %1570 = vmatpush1.bf16.xpose.msra.mxu0 0
    %1571 = vmatprep.subr.bf16.mxu0 0
    %1572 = vmatpush1.bf16.xpose.msra.mxu0 0
    %1573 = vmatprep.subr.bf16.mxu0 0
    %1574 = vmatpush1.bf16.xpose.msra.mxu0 0
    %1575 = vmatprep.subr.bf16.mxu0 0
    %1576 = vmatpush1.bf16.xpose.msra.mxu0 0
    %1577 = vmatprep.subr.bf16.mxu0 0
    %1578 = vmatpush1.bf16.xpose.msra.mxu0 0
    %1579 = vmatprep.subr.bf16.mxu0 0
    %1580 = vmatpush1.bf16.xpose.msra.mxu0 0
    %1581 = vmatprep.subr.bf16.mxu0 0
    %1582 = vmatpush1.bf16.xpose.msra.mxu0 0
    %1583 = vmatprep.subr.bf16.mxu0 0
    %1584 = vmatpush1.bf16.xpose.msra.mxu0 0
    %1585 = vmatprep.subr.bf16.mxu0 0
    %1586 = vmatpush1.bf16.xpose.msra.mxu0 0
    %1587 = vmatprep.subr.bf16.mxu0 0
    %1588 = vmatpush1.bf16.xpose.msra.mxu0 0
    %1589 = vmatprep.subr.bf16.mxu0 0
    %1590 = vmatpush1.bf16.xpose.msra.mxu0 0
    %1591 = vmatprep.subr.bf16.mxu0 0
    %1592 = vmatpush1.bf16.xpose.msra.mxu0 0
    %1593 = vmatprep.subr.bf16.mxu0 0
    %1594 = vmatpush1.bf16.xpose.msra.mxu0 0
    %1595 = vmatprep.subr.bf16.mxu0 0
    %1596 = vmatpush1.bf16.xpose.msra.mxu0 0
    %1597 = vmatprep.subr.bf16.mxu0 0
    %1598 = vmatpush1.bf16.xpose.msra.mxu0 0
    %1599 = vmatprep.mubr.bf16.mxu0 0
    %1600 = vmatmul.mubr.bf16.gmra.mrb[0].mxu0 %v1562
    %v1601 = vpop.f32.mrb[0].mxu0
    %v1602 = vadd.f32 %v285, %v1601
    %v1603 = vpop.f32.mrb[0].mxu0
    %v1604 = vpop.f32.mrb[0].mxu0
    %v1605 = vpop.f32.mrb[0].mxu0
    %1606 = vdwg.mxu0
    %1608 = vrot.lane.b32.xlu0 %v1557, 96
    %v1609 = vpop.permute.xlu0 %1608
    %v1611 = vsel %vm295, %v1557, 0
    %v1614 = vsel %vm295, %v1609, 0
    %1616 = vmatprep.subr.bf16.mxu0 0
    %1617 = vmatpush1.bf16.xpose.msra.mxu0 %v1614
    %1618 = vmatprep.subr.bf16.mxu0 0
    %1619 = vmatpush1.bf16.xpose.msra.mxu0 0
    %1620 = vmatprep.subr.bf16.mxu0 0
    %1621 = vmatpush1.bf16.xpose.msra.mxu0 0
    %1622 = vmatprep.subr.bf16.mxu0 0
    %1623 = vmatpush1.bf16.xpose.msra.mxu0 0
    %1624 = vmatprep.subr.bf16.mxu0 0
    %1625 = vmatpush1.bf16.xpose.msra.mxu0 0
    %1626 = vmatprep.subr.bf16.mxu0 0
    %1627 = vmatpush1.bf16.xpose.msra.mxu0 0
    %1628 = vmatprep.subr.bf16.mxu0 0
    %1629 = vmatpush1.bf16.xpose.msra.mxu0 0
    %1630 = vmatprep.subr.bf16.mxu0 0
    %1631 = vmatpush1.bf16.xpose.msra.mxu0 0
    %1632 = vmatprep.subr.bf16.mxu0 0
    %1633 = vmatpush1.bf16.xpose.msra.mxu0 0
    %1634 = vmatprep.subr.bf16.mxu0 0
    %1635 = vmatpush1.bf16.xpose.msra.mxu0 0
    %1636 = vmatprep.subr.bf16.mxu0 0
    %1637 = vmatpush1.bf16.xpose.msra.mxu0 0
    %1638 = vmatprep.subr.bf16.mxu0 0
    %1639 = vmatpush1.bf16.xpose.msra.mxu0 0
    %1640 = vmatprep.subr.bf16.mxu0 0
    %1641 = vmatpush1.bf16.xpose.msra.mxu0 0
    %1642 = vmatprep.subr.bf16.mxu0 0
    %1643 = vmatpush1.bf16.xpose.msra.mxu0 0
    %1644 = vmatprep.subr.bf16.mxu0 0
    %1645 = vmatpush1.bf16.xpose.msra.mxu0 0
    %1646 = vmatprep.subr.bf16.mxu0 0
    %1647 = vmatpush1.bf16.xpose.msra.mxu0 0
    %1648 = vmatprep.mubr.bf16.mxu0 0
    %1649 = vmatmul.mubr.bf16.gmra.mrb[0].mxu0 %v1611
    %v1650 = vpop.f32.mrb[0].mxu0
    %v1651 = vadd.f32 %v289, %v1650
    %v1652 = vpop.f32.mrb[0].mxu0
    %v1653 = vpop.f32.mrb[0].mxu0
    %v1654 = vpop.f32.mrb[0].mxu0
    %1655 = vdwg.mxu0
    %v1656 = vsel %vm295, %v1602, -inf
    %1657 = vmax.xlane.f32.xlu0 %v1656
    %v1658 = vpop.xlane.xlu0 %1657
    %v1659 = vsel %vm295, %v1651, -inf
    %1660 = vmax.xlane.f32.xlu0 %v1659
    %v1661 = vpop.xlane.xlu0 %1660
    %v1662 = vsub.f32 %v1602, %v1658
    %v1663 = vsub.f32 %v1651, %v1661
    %v1664 = vmul.f32 %v1662, 1.442695
    %v1665 = vpow.pop %v1664
    %v1666 = vmul.f32 %v1663, 1.442695
    %v1667 = vpow.pop %v1666
    %v1668 = vsel %vm295, %v1665, 0.0
    %1669 = vadd.xlane.f32.xlu0 %v1668
    %v1670 = vpop.xlane.xlu0 %1669
    %v1671 = vsel %vm295, %v1667, 0.0
    %1672 = vadd.xlane.f32.xlu0 %v1671
    %v1673 = vpop.xlane.xlu0 %1672
    %v1674 = vrcp.pop %v1670
    %v1675 = vrcp.pop %v1673
    %v1676 = vmul.f32 %v1665, %v1674
    %v1677 = vmul.f32 %v1667, %v1675
    %v1678 = vpack.c.bf16 %v1676, %v1676
    %v1679 = vpack.c.bf16 %v1677, %v1677
    %1680 = vrot.lane.b32.xlu0 %v1556, 64
    %v1681 = vpop.permute.xlu0 %1680
    %v1683 = vsel %vm295, %v1678, 0
    %v1686 = vsel %vm420, %v1681, 0
    %1688 = vmatprep.subr.bf16.mxu0 0
    %1689 = vmatpush1.bf16.msra.mxu0 %v1686
    %1690 = vmatprep.subr.bf16.mxu0 0
    %1691 = vmatpush1.bf16.msra.mxu0 0
    %1692 = vmatprep.subr.bf16.mxu0 0
    %1693 = vmatpush1.bf16.msra.mxu0 0
    %1694 = vmatprep.subr.bf16.mxu0 0
    %1695 = vmatpush1.bf16.msra.mxu0 0
    %1696 = vmatprep.subr.bf16.mxu0 0
    %1697 = vmatpush1.bf16.msra.mxu0 0
    %1698 = vmatprep.subr.bf16.mxu0 0
    %1699 = vmatpush1.bf16.msra.mxu0 0
    %1700 = vmatprep.subr.bf16.mxu0 0
    %1701 = vmatpush1.bf16.msra.mxu0 0
    %1702 = vmatprep.subr.bf16.mxu0 0
    %1703 = vmatpush1.bf16.msra.mxu0 0
    %1704 = vmatprep.subr.bf16.mxu0 0
    %1705 = vmatpush1.bf16.msra.mxu0 0
    %1706 = vmatprep.subr.bf16.mxu0 0
    %1707 = vmatpush1.bf16.msra.mxu0 0
    %1708 = vmatprep.subr.bf16.mxu0 0
    %1709 = vmatpush1.bf16.msra.mxu0 0
    %1710 = vmatprep.subr.bf16.mxu0 0
    %1711 = vmatpush1.bf16.msra.mxu0 0
    %1712 = vmatprep.subr.bf16.mxu0 0
    %1713 = vmatpush1.bf16.msra.mxu0 0
    %1714 = vmatprep.subr.bf16.mxu0 0
    %1715 = vmatpush1.bf16.msra.mxu0 0
    %1716 = vmatprep.subr.bf16.mxu0 0
    %1717 = vmatpush1.bf16.msra.mxu0 0
    %1718 = vmatprep.subr.bf16.mxu0 0
    %1719 = vmatpush1.bf16.msra.mxu0 0
    %1720 = vmatprep.mubr.bf16.mxu0 0
    %1721 = vmatmul.mubr.bf16.gmra.mrb[0].mxu0 %v1683
    %v1722 = vpop.f32.mrb[0].mxu0
    %v1723 = vadd.f32 0.0, %v1722
    %v1724 = vpop.f32.mrb[0].mxu0
    %v1725 = vpop.f32.mrb[0].mxu0
    %v1726 = vpop.f32.mrb[0].mxu0
    %1727 = vdwg.mxu0
    %1728 = vrot.lane.b32.xlu0 %v1557, 64
    %v1729 = vpop.permute.xlu0 %1728
    %v1731 = vsel %vm295, %v1679, 0
    %v1734 = vsel %vm420, %v1729, 0
    %1736 = vmatprep.subr.bf16.mxu0 0
    %1737 = vmatpush1.bf16.msra.mxu0 %v1734
    %1738 = vmatprep.subr.bf16.mxu0 0
    %1739 = vmatpush1.bf16.msra.mxu0 0
    %1740 = vmatprep.subr.bf16.mxu0 0
    %1741 = vmatpush1.bf16.msra.mxu0 0
    %1742 = vmatprep.subr.bf16.mxu0 0
    %1743 = vmatpush1.bf16.msra.mxu0 0
    %1744 = vmatprep.subr.bf16.mxu0 0
    %1745 = vmatpush1.bf16.msra.mxu0 0
    %1746 = vmatprep.subr.bf16.mxu0 0
    %1747 = vmatpush1.bf16.msra.mxu0 0
    %1748 = vmatprep.subr.bf16.mxu0 0
    %1749 = vmatpush1.bf16.msra.mxu0 0
    %1750 = vmatprep.subr.bf16.mxu0 0
    %1751 = vmatpush1.bf16.msra.mxu0 0
    %1752 = vmatprep.subr.bf16.mxu0 0
    %1753 = vmatpush1.bf16.msra.mxu0 0
    %1754 = vmatprep.subr.bf16.mxu0 0
    %1755 = vmatpush1.bf16.msra.mxu0 0
    %1756 = vmatprep.subr.bf16.mxu0 0
    %1757 = vmatpush1.bf16.msra.mxu0 0
    %1758 = vmatprep.subr.bf16.mxu0 0
    %1759 = vmatpush1.bf16.msra.mxu0 0
    %1760 = vmatprep.subr.bf16.mxu0 0
    %1761 = vmatpush1.bf16.msra.mxu0 0
    %1762 = vmatprep.subr.bf16.mxu0 0
    %1763 = vmatpush1.bf16.msra.mxu0 0
    %1764 = vmatprep.subr.bf16.mxu0 0
    %1765 = vmatpush1.bf16.msra.mxu0 0
    %1766 = vmatprep.subr.bf16.mxu0 0
    %1767 = vmatpush1.bf16.msra.mxu0 0
    %1768 = vmatprep.mubr.bf16.mxu0 0
    %1769 = vmatmul.mubr.bf16.gmra.mrb[0].mxu0 %v1731
    %v1770 = vpop.f32.mrb[0].mxu0
    %v1771 = vadd.f32 0.0, %v1770
    %v1772 = vpop.f32.mrb[0].mxu0
    %v1773 = vpop.f32.mrb[0].mxu0
    %v1774 = vpop.f32.mrb[0].mxu0
    %1775 = vdwg.mxu0
    %1776 = vrot.lane.b32.xlu0 %v1556, 120
    %v1777 = vpop.permute.xlu0 %1776
    %1778 = vrot.lane.b32.xlu0 %v1556, 88
    %v1779 = vpop.permute.xlu0 %1778
    %v1781 = vsel %vm295, %v1777, 0
    %v1784 = vsel %vm295, %v1779, 0
    %1786 = vmatprep.subr.bf16.mxu0 0
    %1787 = vmatpush1.bf16.xpose.msra.mxu0 %v1784
    %1788 = vmatprep.subr.bf16.mxu0 0
    %1789 = vmatpush1.bf16.xpose.msra.mxu0 0
    %1790 = vmatprep.subr.bf16.mxu0 0
    %1791 = vmatpush1.bf16.xpose.msra.mxu0 0
    %1792 = vmatprep.subr.bf16.mxu0 0
    %1793 = vmatpush1.bf16.xpose.msra.mxu0 0
    %1794 = vmatprep.subr.bf16.mxu0 0
    %1795 = vmatpush1.bf16.xpose.msra.mxu0 0
    %1796 = vmatprep.subr.bf16.mxu0 0
    %1797 = vmatpush1.bf16.xpose.msra.mxu0 0
    %1798 = vmatprep.subr.bf16.mxu0 0
    %1799 = vmatpush1.bf16.xpose.msra.mxu0 0
    %1800 = vmatprep.subr.bf16.mxu0 0
    %1801 = vmatpush1.bf16.xpose.msra.mxu0 0
    %1802 = vmatprep.subr.bf16.mxu0 0
    %1803 = vmatpush1.bf16.xpose.msra.mxu0 0
    %1804 = vmatprep.subr.bf16.mxu0 0
    %1805 = vmatpush1.bf16.xpose.msra.mxu0 0
    %1806 = vmatprep.subr.bf16.mxu0 0
    %1807 = vmatpush1.bf16.xpose.msra.mxu0 0
    %1808 = vmatprep.subr.bf16.mxu0 0
    %1809 = vmatpush1.bf16.xpose.msra.mxu0 0
    %1810 = vmatprep.subr.bf16.mxu0 0
    %1811 = vmatpush1.bf16.xpose.msra.mxu0 0
    %1812 = vmatprep.subr.bf16.mxu0 0
    %1813 = vmatpush1.bf16.xpose.msra.mxu0 0
    %1814 = vmatprep.subr.bf16.mxu0 0
    %1815 = vmatpush1.bf16.xpose.msra.mxu0 0
    %1816 = vmatprep.subr.bf16.mxu0 0
    %1817 = vmatpush1.bf16.xpose.msra.mxu0 0
    %1818 = vmatprep.mubr.bf16.mxu0 0
    %1819 = vmatmul.mubr.bf16.gmra.mrb[0].mxu0 %v1781
    %v1820 = vpop.f32.mrb[0].mxu0
    %v1821 = vadd.f32 %v285, %v1820
    %v1822 = vpop.f32.mrb[0].mxu0
    %v1823 = vpop.f32.mrb[0].mxu0
    %v1824 = vpop.f32.mrb[0].mxu0
    %1825 = vdwg.mxu0
    %1826 = vrot.lane.b32.xlu0 %v1557, 120
    %v1827 = vpop.permute.xlu0 %1826
    %1828 = vrot.lane.b32.xlu0 %v1557, 88
    %v1829 = vpop.permute.xlu0 %1828
    %v1831 = vsel %vm295, %v1827, 0
    %v1834 = vsel %vm295, %v1829, 0
    %1836 = vmatprep.subr.bf16.mxu0 0
    %1837 = vmatpush1.bf16.xpose.msra.mxu0 %v1834
    %1838 = vmatprep.subr.bf16.mxu0 0
    %1839 = vmatpush1.bf16.xpose.msra.mxu0 0
    %1840 = vmatprep.subr.bf16.mxu0 0
    %1841 = vmatpush1.bf16.xpose.msra.mxu0 0
    %1842 = vmatprep.subr.bf16.mxu0 0
    %1843 = vmatpush1.bf16.xpose.msra.mxu0 0
    %1844 = vmatprep.subr.bf16.mxu0 0
    %1845 = vmatpush1.bf16.xpose.msra.mxu0 0
    %1846 = vmatprep.subr.bf16.mxu0 0
    %1847 = vmatpush1.bf16.xpose.msra.mxu0 0
    %1848 = vmatprep.subr.bf16.mxu0 0
    %1849 = vmatpush1.bf16.xpose.msra.mxu0 0
    %1850 = vmatprep.subr.bf16.mxu0 0
    %1851 = vmatpush1.bf16.xpose.msra.mxu0 0
    %1852 = vmatprep.subr.bf16.mxu0 0
    %1853 = vmatpush1.bf16.xpose.msra.mxu0 0
    %1854 = vmatprep.subr.bf16.mxu0 0
    %1855 = vmatpush1.bf16.xpose.msra.mxu0 0
    %1856 = vmatprep.subr.bf16.mxu0 0
    %1857 = vmatpush1.bf16.xpose.msra.mxu0 0
    %1858 = vmatprep.subr.bf16.mxu0 0
    %1859 = vmatpush1.bf16.xpose.msra.mxu0 0
    %1860 = vmatprep.subr.bf16.mxu0 0
    %1861 = vmatpush1.bf16.xpose.msra.mxu0 0
    %1862 = vmatprep.subr.bf16.mxu0 0
    %1863 = vmatpush1.bf16.xpose.msra.mxu0 0
    %1864 = vmatprep.subr.bf16.mxu0 0
    %1865 = vmatpush1.bf16.xpose.msra.mxu0 0
    %1866 = vmatprep.subr.bf16.mxu0 0
    %1867 = vmatpush1.bf16.xpose.msra.mxu0 0
    %1868 = vmatprep.mubr.bf16.mxu0 0
    %1869 = vmatmul.mubr.bf16.gmra.mrb[0].mxu0 %v1831
    %v1870 = vpop.f32.mrb[0].mxu0
    %v1871 = vadd.f32 %v289, %v1870
    %v1872 = vpop.f32.mrb[0].mxu0
    %v1873 = vpop.f32.mrb[0].mxu0
    %v1874 = vpop.f32.mrb[0].mxu0
    %1875 = vdwg.mxu0
    %v1876 = vsel %vm295, %v1821, -inf
    %1877 = vmax.xlane.f32.xlu0 %v1876
    %v1878 = vpop.xlane.xlu0 %1877
    %v1879 = vsel %vm295, %v1871, -inf
    %1880 = vmax.xlane.f32.xlu0 %v1879
    %v1881 = vpop.xlane.xlu0 %1880
    %v1882 = vsub.f32 %v1821, %v1878
    %v1883 = vsub.f32 %v1871, %v1881
    %v1884 = vmul.f32 %v1882, 1.442695
    %v1885 = vpow.pop %v1884
    %v1886 = vmul.f32 %v1883, 1.442695
    %v1887 = vpow.pop %v1886
    %v1888 = vsel %vm295, %v1885, 0.0
    %1889 = vadd.xlane.f32.xlu0 %v1888
    %v1890 = vpop.xlane.xlu0 %1889
    %v1891 = vsel %vm295, %v1887, 0.0
    %1892 = vadd.xlane.f32.xlu0 %v1891
    %v1893 = vpop.xlane.xlu0 %1892
    %v1894 = vrcp.pop %v1890
    %v1895 = vrcp.pop %v1893
    %v1896 = vmul.f32 %v1885, %v1894
    %v1897 = vmul.f32 %v1887, %v1895
    %v1898 = vpack.c.bf16 %v1896, %v1896
    %v1899 = vpack.c.bf16 %v1897, %v1897
    %1900 = vrot.lane.b32.xlu0 %v1556, 56
    %v1901 = vpop.permute.xlu0 %1900
    %v1903 = vsel %vm295, %v1898, 0
    %v1906 = vsel %vm420, %v1901, 0
    %1908 = vmatprep.subr.bf16.mxu0 0
    %1909 = vmatpush1.bf16.msra.mxu0 %v1906
    %1910 = vmatprep.subr.bf16.mxu0 0
    %1911 = vmatpush1.bf16.msra.mxu0 0
    %1912 = vmatprep.subr.bf16.mxu0 0
    %1913 = vmatpush1.bf16.msra.mxu0 0
    %1914 = vmatprep.subr.bf16.mxu0 0
    %1915 = vmatpush1.bf16.msra.mxu0 0
    %1916 = vmatprep.subr.bf16.mxu0 0
    %1917 = vmatpush1.bf16.msra.mxu0 0
    %1918 = vmatprep.subr.bf16.mxu0 0
    %1919 = vmatpush1.bf16.msra.mxu0 0
    %1920 = vmatprep.subr.bf16.mxu0 0
    %1921 = vmatpush1.bf16.msra.mxu0 0
    %1922 = vmatprep.subr.bf16.mxu0 0
    %1923 = vmatpush1.bf16.msra.mxu0 0
    %1924 = vmatprep.subr.bf16.mxu0 0
    %1925 = vmatpush1.bf16.msra.mxu0 0
    %1926 = vmatprep.subr.bf16.mxu0 0
    %1927 = vmatpush1.bf16.msra.mxu0 0
    %1928 = vmatprep.subr.bf16.mxu0 0
    %1929 = vmatpush1.bf16.msra.mxu0 0
    %1930 = vmatprep.subr.bf16.mxu0 0
    %1931 = vmatpush1.bf16.msra.mxu0 0
    %1932 = vmatprep.subr.bf16.mxu0 0
    %1933 = vmatpush1.bf16.msra.mxu0 0
    %1934 = vmatprep.subr.bf16.mxu0 0
    %1935 = vmatpush1.bf16.msra.mxu0 0
    %1936 = vmatprep.subr.bf16.mxu0 0
    %1937 = vmatpush1.bf16.msra.mxu0 0
    %1938 = vmatprep.subr.bf16.mxu0 0
    %1939 = vmatpush1.bf16.msra.mxu0 0
    %1940 = vmatprep.mubr.bf16.mxu0 0
    %1941 = vmatmul.mubr.bf16.gmra.mrb[0].mxu0 %v1903
    %v1942 = vpop.f32.mrb[0].mxu0
    %v1943 = vadd.f32 0.0, %v1942
    %v1944 = vpop.f32.mrb[0].mxu0
    %v1945 = vpop.f32.mrb[0].mxu0
    %v1946 = vpop.f32.mrb[0].mxu0
    %1947 = vdwg.mxu0
    %1948 = vrot.lane.b32.xlu0 %v1557, 56
    %v1949 = vpop.permute.xlu0 %1948
    %v1951 = vsel %vm295, %v1899, 0
    %v1954 = vsel %vm420, %v1949, 0
    %1956 = vmatprep.subr.bf16.mxu0 0
    %1957 = vmatpush1.bf16.msra.mxu0 %v1954
    %1958 = vmatprep.subr.bf16.mxu0 0
    %1959 = vmatpush1.bf16.msra.mxu0 0
    %1960 = vmatprep.subr.bf16.mxu0 0
    %1961 = vmatpush1.bf16.msra.mxu0 0
    %1962 = vmatprep.subr.bf16.mxu0 0
    %1963 = vmatpush1.bf16.msra.mxu0 0
    %1964 = vmatprep.subr.bf16.mxu0 0
    %1965 = vmatpush1.bf16.msra.mxu0 0
    %1966 = vmatprep.subr.bf16.mxu0 0
    %1967 = vmatpush1.bf16.msra.mxu0 0
    %1968 = vmatprep.subr.bf16.mxu0 0
    %1969 = vmatpush1.bf16.msra.mxu0 0
    %1970 = vmatprep.subr.bf16.mxu0 0
    %1971 = vmatpush1.bf16.msra.mxu0 0
    %1972 = vmatprep.subr.bf16.mxu0 0
    %1973 = vmatpush1.bf16.msra.mxu0 0
    %1974 = vmatprep.subr.bf16.mxu0 0
    %1975 = vmatpush1.bf16.msra.mxu0 0
    %1976 = vmatprep.subr.bf16.mxu0 0
    %1977 = vmatpush1.bf16.msra.mxu0 0
    %1978 = vmatprep.subr.bf16.mxu0 0
    %1979 = vmatpush1.bf16.msra.mxu0 0
    %1980 = vmatprep.subr.bf16.mxu0 0
    %1981 = vmatpush1.bf16.msra.mxu0 0
    %1982 = vmatprep.subr.bf16.mxu0 0
    %1983 = vmatpush1.bf16.msra.mxu0 0
    %1984 = vmatprep.subr.bf16.mxu0 0
    %1985 = vmatpush1.bf16.msra.mxu0 0
    %1986 = vmatprep.subr.bf16.mxu0 0
    %1987 = vmatpush1.bf16.msra.mxu0 0
    %1988 = vmatprep.mubr.bf16.mxu0 0
    %1989 = vmatmul.mubr.bf16.gmra.mrb[0].mxu0 %v1951
    %v1990 = vpop.f32.mrb[0].mxu0
    %v1991 = vadd.f32 0.0, %v1990
    %v1992 = vpop.f32.mrb[0].mxu0
    %v1993 = vpop.f32.mrb[0].mxu0
    %v1994 = vpop.f32.mrb[0].mxu0
    %1995 = vdwg.mxu0
    %1996 = vrot.lane.b32.xlu0 %v1556, 112
    %v1997 = vpop.permute.xlu0 %1996
    %1998 = vrot.lane.b32.xlu0 %v1556, 80
    %v1999 = vpop.permute.xlu0 %1998
    %v2001 = vsel %vm295, %v1997, 0
    %v2004 = vsel %vm295, %v1999, 0
    %2006 = vmatprep.subr.bf16.mxu0 0
    %2007 = vmatpush1.bf16.xpose.msra.mxu0 %v2004
    %2008 = vmatprep.subr.bf16.mxu0 0
    %2009 = vmatpush1.bf16.xpose.msra.mxu0 0
    %2010 = vmatprep.subr.bf16.mxu0 0
    %2011 = vmatpush1.bf16.xpose.msra.mxu0 0
    %2012 = vmatprep.subr.bf16.mxu0 0
    %2013 = vmatpush1.bf16.xpose.msra.mxu0 0
    %2014 = vmatprep.subr.bf16.mxu0 0
    %2015 = vmatpush1.bf16.xpose.msra.mxu0 0
    %2016 = vmatprep.subr.bf16.mxu0 0
    %2017 = vmatpush1.bf16.xpose.msra.mxu0 0
    %2018 = vmatprep.subr.bf16.mxu0 0
    %2019 = vmatpush1.bf16.xpose.msra.mxu0 0
    %2020 = vmatprep.subr.bf16.mxu0 0
    %2021 = vmatpush1.bf16.xpose.msra.mxu0 0
    %2022 = vmatprep.subr.bf16.mxu0 0
    %2023 = vmatpush1.bf16.xpose.msra.mxu0 0
    %2024 = vmatprep.subr.bf16.mxu0 0
    %2025 = vmatpush1.bf16.xpose.msra.mxu0 0
    %2026 = vmatprep.subr.bf16.mxu0 0
    %2027 = vmatpush1.bf16.xpose.msra.mxu0 0
    %2028 = vmatprep.subr.bf16.mxu0 0
    %2029 = vmatpush1.bf16.xpose.msra.mxu0 0
    %2030 = vmatprep.subr.bf16.mxu0 0
    %2031 = vmatpush1.bf16.xpose.msra.mxu0 0
    %2032 = vmatprep.subr.bf16.mxu0 0
    %2033 = vmatpush1.bf16.xpose.msra.mxu0 0
    %2034 = vmatprep.subr.bf16.mxu0 0
    %2035 = vmatpush1.bf16.xpose.msra.mxu0 0
    %2036 = vmatprep.subr.bf16.mxu0 0
    %2037 = vmatpush1.bf16.xpose.msra.mxu0 0
    %2038 = vmatprep.mubr.bf16.mxu0 0
    %2039 = vmatmul.mubr.bf16.gmra.mrb[0].mxu0 %v2001
    %v2040 = vpop.f32.mrb[0].mxu0
    %v2041 = vadd.f32 %v285, %v2040
    %v2042 = vpop.f32.mrb[0].mxu0
    %v2043 = vpop.f32.mrb[0].mxu0
    %v2044 = vpop.f32.mrb[0].mxu0
    %2045 = vdwg.mxu0
    %2046 = vrot.lane.b32.xlu0 %v1557, 112
    %v2047 = vpop.permute.xlu0 %2046
    %2048 = vrot.lane.b32.xlu0 %v1557, 80
    %v2049 = vpop.permute.xlu0 %2048
    %v2051 = vsel %vm295, %v2047, 0
    %v2054 = vsel %vm295, %v2049, 0
    %2056 = vmatprep.subr.bf16.mxu0 0
    %2057 = vmatpush1.bf16.xpose.msra.mxu0 %v2054
    %2058 = vmatprep.subr.bf16.mxu0 0
    %2059 = vmatpush1.bf16.xpose.msra.mxu0 0
    %2060 = vmatprep.subr.bf16.mxu0 0
    %2061 = vmatpush1.bf16.xpose.msra.mxu0 0
    %2062 = vmatprep.subr.bf16.mxu0 0
    %2063 = vmatpush1.bf16.xpose.msra.mxu0 0
    %2064 = vmatprep.subr.bf16.mxu0 0
    %2065 = vmatpush1.bf16.xpose.msra.mxu0 0
    %2066 = vmatprep.subr.bf16.mxu0 0
    %2067 = vmatpush1.bf16.xpose.msra.mxu0 0
    %2068 = vmatprep.subr.bf16.mxu0 0
    %2069 = vmatpush1.bf16.xpose.msra.mxu0 0
    %2070 = vmatprep.subr.bf16.mxu0 0
    %2071 = vmatpush1.bf16.xpose.msra.mxu0 0
    %2072 = vmatprep.subr.bf16.mxu0 0
    %2073 = vmatpush1.bf16.xpose.msra.mxu0 0
    %2074 = vmatprep.subr.bf16.mxu0 0
    %2075 = vmatpush1.bf16.xpose.msra.mxu0 0
    %2076 = vmatprep.subr.bf16.mxu0 0
    %2077 = vmatpush1.bf16.xpose.msra.mxu0 0
    %2078 = vmatprep.subr.bf16.mxu0 0
    %2079 = vmatpush1.bf16.xpose.msra.mxu0 0
    %2080 = vmatprep.subr.bf16.mxu0 0
    %2081 = vmatpush1.bf16.xpose.msra.mxu0 0
    %2082 = vmatprep.subr.bf16.mxu0 0
    %2083 = vmatpush1.bf16.xpose.msra.mxu0 0
    %2084 = vmatprep.subr.bf16.mxu0 0
    %2085 = vmatpush1.bf16.xpose.msra.mxu0 0
    %2086 = vmatprep.subr.bf16.mxu0 0
    %2087 = vmatpush1.bf16.xpose.msra.mxu0 0
    %2088 = vmatprep.mubr.bf16.mxu0 0
    %2089 = vmatmul.mubr.bf16.gmra.mrb[0].mxu0 %v2051
    %v2090 = vpop.f32.mrb[0].mxu0
    %v2091 = vadd.f32 %v289, %v2090
    %v2092 = vpop.f32.mrb[0].mxu0
    %v2093 = vpop.f32.mrb[0].mxu0
    %v2094 = vpop.f32.mrb[0].mxu0
    %2095 = vdwg.mxu0
    %v2096 = vsel %vm295, %v2041, -inf
    %2097 = vmax.xlane.f32.xlu0 %v2096
    %v2098 = vpop.xlane.xlu0 %2097
    %v2099 = vsel %vm295, %v2091, -inf
    %2100 = vmax.xlane.f32.xlu0 %v2099
    %v2101 = vpop.xlane.xlu0 %2100
    %v2102 = vsub.f32 %v2041, %v2098
    %v2103 = vsub.f32 %v2091, %v2101
    %v2104 = vmul.f32 %v2102, 1.442695
    %v2105 = vpow.pop %v2104
    %v2106 = vmul.f32 %v2103, 1.442695
    %v2107 = vpow.pop %v2106
    %v2108 = vsel %vm295, %v2105, 0.0
    %2109 = vadd.xlane.f32.xlu0 %v2108
    %v2110 = vpop.xlane.xlu0 %2109
    %v2111 = vsel %vm295, %v2107, 0.0
    %2112 = vadd.xlane.f32.xlu0 %v2111
    %v2113 = vpop.xlane.xlu0 %2112
    %v2114 = vrcp.pop %v2110
    %v2115 = vrcp.pop %v2113
    %v2116 = vmul.f32 %v2105, %v2114
    %v2117 = vmul.f32 %v2107, %v2115
    %v2118 = vpack.c.bf16 %v2116, %v2116
    %v2119 = vpack.c.bf16 %v2117, %v2117
    %2120 = vrot.lane.b32.xlu0 %v1556, 48
    %v2121 = vpop.permute.xlu0 %2120
    %v2123 = vsel %vm295, %v2118, 0
    %v2126 = vsel %vm420, %v2121, 0
    %2128 = vmatprep.subr.bf16.mxu0 0
    %2129 = vmatpush1.bf16.msra.mxu0 %v2126
    %2130 = vmatprep.subr.bf16.mxu0 0
    %2131 = vmatpush1.bf16.msra.mxu0 0
    %2132 = vmatprep.subr.bf16.mxu0 0
    %2133 = vmatpush1.bf16.msra.mxu0 0
    %2134 = vmatprep.subr.bf16.mxu0 0
    %2135 = vmatpush1.bf16.msra.mxu0 0
    %2136 = vmatprep.subr.bf16.mxu0 0
    %2137 = vmatpush1.bf16.msra.mxu0 0
    %2138 = vmatprep.subr.bf16.mxu0 0
    %2139 = vmatpush1.bf16.msra.mxu0 0
    %2140 = vmatprep.subr.bf16.mxu0 0
    %2141 = vmatpush1.bf16.msra.mxu0 0
    %2142 = vmatprep.subr.bf16.mxu0 0
    %2143 = vmatpush1.bf16.msra.mxu0 0
    %2144 = vmatprep.subr.bf16.mxu0 0
    %2145 = vmatpush1.bf16.msra.mxu0 0
    %2146 = vmatprep.subr.bf16.mxu0 0
    %2147 = vmatpush1.bf16.msra.mxu0 0
    %2148 = vmatprep.subr.bf16.mxu0 0
    %2149 = vmatpush1.bf16.msra.mxu0 0
    %2150 = vmatprep.subr.bf16.mxu0 0
    %2151 = vmatpush1.bf16.msra.mxu0 0
    %2152 = vmatprep.subr.bf16.mxu0 0
    %2153 = vmatpush1.bf16.msra.mxu0 0
    %2154 = vmatprep.subr.bf16.mxu0 0
    %2155 = vmatpush1.bf16.msra.mxu0 0
    %2156 = vmatprep.subr.bf16.mxu0 0
    %2157 = vmatpush1.bf16.msra.mxu0 0
    %2158 = vmatprep.subr.bf16.mxu0 0
    %2159 = vmatpush1.bf16.msra.mxu0 0
    %2160 = vmatprep.mubr.bf16.mxu0 0
    %2161 = vmatmul.mubr.bf16.gmra.mrb[0].mxu0 %v2123
    %v2162 = vpop.f32.mrb[0].mxu0
    %v2163 = vadd.f32 0.0, %v2162
    %v2164 = vpop.f32.mrb[0].mxu0
    %v2165 = vpop.f32.mrb[0].mxu0
    %v2166 = vpop.f32.mrb[0].mxu0
    %2167 = vdwg.mxu0
    %2168 = vrot.lane.b32.xlu0 %v1557, 48
    %v2169 = vpop.permute.xlu0 %2168
    %v2171 = vsel %vm295, %v2119, 0
    %v2174 = vsel %vm420, %v2169, 0
    %2176 = vmatprep.subr.bf16.mxu0 0
    %2177 = vmatpush1.bf16.msra.mxu0 %v2174
    %2178 = vmatprep.subr.bf16.mxu0 0
    %2179 = vmatpush1.bf16.msra.mxu0 0
    %2180 = vmatprep.subr.bf16.mxu0 0
    %2181 = vmatpush1.bf16.msra.mxu0 0
    %2182 = vmatprep.subr.bf16.mxu0 0
    %2183 = vmatpush1.bf16.msra.mxu0 0
    %2184 = vmatprep.subr.bf16.mxu0 0
    %2185 = vmatpush1.bf16.msra.mxu0 0
    %2186 = vmatprep.subr.bf16.mxu0 0
    %2187 = vmatpush1.bf16.msra.mxu0 0
    %2188 = vmatprep.subr.bf16.mxu0 0
    %2189 = vmatpush1.bf16.msra.mxu0 0
    %2190 = vmatprep.subr.bf16.mxu0 0
    %2191 = vmatpush1.bf16.msra.mxu0 0
    %2192 = vmatprep.subr.bf16.mxu0 0
    %2193 = vmatpush1.bf16.msra.mxu0 0
    %2194 = vmatprep.subr.bf16.mxu0 0
    %2195 = vmatpush1.bf16.msra.mxu0 0
    %2196 = vmatprep.subr.bf16.mxu0 0
    %2197 = vmatpush1.bf16.msra.mxu0 0
    %2198 = vmatprep.subr.bf16.mxu0 0
    %2199 = vmatpush1.bf16.msra.mxu0 0
    %2200 = vmatprep.subr.bf16.mxu0 0
    %2201 = vmatpush1.bf16.msra.mxu0 0
    %2202 = vmatprep.subr.bf16.mxu0 0
    %2203 = vmatpush1.bf16.msra.mxu0 0
    %2204 = vmatprep.subr.bf16.mxu0 0
    %2205 = vmatpush1.bf16.msra.mxu0 0
    %2206 = vmatprep.subr.bf16.mxu0 0
    %2207 = vmatpush1.bf16.msra.mxu0 0
    %2208 = vmatprep.mubr.bf16.mxu0 0
    %2209 = vmatmul.mubr.bf16.gmra.mrb[0].mxu0 %v2171
    %v2210 = vpop.f32.mrb[0].mxu0
    %v2211 = vadd.f32 0.0, %v2210
    %v2212 = vpop.f32.mrb[0].mxu0
    %v2213 = vpop.f32.mrb[0].mxu0
    %v2214 = vpop.f32.mrb[0].mxu0
    %2215 = vdwg.mxu0
    %2216 = vrot.lane.b32.xlu0 %v1556, 104
    %v2217 = vpop.permute.xlu0 %2216
    %2218 = vrot.lane.b32.xlu0 %v1556, 72
    %v2219 = vpop.permute.xlu0 %2218
    %v2221 = vsel %vm295, %v2217, 0
    %v2224 = vsel %vm295, %v2219, 0
    %2226 = vmatprep.subr.bf16.mxu0 0
    %2227 = vmatpush1.bf16.xpose.msra.mxu0 %v2224
    %2228 = vmatprep.subr.bf16.mxu0 0
    %2229 = vmatpush1.bf16.xpose.msra.mxu0 0
    %2230 = vmatprep.subr.bf16.mxu0 0
    %2231 = vmatpush1.bf16.xpose.msra.mxu0 0
    %2232 = vmatprep.subr.bf16.mxu0 0
    %2233 = vmatpush1.bf16.xpose.msra.mxu0 0
    %2234 = vmatprep.subr.bf16.mxu0 0
    %2235 = vmatpush1.bf16.xpose.msra.mxu0 0
    %2236 = vmatprep.subr.bf16.mxu0 0
    %2237 = vmatpush1.bf16.xpose.msra.mxu0 0
    %2238 = vmatprep.subr.bf16.mxu0 0
    %2239 = vmatpush1.bf16.xpose.msra.mxu0 0
    %2240 = vmatprep.subr.bf16.mxu0 0
    %2241 = vmatpush1.bf16.xpose.msra.mxu0 0
    %2242 = vmatprep.subr.bf16.mxu0 0
    %2243 = vmatpush1.bf16.xpose.msra.mxu0 0
    %2244 = vmatprep.subr.bf16.mxu0 0
    %2245 = vmatpush1.bf16.xpose.msra.mxu0 0
    %2246 = vmatprep.subr.bf16.mxu0 0
    %2247 = vmatpush1.bf16.xpose.msra.mxu0 0
    %2248 = vmatprep.subr.bf16.mxu0 0
    %2249 = vmatpush1.bf16.xpose.msra.mxu0 0
    %2250 = vmatprep.subr.bf16.mxu0 0
    %2251 = vmatpush1.bf16.xpose.msra.mxu0 0
    %2252 = vmatprep.subr.bf16.mxu0 0
    %2253 = vmatpush1.bf16.xpose.msra.mxu0 0
    %2254 = vmatprep.subr.bf16.mxu0 0
    %2255 = vmatpush1.bf16.xpose.msra.mxu0 0
    %2256 = vmatprep.subr.bf16.mxu0 0
    %2257 = vmatpush1.bf16.xpose.msra.mxu0 0
    %2258 = vmatprep.mubr.bf16.mxu0 0
    %2259 = vmatmul.mubr.bf16.gmra.mrb[0].mxu0 %v2221
    %v2260 = vpop.f32.mrb[0].mxu0
    %v2261 = vadd.f32 %v285, %v2260
    %v2262 = vpop.f32.mrb[0].mxu0
    %v2263 = vpop.f32.mrb[0].mxu0
    %v2264 = vpop.f32.mrb[0].mxu0
    %2265 = vdwg.mxu0
    %2266 = vrot.lane.b32.xlu0 %v1557, 104
    %v2267 = vpop.permute.xlu0 %2266
    %2268 = vrot.lane.b32.xlu0 %v1557, 72
    %v2269 = vpop.permute.xlu0 %2268
    %v2271 = vsel %vm295, %v2267, 0
    %v2274 = vsel %vm295, %v2269, 0
    %2276 = vmatprep.subr.bf16.mxu0 0
    %2277 = vmatpush1.bf16.xpose.msra.mxu0 %v2274
    %2278 = vmatprep.subr.bf16.mxu0 0
    %2279 = vmatpush1.bf16.xpose.msra.mxu0 0
    %2280 = vmatprep.subr.bf16.mxu0 0
    %2281 = vmatpush1.bf16.xpose.msra.mxu0 0
    %2282 = vmatprep.subr.bf16.mxu0 0
    %2283 = vmatpush1.bf16.xpose.msra.mxu0 0
    %2284 = vmatprep.subr.bf16.mxu0 0
    %2285 = vmatpush1.bf16.xpose.msra.mxu0 0
    %2286 = vmatprep.subr.bf16.mxu0 0
    %2287 = vmatpush1.bf16.xpose.msra.mxu0 0
    %2288 = vmatprep.subr.bf16.mxu0 0
    %2289 = vmatpush1.bf16.xpose.msra.mxu0 0
    %2290 = vmatprep.subr.bf16.mxu0 0
    %2291 = vmatpush1.bf16.xpose.msra.mxu0 0
    %2292 = vmatprep.subr.bf16.mxu0 0
    %2293 = vmatpush1.bf16.xpose.msra.mxu0 0
    %2294 = vmatprep.subr.bf16.mxu0 0
    %2295 = vmatpush1.bf16.xpose.msra.mxu0 0
    %2296 = vmatprep.subr.bf16.mxu0 0
    %2297 = vmatpush1.bf16.xpose.msra.mxu0 0
    %2298 = vmatprep.subr.bf16.mxu0 0
    %2299 = vmatpush1.bf16.xpose.msra.mxu0 0
    %2300 = vmatprep.subr.bf16.mxu0 0
    %2301 = vmatpush1.bf16.xpose.msra.mxu0 0
    %2302 = vmatprep.subr.bf16.mxu0 0
    %2303 = vmatpush1.bf16.xpose.msra.mxu0 0
    %2304 = vmatprep.subr.bf16.mxu0 0
    %2305 = vmatpush1.bf16.xpose.msra.mxu0 0
    %2306 = vmatprep.subr.bf16.mxu0 0
    %2307 = vmatpush1.bf16.xpose.msra.mxu0 0
    %2308 = vmatprep.mubr.bf16.mxu0 0
    %2309 = vmatmul.mubr.bf16.gmra.mrb[0].mxu0 %v2271
    %v2310 = vpop.f32.mrb[0].mxu0
    %v2311 = vadd.f32 %v289, %v2310
    %v2312 = vpop.f32.mrb[0].mxu0
    %v2313 = vpop.f32.mrb[0].mxu0
    %v2314 = vpop.f32.mrb[0].mxu0
    %2315 = vdwg.mxu0
    %v2316 = vsel %vm295, %v2261, -inf
    %2317 = vmax.xlane.f32.xlu0 %v2316
    %v2318 = vpop.xlane.xlu0 %2317
    %v2319 = vsel %vm295, %v2311, -inf
    %2320 = vmax.xlane.f32.xlu0 %v2319
    %v2321 = vpop.xlane.xlu0 %2320
    %v2322 = vsub.f32 %v2261, %v2318
    %v2323 = vsub.f32 %v2311, %v2321
    %v2324 = vmul.f32 %v2322, 1.442695
    %v2325 = vpow.pop %v2324
    %v2326 = vmul.f32 %v2323, 1.442695
    %v2327 = vpow.pop %v2326
    %v2328 = vsel %vm295, %v2325, 0.0
    %2329 = vadd.xlane.f32.xlu0 %v2328
    %v2330 = vpop.xlane.xlu0 %2329
    %v2331 = vsel %vm295, %v2327, 0.0
    %2332 = vadd.xlane.f32.xlu0 %v2331
    %v2333 = vpop.xlane.xlu0 %2332
    %v2334 = vrcp.pop %v2330
    %v2335 = vrcp.pop %v2333
    %v2336 = vmul.f32 %v2325, %v2334
    %v2337 = vmul.f32 %v2327, %v2335
    %v2338 = vpack.c.bf16 %v2336, %v2336
    %v2339 = vpack.c.bf16 %v2337, %v2337
    %2340 = vrot.lane.b32.xlu0 %v1556, 40
    %v2341 = vpop.permute.xlu0 %2340
    %v2343 = vsel %vm295, %v2338, 0
    %v2346 = vsel %vm420, %v2341, 0
    %2348 = vmatprep.subr.bf16.mxu0 0
    %2349 = vmatpush1.bf16.msra.mxu0 %v2346
    %2350 = vmatprep.subr.bf16.mxu0 0
    %2351 = vmatpush1.bf16.msra.mxu0 0
    %2352 = vmatprep.subr.bf16.mxu0 0
    %2353 = vmatpush1.bf16.msra.mxu0 0
    %2354 = vmatprep.subr.bf16.mxu0 0
    %2355 = vmatpush1.bf16.msra.mxu0 0
    %2356 = vmatprep.subr.bf16.mxu0 0
    %2357 = vmatpush1.bf16.msra.mxu0 0
    %2358 = vmatprep.subr.bf16.mxu0 0
    %2359 = vmatpush1.bf16.msra.mxu0 0
    %2360 = vmatprep.subr.bf16.mxu0 0
    %2361 = vmatpush1.bf16.msra.mxu0 0
    %2362 = vmatprep.subr.bf16.mxu0 0
    %2363 = vmatpush1.bf16.msra.mxu0 0
    %2364 = vmatprep.subr.bf16.mxu0 0
    %2365 = vmatpush1.bf16.msra.mxu0 0
    %2366 = vmatprep.subr.bf16.mxu0 0
    %2367 = vmatpush1.bf16.msra.mxu0 0
    %2368 = vmatprep.subr.bf16.mxu0 0
    %2369 = vmatpush1.bf16.msra.mxu0 0
    %2370 = vmatprep.subr.bf16.mxu0 0
    %2371 = vmatpush1.bf16.msra.mxu0 0
    %2372 = vmatprep.subr.bf16.mxu0 0
    %2373 = vmatpush1.bf16.msra.mxu0 0
    %2374 = vmatprep.subr.bf16.mxu0 0
    %2375 = vmatpush1.bf16.msra.mxu0 0
    %2376 = vmatprep.subr.bf16.mxu0 0
    %2377 = vmatpush1.bf16.msra.mxu0 0
    %2378 = vmatprep.subr.bf16.mxu0 0
    %2379 = vmatpush1.bf16.msra.mxu0 0
    %2380 = vmatprep.mubr.bf16.mxu0 0
    %2381 = vmatmul.mubr.bf16.gmra.mrb[0].mxu0 %v2343
    %v2382 = vpop.f32.mrb[0].mxu0
    %v2383 = vadd.f32 0.0, %v2382
    %v2384 = vpop.f32.mrb[0].mxu0
    %v2385 = vpop.f32.mrb[0].mxu0
    %v2386 = vpop.f32.mrb[0].mxu0
    %2387 = vdwg.mxu0
    %2388 = vrot.lane.b32.xlu0 %v1557, 40
    %v2389 = vpop.permute.xlu0 %2388
    %v2391 = vsel %vm295, %v2339, 0
    %v2394 = vsel %vm420, %v2389, 0
    %2396 = vmatprep.subr.bf16.mxu0 0
    %2397 = vmatpush1.bf16.msra.mxu0 %v2394
    %2398 = vmatprep.subr.bf16.mxu0 0
    %2399 = vmatpush1.bf16.msra.mxu0 0
    %2400 = vmatprep.subr.bf16.mxu0 0
    %2401 = vmatpush1.bf16.msra.mxu0 0
    %2402 = vmatprep.subr.bf16.mxu0 0
    %2403 = vmatpush1.bf16.msra.mxu0 0
    %2404 = vmatprep.subr.bf16.mxu0 0
    %2405 = vmatpush1.bf16.msra.mxu0 0
    %2406 = vmatprep.subr.bf16.mxu0 0
    %2407 = vmatpush1.bf16.msra.mxu0 0
    %2408 = vmatprep.subr.bf16.mxu0 0
    %2409 = vmatpush1.bf16.msra.mxu0 0
    %2410 = vmatprep.subr.bf16.mxu0 0
    %2411 = vmatpush1.bf16.msra.mxu0 0
    %2412 = vmatprep.subr.bf16.mxu0 0
    %2413 = vmatpush1.bf16.msra.mxu0 0
    %2414 = vmatprep.subr.bf16.mxu0 0
    %2415 = vmatpush1.bf16.msra.mxu0 0
    %2416 = vmatprep.subr.bf16.mxu0 0
    %2417 = vmatpush1.bf16.msra.mxu0 0
    %2418 = vmatprep.subr.bf16.mxu0 0
    %2419 = vmatpush1.bf16.msra.mxu0 0
    %2420 = vmatprep.subr.bf16.mxu0 0
    %2421 = vmatpush1.bf16.msra.mxu0 0
    %2422 = vmatprep.subr.bf16.mxu0 0
    %2423 = vmatpush1.bf16.msra.mxu0 0
    %2424 = vmatprep.subr.bf16.mxu0 0
    %2425 = vmatpush1.bf16.msra.mxu0 0
    %2426 = vmatprep.subr.bf16.mxu0 0
    %2427 = vmatpush1.bf16.msra.mxu0 0
    %2428 = vmatprep.mubr.bf16.mxu0 0
    %2429 = vmatmul.mubr.bf16.gmra.mrb[0].mxu0 %v2391
    %v2430 = vpop.f32.mrb[0].mxu0
    %v2431 = vadd.f32 0.0, %v2430
    %v2432 = vpop.f32.mrb[0].mxu0
    %v2433 = vpop.f32.mrb[0].mxu0
    %v2434 = vpop.f32.mrb[0].mxu0
    %2435 = vdwg.mxu0
    %2438 = vrot.lane.b32.xlu0 %v1943, 8
    %v2439 = vpop.permute.xlu0 %2438
    %2440 = vrot.lane.b32.xlu0 %v1991, 8
    %v2441 = vpop.permute.xlu0 %2440
    %2446 = vrot.lane.b32.xlu0 %v2163, 16
    %v2447 = vpop.permute.xlu0 %2446
    %2448 = vrot.lane.b32.xlu0 %v2211, 16
    %v2449 = vpop.permute.xlu0 %2448
    %2454 = vrot.lane.b32.xlu0 %v2383, 24
    %v2455 = vpop.permute.xlu0 %2454
    %2456 = vrot.lane.b32.xlu0 %v2431, 24
    %v2457 = vpop.permute.xlu0 %2456
    %v2460 = vsel %vm295, %v1723, %v2439
    %v2461 = vsel %vm295, %v1771, %v2441
    %v2462 = vsel %vm1198, %v2460, %v2447
    %v2463 = vsel %vm1198, %v2461, %v2449
    %v2464 = vsel %vm1201, %v2462, %v2455
    %v2465 = vsel %vm1201, %v2463, %v2457
    %v2466 = vpack.c.bf16 %v2465, %v2464
    %v2467 = vlaneseq
    %v2468 = vshrl.u32 %v2467, 7
    %v2469 = vsub.s32 1, %v2468
    %v2470 = vrot.slane %v1494, %v2469
    %2471 = vrot.lane.b32.xlu0 %v1508, 32
    %v2472 = vpop.permute.xlu0 %2471
    %2473 = vrot.lane.b32.xlu0 %v1509, 32
    %v2474 = vpop.permute.xlu0 %2473
    %v2478 = vsel %vm162, %v2466, 0
    %2480 = vmatprep.subr.bf16.mxu0 0
    %2481 = vmatpush1.bf16.msra.mxu0 %v2472
    %2482 = vmatprep.subr.bf16.mxu0 0
    %2483 = vmatpush1.bf16.msra.mxu0 %v2474
    %2484 = vmatprep.subr.bf16.mxu0 0
    %2485 = vmatpush1.bf16.msra.mxu0 0
    %2486 = vmatprep.subr.bf16.mxu0 0
    %2487 = vmatpush1.bf16.msra.mxu0 0
    %2488 = vmatprep.subr.bf16.mxu0 0
    %2489 = vmatpush1.bf16.msra.mxu0 0
    %2490 = vmatprep.subr.bf16.mxu0 0
    %2491 = vmatpush1.bf16.msra.mxu0 0
    %2492 = vmatprep.subr.bf16.mxu0 0
    %2493 = vmatpush1.bf16.msra.mxu0 0
    %2494 = vmatprep.subr.bf16.mxu0 0
    %2495 = vmatpush1.bf16.msra.mxu0 0
    %2496 = vmatprep.subr.bf16.mxu0 0
    %2497 = vmatpush1.bf16.msra.mxu0 0
    %2498 = vmatprep.subr.bf16.mxu0 0
    %2499 = vmatpush1.bf16.msra.mxu0 0
    %2500 = vmatprep.subr.bf16.mxu0 0
    %2501 = vmatpush1.bf16.msra.mxu0 0
    %2502 = vmatprep.subr.bf16.mxu0 0
    %2503 = vmatpush1.bf16.msra.mxu0 0
    %2504 = vmatprep.subr.bf16.mxu0 0
    %2505 = vmatpush1.bf16.msra.mxu0 0
    %2506 = vmatprep.subr.bf16.mxu0 0
    %2507 = vmatpush1.bf16.msra.mxu0 0
    %2508 = vmatprep.subr.bf16.mxu0 0
    %2509 = vmatpush1.bf16.msra.mxu0 0
    %2510 = vmatprep.subr.bf16.mxu0 0
    %2511 = vmatpush1.bf16.msra.mxu0 0
    %2512 = vmatprep.mubr.bf16.mxu0 0
    %2513 = vmatmul.mubr.bf16.gmra.mrb[0].mxu0 %v2478
    %v2514 = vpop.f32.mrb[0].mxu0
    %v2515 = vadd.f32 %v2470, %v2514
    %v2516 = vpop.f32.mrb[0].mxu0
    %v2517 = vpop.f32.mrb[0].mxu0
    %v2518 = vadd.f32 %v2470, %v2517
    %v2519 = vpop.f32.mrb[0].mxu0
    %2520 = vdwg.mxu0
    %v2521 = vadd.f32 %v2515, %v1477
    %v2522 = vadd.f32 %v2518, %v1478
    %v2523 = vsel %vm162, %v2521, 0.0
    %2524 = vadd.xlane.f32.xlu0 %v2523
    %v2525 = vpop.xlane.xlu0 %2524
    %v2526 = vsel %vm162, %v2522, 0.0
    %2527 = vadd.xlane.f32.xlu0 %v2526
    %v2528 = vpop.xlane.xlu0 %2527
    %v2529 = vmul.f32 %v2525, %v169
    %v2530 = vmul.f32 %v2528, %v169
    %v2531 = vsub.f32 %v2521, %v2529
    %v2532 = vsub.f32 %v2522, %v2530
    %v2533 = vmul.f32 %v2531, %v2531
    %v2534 = vmul.f32 %v2532, %v2532
    %v2535 = vsel %vm162, %v2533, 0.0
    %2536 = vadd.xlane.f32.xlu0 %v2535
    %v2537 = vpop.xlane.xlu0 %2536
    %v2538 = vsel %vm162, %v2534, 0.0
    %2539 = vadd.xlane.f32.xlu0 %v2538
    %v2540 = vpop.xlane.xlu0 %2539
    %v2541 = vmul.f32 %v2537, %v169
    %v2542 = vmul.f32 %v2540, %v169
    %v2543 = vadd.f32 %v2541, 1e-12
    %v2544 = vadd.f32 %v2542, 1e-12
    %v2545 = vrsqrt.pop %v2543
    %v2546 = vrsqrt.pop %v2544
    %v2547 = vmul.f32 %v2531, %v2545
    %v2548 = vmul.f32 %v2532, %v2546
    %v2549 = vlaneseq
    %v2550 = vshrl.u32 %v2549, 7
    %v2551 = vsub.s32 2, %v2550
    %v2552 = vrot.slane %v1494, %v2551
    %v2553 = vmul.f32 %v2547, %v2552
    %v2554 = vmul.f32 %v2548, %v2552
    %v2555 = vlaneseq
    %v2556 = vshrl.u32 %v2555, 7
    %v2557 = vsub.s32 3, %v2556
    %v2558 = vrot.slane %v1494, %v2557
    %v2559 = vadd.f32 %v2553, %v2558
    %v2560 = vadd.f32 %v2554, %v2558
    %v2561 = vpack.c.bf16 %v2560, %v2559
    %v2562 = vlaneseq
    %v2563 = vshrl.u32 %v2562, 7
    %v2564 = vsub.s32 4, %v2563
    %v2565 = vrot.slane %v1494, %v2564
    %v2566 = vunpack.c.h.b16 %v1480
    %v2567 = vunpack.c.h.b16 %v1481
    %v2568 = vunpack.c.h.b16 %v1482
    %v2569 = vunpack.c.h.b16 %v1483
    %v2570 = vpack.c.b16 %v2567, %v2566
    %v2571 = vpack.c.b16 %v2569, %v2568
    %v2575 = vsel %vm162, %v2561, 0
    %2577 = vmatprep.subr.bf16.mxu0 0
    %2578 = vmatpush1.bf16.msra.mxu0 %v2570
    %2579 = vmatprep.subr.bf16.mxu0 0
    %2580 = vmatpush1.bf16.msra.mxu0 %v2571
    %2581 = vmatprep.subr.bf16.mxu0 0
    %2582 = vmatpush1.bf16.msra.mxu0 0
    %2583 = vmatprep.subr.bf16.mxu0 0
    %2584 = vmatpush1.bf16.msra.mxu0 0
    %2585 = vmatprep.subr.bf16.mxu0 0
    %2586 = vmatpush1.bf16.msra.mxu0 0
    %2587 = vmatprep.subr.bf16.mxu0 0
    %2588 = vmatpush1.bf16.msra.mxu0 0
    %2589 = vmatprep.subr.bf16.mxu0 0
    %2590 = vmatpush1.bf16.msra.mxu0 0
    %2591 = vmatprep.subr.bf16.mxu0 0
    %2592 = vmatpush1.bf16.msra.mxu0 0
    %2593 = vmatprep.subr.bf16.mxu0 0
    %2594 = vmatpush1.bf16.msra.mxu0 0
    %2595 = vmatprep.subr.bf16.mxu0 0
    %2596 = vmatpush1.bf16.msra.mxu0 0
    %2597 = vmatprep.subr.bf16.mxu0 0
    %2598 = vmatpush1.bf16.msra.mxu0 0
    %2599 = vmatprep.subr.bf16.mxu0 0
    %2600 = vmatpush1.bf16.msra.mxu0 0
    %2601 = vmatprep.subr.bf16.mxu0 0
    %2602 = vmatpush1.bf16.msra.mxu0 0
    %2603 = vmatprep.subr.bf16.mxu0 0
    %2604 = vmatpush1.bf16.msra.mxu0 0
    %2605 = vmatprep.subr.bf16.mxu0 0
    %2606 = vmatpush1.bf16.msra.mxu0 0
    %2607 = vmatprep.subr.bf16.mxu0 0
    %2608 = vmatpush1.bf16.msra.mxu0 0
    %2609 = vmatprep.mubr.bf16.mxu0 0
    %2610 = vmatmul.mubr.bf16.gmra.mrb[0].mxu0 %v2575
    %v2611 = vpop.f32.mrb[0].mxu0
    %v2612 = vadd.f32 %v2565, %v2611
    %v2613 = vpop.f32.mrb[0].mxu0
    %v2614 = vpop.f32.mrb[0].mxu0
    %v2615 = vadd.f32 %v2565, %v2614
    %v2616 = vpop.f32.mrb[0].mxu0
    %2617 = vdwg.mxu0
    %v2618 = vmul.f32 %v2612, 0.5
    %v2619 = vmul.f32 %v2615, 0.5
    %v2620 = vmul.f32 %v2612, 0.70710677
    %v2621 = vmul.f32 %v2615, 0.70710677
    %v2622 = verf.f32.pop %v2620
    %v2623 = verf.f32.pop %v2621
    %v2624 = vadd.f32 %v2622, 1.0
    %v2625 = vadd.f32 %v2623, 1.0
    %v2626 = vmul.f32 %v2618, %v2624
    %v2627 = vmul.f32 %v2619, %v2625
    %v2628 = vpack.c.bf16 %v2627, %v2626
    %v2629 = vlaneseq
    %v2630 = vshrl.u32 %v2629, 7
    %v2631 = vsub.s32 5, %v2630
    %v2632 = vrot.slane %v1494, %v2631
    %v2641 = vunpack.c.l.b16 %v1485
    %v2642 = vunpack.c.l.b16 %v1486
    %v2643 = vunpack.c.l.b16 %v1487
    %v2644 = vunpack.c.l.b16 %v1488
    %v2645 = vunpack.c.l.b16 %v1489
    %v2646 = vunpack.c.l.b16 %v1490
    %v2647 = vunpack.c.l.b16 %v1491
    %v2648 = vunpack.c.l.b16 %v1492
    %v2649 = vpack.c.b16 %v2642, %v2641
    %v2650 = vpack.c.b16 %v2644, %v2643
    %v2651 = vpack.c.b16 %v2646, %v2645
    %v2652 = vpack.c.b16 %v2648, %v2647
    %v2658 = vsel %vm75, %v2628, 0
    %2660 = vmatprep.subr.bf16.mxu0 0
    %2661 = vmatpush1.bf16.msra.mxu0 %v2649
    %2662 = vmatprep.subr.bf16.mxu0 0
    %2663 = vmatpush1.bf16.msra.mxu0 %v2650
    %2664 = vmatprep.subr.bf16.mxu0 0
    %2665 = vmatpush1.bf16.msra.mxu0 %v2651
    %2666 = vmatprep.subr.bf16.mxu0 0
    %2667 = vmatpush1.bf16.msra.mxu0 %v2652
    %2668 = vmatprep.subr.bf16.mxu0 0
    %2669 = vmatpush1.bf16.msra.mxu0 0
    %2670 = vmatprep.subr.bf16.mxu0 0
    %2671 = vmatpush1.bf16.msra.mxu0 0
    %2672 = vmatprep.subr.bf16.mxu0 0
    %2673 = vmatpush1.bf16.msra.mxu0 0
    %2674 = vmatprep.subr.bf16.mxu0 0
    %2675 = vmatpush1.bf16.msra.mxu0 0
    %2676 = vmatprep.subr.bf16.mxu0 0
    %2677 = vmatpush1.bf16.msra.mxu0 0
    %2678 = vmatprep.subr.bf16.mxu0 0
    %2679 = vmatpush1.bf16.msra.mxu0 0
    %2680 = vmatprep.subr.bf16.mxu0 0
    %2681 = vmatpush1.bf16.msra.mxu0 0
    %2682 = vmatprep.subr.bf16.mxu0 0
    %2683 = vmatpush1.bf16.msra.mxu0 0
    %2684 = vmatprep.subr.bf16.mxu0 0
    %2685 = vmatpush1.bf16.msra.mxu0 0
    %2686 = vmatprep.subr.bf16.mxu0 0
    %2687 = vmatpush1.bf16.msra.mxu0 0
    %2688 = vmatprep.subr.bf16.mxu0 0
    %2689 = vmatpush1.bf16.msra.mxu0 0
    %2690 = vmatprep.subr.bf16.mxu0 0
    %2691 = vmatpush1.bf16.msra.mxu0 0
    %2692 = vmatprep.mubr.bf16.mxu0 0
    %2693 = vmatmul.mubr.bf16.gmra.mrb[0].mxu0 %v2658
    %v2694 = vpop.f32.mrb[0].mxu0
    %v2695 = vadd.f32 %v2632, %v2694
    %v2696 = vpop.f32.mrb[0].mxu0
    %v2697 = vpop.f32.mrb[0].mxu0
    %v2698 = vadd.f32 %v2632, %v2697
    %v2699 = vpop.f32.mrb[0].mxu0
    %2700 = vdwg.mxu0
    %v2701 = vadd.f32 %v2695, %v2559
    %v2702 = vadd.f32 %v2698, %v2560
    %v2703 = vsel %vm162, %v2701, 0.0
    %2704 = vadd.xlane.f32.xlu0 %v2703
    %v2705 = vpop.xlane.xlu0 %2704
    %v2706 = vsel %vm162, %v2702, 0.0
    %2707 = vadd.xlane.f32.xlu0 %v2706
    %v2708 = vpop.xlane.xlu0 %2707
    %v2709 = vmul.f32 %v2705, %v169
    %v2710 = vmul.f32 %v2708, %v169
    %v2711 = vsub.f32 %v2701, %v2709
    %v2712 = vsub.f32 %v2702, %v2710
    %v2713 = vmul.f32 %v2711, %v2711
    %v2714 = vmul.f32 %v2712, %v2712
    %v2715 = vsel %vm162, %v2713, 0.0
    %2716 = vadd.xlane.f32.xlu0 %v2715
    %v2717 = vpop.xlane.xlu0 %2716
    %v2718 = vsel %vm162, %v2714, 0.0
    %2719 = vadd.xlane.f32.xlu0 %v2718
    %v2720 = vpop.xlane.xlu0 %2719
    %v2721 = vmul.f32 %v2717, %v169
    %v2722 = vmul.f32 %v2720, %v169
    %v2723 = vadd.f32 %v2721, 1e-12
    %v2724 = vadd.f32 %v2722, 1e-12
    %v2725 = vrsqrt.pop %v2723
    %v2726 = vrsqrt.pop %v2724
    %v2727 = vmul.f32 %v2711, %v2725
    %v2728 = vmul.f32 %v2712, %v2726
    %v2729 = vlaneseq
    %v2730 = vshrl.u32 %v2729, 7
    %v2731 = vsub.s32 6, %v2730
    %v2732 = vrot.slane %v1494, %v2731
    %v2733 = vmul.f32 %v2727, %v2732
    %v2734 = vmul.f32 %v2728, %v2732
    %v2735 = vlaneseq
    %v2736 = vshrl.u32 %v2735, 7
    %v2737 = vsub.s32 7, %v2736
    %v2738 = vrot.slane %v1494, %v2737
    %v2739 = vadd.f32 %v2733, %v2738
    %v2740 = vadd.f32 %v2734, %v2738
    %v2742 = vrot.slane %v2740, 7
    %vm2744 = vcmask 1040384
    %v2745 = vsel %vm2744, %v2739, %v2742
    %v2746 = vld [vmem:[%s9] sm:$0x7f]
    %v2747 = vld [vmem:[%s9 + $0x8] sm:$0x7f]
    %v2748 = vld [vmem:[%s9 + $0x10] sm:$0x7f]
    %v2749 = vld [vmem:[%s9 + $0x18] sm:$0x7f]
    %v2750 = vpack.c.bf16 %v2745, %v2745
    %v2751 = vld [vmem:[%s6] sm:$0xff]
    %v2752 = vld [vmem:[%s6 + $0x8] sm:$0xff]
    %v2753 = vld [vmem:[%s6 + $0x10] sm:$0xff]
    %v2754 = vld [vmem:[%s6 + $0x18] sm:$0xff]
    %v2755 = vld [vmem:[%s6 + $0x20] sm:$0xff]
    %v2756 = vld [vmem:[%s6 + $0x28] sm:$0xff]
    %v2757 = vld [vmem:[%s6 + $0x30] sm:$0xff]
    %v2758 = vld [vmem:[%s6 + $0x38] sm:$0xff]
    %v2759 = vlaneseq
    %v2760 = vshrl.u32 %v2759, 7
    %v2761 = vsub.s32 0, %v2760
    %v2762 = vrot.slane %v2746, %v2761
    %v2763 = vlaneseq
    %v2764 = vshrl.u32 %v2763, 7
    %v2765 = vsub.s32 0, %v2764
    %v2766 = vrot.slane %v2747, %v2765
    %v2767 = vlaneseq
    %v2768 = vshrl.u32 %v2767, 7
    %v2769 = vsub.s32 0, %v2768
    %v2770 = vrot.slane %v2748, %v2769
    %v2771 = vlaneseq
    %v2772 = vshrl.u32 %v2771, 7
    %v2773 = vsub.s32 0, %v2772
    %v2774 = vrot.slane %v2749, %v2773
    %v2783 = vunpack.c.l.b16 %v2751
    %v2784 = vunpack.c.h.b16 %v2751
    %v2785 = vunpack.c.l.b16 %v2752
    %v2786 = vunpack.c.h.b16 %v2752
    %v2787 = vunpack.c.l.b16 %v2753
    %v2788 = vunpack.c.h.b16 %v2753
    %v2789 = vunpack.c.l.b16 %v2754
    %v2790 = vunpack.c.h.b16 %v2754
    %v2791 = vunpack.c.l.b16 %v2755
    %v2792 = vunpack.c.h.b16 %v2755
    %v2793 = vunpack.c.l.b16 %v2756
    %v2794 = vunpack.c.h.b16 %v2756
    %v2795 = vunpack.c.l.b16 %v2757
    %v2796 = vunpack.c.h.b16 %v2757
    %v2797 = vunpack.c.l.b16 %v2758
    %v2798 = vunpack.c.h.b16 %v2758
    %v2799 = vpack.c.b16 %v2787, %v2783
    %v2800 = vpack.c.b16 %v2788, %v2784
    %v2801 = vpack.c.b16 %v2789, %v2785
    %v2802 = vpack.c.b16 %v2790, %v2786
    %v2803 = vpack.c.b16 %v2795, %v2791
    %v2804 = vpack.c.b16 %v2796, %v2792
    %v2805 = vpack.c.b16 %v2797, %v2793
    %v2806 = vpack.c.b16 %v2798, %v2794
    %v2816 = vsel %vm162, %v2750, 0
    %2818 = vmatprep.subr.bf16.mxu0 %v2800
    %2819 = vmatpush1.bf16.msra.mxu0 %v2799
    %2820 = vmatprep.subr.bf16.mxu0 %v2804
    %2821 = vmatpush1.bf16.msra.mxu0 %v2803
    %2822 = vmatprep.subr.bf16.mxu0 0
    %2823 = vmatpush1.bf16.msra.mxu0 0
    %2824 = vmatprep.subr.bf16.mxu0 0
    %2825 = vmatpush1.bf16.msra.mxu0 0
    %2826 = vmatprep.subr.bf16.mxu0 0
    %2827 = vmatpush1.bf16.msra.mxu0 0
    %2828 = vmatprep.subr.bf16.mxu0 0
    %2829 = vmatpush1.bf16.msra.mxu0 0
    %2830 = vmatprep.subr.bf16.mxu0 0
    %2831 = vmatpush1.bf16.msra.mxu0 0
    %2832 = vmatprep.subr.bf16.mxu0 0
    %2833 = vmatpush1.bf16.msra.mxu0 0
    %2834 = vmatprep.subr.bf16.mxu0 0
    %2835 = vmatpush1.bf16.msra.mxu0 0
    %2836 = vmatprep.subr.bf16.mxu0 0
    %2837 = vmatpush1.bf16.msra.mxu0 0
    %2838 = vmatprep.subr.bf16.mxu0 0
    %2839 = vmatpush1.bf16.msra.mxu0 0
    %2840 = vmatprep.subr.bf16.mxu0 0
    %2841 = vmatpush1.bf16.msra.mxu0 0
    %2842 = vmatprep.subr.bf16.mxu0 0
    %2843 = vmatpush1.bf16.msra.mxu0 0
    %2844 = vmatprep.subr.bf16.mxu0 0
    %2845 = vmatpush1.bf16.msra.mxu0 0
    %2846 = vmatprep.subr.bf16.mxu0 0
    %2847 = vmatpush1.bf16.msra.mxu0 0
    %2848 = vmatprep.subr.bf16.mxu0 0
    %2849 = vmatpush1.bf16.msra.mxu0 0
    %2850 = vmatprep.mubr.bf16.mxu0 0
    %2851 = vmatmul.mubr.bf16.gmra.mrb[0].mxu0 %v2816
    %v2852 = vpop.f32.mrb[0].mxu0
    %v2853 = vadd.f32 %v2762, %v2852
    %v2854 = vpop.f32.mrb[0].mxu0
    %v2855 = vadd.f32 %v2766, %v2854
    %v2856 = vpop.f32.mrb[0].mxu0
    %v2857 = vpop.f32.mrb[0].mxu0
    %2858 = vdwg.mxu0
    %2859 = vmatprep.subr.bf16.mxu0 %v2802
    %2860 = vmatpush1.bf16.msra.mxu0 %v2801
    %2861 = vmatprep.subr.bf16.mxu0 %v2806
    %2862 = vmatpush1.bf16.msra.mxu0 %v2805
    %2863 = vmatprep.subr.bf16.mxu0 0
    %2864 = vmatpush1.bf16.msra.mxu0 0
    %2865 = vmatprep.subr.bf16.mxu0 0
    %2866 = vmatpush1.bf16.msra.mxu0 0
    %2867 = vmatprep.subr.bf16.mxu0 0
    %2868 = vmatpush1.bf16.msra.mxu0 0
    %2869 = vmatprep.subr.bf16.mxu0 0
    %2870 = vmatpush1.bf16.msra.mxu0 0
    %2871 = vmatprep.subr.bf16.mxu0 0
    %2872 = vmatpush1.bf16.msra.mxu0 0
    %2873 = vmatprep.subr.bf16.mxu0 0
    %2874 = vmatpush1.bf16.msra.mxu0 0
    %2875 = vmatprep.subr.bf16.mxu0 0
    %2876 = vmatpush1.bf16.msra.mxu0 0
    %2877 = vmatprep.subr.bf16.mxu0 0
    %2878 = vmatpush1.bf16.msra.mxu0 0
    %2879 = vmatprep.subr.bf16.mxu0 0
    %2880 = vmatpush1.bf16.msra.mxu0 0
    %2881 = vmatprep.subr.bf16.mxu0 0
    %2882 = vmatpush1.bf16.msra.mxu0 0
    %2883 = vmatprep.subr.bf16.mxu0 0
    %2884 = vmatpush1.bf16.msra.mxu0 0
    %2885 = vmatprep.subr.bf16.mxu0 0
    %2886 = vmatpush1.bf16.msra.mxu0 0
    %2887 = vmatprep.subr.bf16.mxu0 0
    %2888 = vmatpush1.bf16.msra.mxu0 0
    %2889 = vmatprep.subr.bf16.mxu0 0
    %2890 = vmatpush1.bf16.msra.mxu0 0
    %2891 = vmatprep.mubr.bf16.mxu0 0
    %2892 = vmatmul.mubr.bf16.gmra.mrb[0].mxu0 %v2816
    %v2893 = vpop.f32.mrb[0].mxu0
    %v2894 = vadd.f32 %v2770, %v2893
    %v2895 = vpop.f32.mrb[0].mxu0
    %v2896 = vadd.f32 %v2774, %v2895
    %v2897 = vpop.f32.mrb[0].mxu0
    %v2898 = vpop.f32.mrb[0].mxu0
    %2899 = vdwg.mxu0
    %v2900 = vmul.f32 %v2853, 0.5
    %v2901 = vmul.f32 %v2855, 0.5
    %v2902 = vmul.f32 %v2894, 0.5
    %v2903 = vmul.f32 %v2896, 0.5
    %v2904 = vmul.f32 %v2853, 0.70710677
    %v2905 = vmul.f32 %v2855, 0.70710677
    %v2906 = vmul.f32 %v2894, 0.70710677
    %v2907 = vmul.f32 %v2896, 0.70710677
    %v2908 = verf.f32.pop %v2904
    %v2909 = verf.f32.pop %v2905
    %v2910 = verf.f32.pop %v2906
    %v2911 = verf.f32.pop %v2907
    %v2912 = vadd.f32 %v2908, 1.0
    %v2913 = vadd.f32 %v2909, 1.0
    %v2914 = vadd.f32 %v2910, 1.0
    %v2915 = vadd.f32 %v2911, 1.0
    %v2916 = vmul.f32 %v2900, %v2912
    %v2917 = vmul.f32 %v2901, %v2913
    %v2918 = vmul.f32 %v2902, %v2914
    %v2919 = vmul.f32 %v2903, %v2915
    %vm2920 = vcmask 1041408
    %v2921 = vsel %vm2920, %v2916, 0.0
    %v2922 = vsel %vm2920, %v2917, 0.0
    %v2923 = vadd.f32 %v2921, %v2922
    %v2924 = vsel %vm2920, %v2918, 0.0
    %v2925 = vadd.f32 %v2923, %v2924
    %v2926 = vsel %vm2920, %v2919, 0.0
    %v2927 = vadd.f32 %v2925, %v2926
    %2928 = vadd.xlane.f32.xlu0 %v2927
    %v2929 = vpop.xlane.xlu0 %2928
    %v2930 = vrcp.pop 512.0
    %v2931 = vmul.f32 %v2929, %v2930
    %v2932 = vsub.f32 %v2916, %v2931
    %v2933 = vsub.f32 %v2917, %v2931
    %v2934 = vsub.f32 %v2918, %v2931
    %v2935 = vsub.f32 %v2919, %v2931
    %v2936 = vmul.f32 %v2932, %v2932
    %v2937 = vmul.f32 %v2933, %v2933
    %v2938 = vmul.f32 %v2934, %v2934
    %v2939 = vmul.f32 %v2935, %v2935
    %v2940 = vsel %vm2920, %v2936, 0.0
    %v2941 = vsel %vm2920, %v2937, 0.0
    %v2942 = vadd.f32 %v2940, %v2941
    %v2943 = vsel %vm2920, %v2938, 0.0
    %v2944 = vadd.f32 %v2942, %v2943
    %v2945 = vsel %vm2920, %v2939, 0.0
    %v2946 = vadd.f32 %v2944, %v2945
    %2947 = vadd.xlane.f32.xlu0 %v2946
    %v2948 = vpop.xlane.xlu0 %2947
    %v2949 = vmul.f32 %v2948, %v2930
    %v2950 = vadd.f32 %v2949, 1e-05
    %v2951 = vrsqrt.pop %v2950
    %v2952 = vmul.f32 %v2932, %v2951
    %v2953 = vmul.f32 %v2933, %v2951
    %v2954 = vmul.f32 %v2934, %v2951
    %v2955 = vmul.f32 %v2935, %v2951
    %v2956 = vlaneseq
    %v2957 = vshrl.u32 %v2956, 7
    %v2958 = vsub.s32 1, %v2957
    %v2959 = vrot.slane %v2746, %v2958
    %v2960 = vlaneseq
    %v2961 = vshrl.u32 %v2960, 7
    %v2962 = vsub.s32 1, %v2961
    %v2963 = vrot.slane %v2747, %v2962
    %v2964 = vlaneseq
    %v2965 = vshrl.u32 %v2964, 7
    %v2966 = vsub.s32 1, %v2965
    %v2967 = vrot.slane %v2748, %v2966
    %v2968 = vlaneseq
    %v2969 = vshrl.u32 %v2968, 7
    %v2970 = vsub.s32 1, %v2969
    %v2971 = vrot.slane %v2749, %v2970
    %v2972 = vmul.f32 %v2952, %v2959
    %v2973 = vmul.f32 %v2953, %v2963
    %v2974 = vmul.f32 %v2954, %v2967
    %v2975 = vmul.f32 %v2955, %v2971
    %v2976 = vlaneseq
    %v2977 = vshrl.u32 %v2976, 7
    %v2978 = vsub.s32 2, %v2977
    %v2979 = vrot.slane %v2746, %v2978
    %v2980 = vlaneseq
    %v2981 = vshrl.u32 %v2980, 7
    %v2982 = vsub.s32 2, %v2981
    %v2983 = vrot.slane %v2747, %v2982
    %v2984 = vlaneseq
    %v2985 = vshrl.u32 %v2984, 7
    %v2986 = vsub.s32 2, %v2985
    %v2987 = vrot.slane %v2748, %v2986
    %v2988 = vlaneseq
    %v2989 = vshrl.u32 %v2988, 7
    %v2990 = vsub.s32 2, %v2989
    %v2991 = vrot.slane %v2749, %v2990
    %v2992 = vadd.f32 %v2972, %v2979
    %v2993 = vadd.f32 %v2973, %v2983
    %v2994 = vadd.f32 %v2974, %v2987
    %v2995 = vadd.f32 %v2975, %v2991
    %v2996 = vpack.c.bf16 %v2992, %v2992
    %v2997 = vpack.c.bf16 %v2993, %v2993
    %v2998 = vpack.c.bf16 %v2994, %v2994
    %v2999 = vpack.c.bf16 %v2995, %v2995
    %v3000 = vld [vmem:[#allocation2] sm:$0xff]
    %v3001 = vld [vmem:[#allocation2 + $0x8] sm:$0xff]
    %v3002 = vld [vmem:[#allocation2 + $0x10] sm:$0xff]
    %v3003 = vld [vmem:[#allocation2 + $0x18] sm:$0xff]
    %v3004 = vld [vmem:[#allocation2 + $0x20] sm:$0xff]
    %v3005 = vld [vmem:[#allocation2 + $0x28] sm:$0xff]
    %v3006 = vld [vmem:[#allocation2 + $0x30] sm:$0xff]
    %v3007 = vld [vmem:[#allocation2 + $0x38] sm:$0xff]
    %v3008 = vld [vmem:[#allocation2 + $0x40] sm:$0xff]
    %v3009 = vld [vmem:[#allocation2 + $0x48] sm:$0xff]
    %v3010 = vld [vmem:[#allocation2 + $0x50] sm:$0xff]
    %v3011 = vld [vmem:[#allocation2 + $0x58] sm:$0xff]
    %v3012 = vld [vmem:[#allocation2 + $0x60] sm:$0xff]
    %v3013 = vld [vmem:[#allocation2 + $0x68] sm:$0xff]
    %v3014 = vld [vmem:[#allocation2 + $0x70] sm:$0xff]
    %v3015 = vld [vmem:[#allocation2 + $0x78] sm:$0xff]
    %v3016 = vld [vmem:[#allocation2 + $0x80] sm:$0xff]
    %v3017 = vld [vmem:[#allocation2 + $0x88] sm:$0xff]
    %v3018 = vld [vmem:[#allocation2 + $0x90] sm:$0xff]
    %v3019 = vld [vmem:[#allocation2 + $0x98] sm:$0xff]
    %v3020 = vld [vmem:[#allocation2 + $0xa0] sm:$0xff]
    %v3021 = vld [vmem:[#allocation2 + $0xa8] sm:$0xff]
    %v3022 = vld [vmem:[#allocation2 + $0xb0] sm:$0xff]
    %v3023 = vld [vmem:[#allocation2 + $0xb8] sm:$0xff]
    %v3024 = vld [vmem:[#allocation2 + $0xc0] sm:$0xff]
    %v3025 = vld [vmem:[#allocation2 + $0xc8] sm:$0xff]
    %v3026 = vld [vmem:[#allocation2 + $0xd0] sm:$0xff]
    %v3027 = vld [vmem:[#allocation2 + $0xd8] sm:$0xff]
    %v3028 = vld [vmem:[#allocation2 + $0xe0] sm:$0xff]
    %v3029 = vld [vmem:[#allocation2 + $0xe8] sm:$0xff]
    %v3030 = vld [vmem:[#allocation2 + $0xf0] sm:$0xff]
    %v3031 = vld [vmem:[#allocation2 + $0xf8] sm:$0xff]
    %v3032 = vld [vmem:[#allocation2 + $0x100] sm:$0xff]
    %v3033 = vld [vmem:[#allocation2 + $0x108] sm:$0xff]
    %v3034 = vld [vmem:[#allocation2 + $0x110] sm:$0xff]
    %v3035 = vld [vmem:[#allocation2 + $0x118] sm:$0xff]
    %v3036 = vld [vmem:[#allocation2 + $0x120] sm:$0xff]
    %v3037 = vld [vmem:[#allocation2 + $0x128] sm:$0xff]
    %v3038 = vld [vmem:[#allocation2 + $0x130] sm:$0xff]
    %v3039 = vld [vmem:[#allocation2 + $0x138] sm:$0xff]
    %v3040 = vld [vmem:[#allocation2 + $0x140] sm:$0xff]
    %v3041 = vld [vmem:[#allocation2 + $0x148] sm:$0xff]
    %v3042 = vld [vmem:[#allocation2 + $0x150] sm:$0xff]
    %v3043 = vld [vmem:[#allocation2 + $0x158] sm:$0xff]
    %v3044 = vld [vmem:[#allocation2 + $0x160] sm:$0xff]
    %v3045 = vld [vmem:[#allocation2 + $0x168] sm:$0xff]
    %v3046 = vld [vmem:[#allocation2 + $0x170] sm:$0xff]
    %v3047 = vld [vmem:[#allocation2 + $0x178] sm:$0xff]
    %v3048 = vld [vmem:[#allocation2 + $0x180] sm:$0xff]
    %v3049 = vld [vmem:[#allocation2 + $0x188] sm:$0xff]
    %v3050 = vld [vmem:[#allocation2 + $0x190] sm:$0xff]
    %v3051 = vld [vmem:[#allocation2 + $0x198] sm:$0xff]
    %v3052 = vld [vmem:[#allocation2 + $0x1a0] sm:$0xff]
    %v3053 = vld [vmem:[#allocation2 + $0x1a8] sm:$0xff]
    %v3054 = vld [vmem:[#allocation2 + $0x1b0] sm:$0xff]
    %v3055 = vld [vmem:[#allocation2 + $0x1b8] sm:$0xff]
    %v3056 = vld [vmem:[#allocation2 + $0x1c0] sm:$0xff]
    %v3057 = vld [vmem:[#allocation2 + $0x1c8] sm:$0xff]
    %v3058 = vld [vmem:[#allocation2 + $0x1d0] sm:$0xff]
    %v3059 = vld [vmem:[#allocation2 + $0x1d8] sm:$0xff]
    %v3060 = vld [vmem:[#allocation2 + $0x1e0] sm:$0xff]
    %v3061 = vld [vmem:[#allocation2 + $0x1e8] sm:$0xff]
    %v3062 = vld [vmem:[#allocation2 + $0x1f0] sm:$0xff]
    %v3063 = vld [vmem:[#allocation2 + $0x1f8] sm:$0xff]
    %v3064 = vlaneseq
    %v3065 = vshrl.u32 %v3064, 7
    %v3066 = vsub.s32 3, %v3065
    %v3067 = vrot.slane %v2746, %v3066
    %v3068 = vlaneseq
    %v3069 = vshrl.u32 %v3068, 7
    %v3070 = vsub.s32 3, %v3069
    %v3071 = vrot.slane %v2747, %v3070
    %v3136 = vunpack.c.l.b16 %v3000
    %v3137 = vunpack.c.h.b16 %v3000
    %v3138 = vunpack.c.l.b16 %v3001
    %v3139 = vunpack.c.h.b16 %v3001
    %v3140 = vunpack.c.l.b16 %v3002
    %v3141 = vunpack.c.h.b16 %v3002
    %v3142 = vunpack.c.l.b16 %v3003
    %v3143 = vunpack.c.h.b16 %v3003
    %v3144 = vunpack.c.l.b16 %v3004
    %v3145 = vunpack.c.h.b16 %v3004
    %v3146 = vunpack.c.l.b16 %v3005
    %v3147 = vunpack.c.h.b16 %v3005
    %v3148 = vunpack.c.l.b16 %v3006
    %v3149 = vunpack.c.h.b16 %v3006
    %v3150 = vunpack.c.l.b16 %v3007
    %v3151 = vunpack.c.h.b16 %v3007
    %v3152 = vunpack.c.l.b16 %v3008
    %v3153 = vunpack.c.h.b16 %v3008
    %v3154 = vunpack.c.l.b16 %v3009
    %v3155 = vunpack.c.h.b16 %v3009
    %v3156 = vunpack.c.l.b16 %v3010
    %v3157 = vunpack.c.h.b16 %v3010
    %v3158 = vunpack.c.l.b16 %v3011
    %v3159 = vunpack.c.h.b16 %v3011
    %v3160 = vunpack.c.l.b16 %v3012
    %v3161 = vunpack.c.h.b16 %v3012
    %v3162 = vunpack.c.l.b16 %v3013
    %v3163 = vunpack.c.h.b16 %v3013
    %v3164 = vunpack.c.l.b16 %v3014
    %v3165 = vunpack.c.h.b16 %v3014
    %v3166 = vunpack.c.l.b16 %v3015
    %v3167 = vunpack.c.h.b16 %v3015
    %v3168 = vunpack.c.l.b16 %v3016
    %v3169 = vunpack.c.h.b16 %v3016
    %v3170 = vunpack.c.l.b16 %v3017
    %v3171 = vunpack.c.h.b16 %v3017
    %v3172 = vunpack.c.l.b16 %v3018
    %v3173 = vunpack.c.h.b16 %v3018
    %v3174 = vunpack.c.l.b16 %v3019
    %v3175 = vunpack.c.h.b16 %v3019
    %v3176 = vunpack.c.l.b16 %v3020
    %v3177 = vunpack.c.h.b16 %v3020
    %v3178 = vunpack.c.l.b16 %v3021
    %v3179 = vunpack.c.h.b16 %v3021
    %v3180 = vunpack.c.l.b16 %v3022
    %v3181 = vunpack.c.h.b16 %v3022
    %v3182 = vunpack.c.l.b16 %v3023
    %v3183 = vunpack.c.h.b16 %v3023
    %v3184 = vunpack.c.l.b16 %v3024
    %v3185 = vunpack.c.h.b16 %v3024
    %v3186 = vunpack.c.l.b16 %v3025
    %v3187 = vunpack.c.h.b16 %v3025
    %v3188 = vunpack.c.l.b16 %v3026
    %v3189 = vunpack.c.h.b16 %v3026
    %v3190 = vunpack.c.l.b16 %v3027
    %v3191 = vunpack.c.h.b16 %v3027
    %v3192 = vunpack.c.l.b16 %v3028
    %v3193 = vunpack.c.h.b16 %v3028
    %v3194 = vunpack.c.l.b16 %v3029
    %v3195 = vunpack.c.h.b16 %v3029
    %v3196 = vunpack.c.l.b16 %v3030
    %v3197 = vunpack.c.h.b16 %v3030
    %v3198 = vunpack.c.l.b16 %v3031
    %v3199 = vunpack.c.h.b16 %v3031
    %v3200 = vunpack.c.l.b16 %v3032
    %v3201 = vunpack.c.h.b16 %v3032
    %v3202 = vunpack.c.l.b16 %v3033
    %v3203 = vunpack.c.h.b16 %v3033
    %v3204 = vunpack.c.l.b16 %v3034
    %v3205 = vunpack.c.h.b16 %v3034
    %v3206 = vunpack.c.l.b16 %v3035
    %v3207 = vunpack.c.h.b16 %v3035
    %v3208 = vunpack.c.l.b16 %v3036
    %v3209 = vunpack.c.h.b16 %v3036
    %v3210 = vunpack.c.l.b16 %v3037
    %v3211 = vunpack.c.h.b16 %v3037
    %v3212 = vunpack.c.l.b16 %v3038
    %v3213 = vunpack.c.h.b16 %v3038
    %v3214 = vunpack.c.l.b16 %v3039
    %v3215 = vunpack.c.h.b16 %v3039
    %v3216 = vunpack.c.l.b16 %v3040
    %v3217 = vunpack.c.h.b16 %v3040
    %v3218 = vunpack.c.l.b16 %v3041
    %v3219 = vunpack.c.h.b16 %v3041
    %v3220 = vunpack.c.l.b16 %v3042
    %v3221 = vunpack.c.h.b16 %v3042
    %v3222 = vunpack.c.l.b16 %v3043
    %v3223 = vunpack.c.h.b16 %v3043
    %v3224 = vunpack.c.l.b16 %v3044
    %v3225 = vunpack.c.h.b16 %v3044
    %v3226 = vunpack.c.l.b16 %v3045
    %v3227 = vunpack.c.h.b16 %v3045
    %v3228 = vunpack.c.l.b16 %v3046
    %v3229 = vunpack.c.h.b16 %v3046
    %v3230 = vunpack.c.l.b16 %v3047
    %v3231 = vunpack.c.h.b16 %v3047
    %v3232 = vunpack.c.l.b16 %v3048
    %v3233 = vunpack.c.h.b16 %v3048
    %v3234 = vunpack.c.l.b16 %v3049
    %v3235 = vunpack.c.h.b16 %v3049
    %v3236 = vunpack.c.l.b16 %v3050
    %v3237 = vunpack.c.h.b16 %v3050
    %v3238 = vunpack.c.l.b16 %v3051
    %v3239 = vunpack.c.h.b16 %v3051
    %v3240 = vunpack.c.l.b16 %v3052
    %v3241 = vunpack.c.h.b16 %v3052
    %v3242 = vunpack.c.l.b16 %v3053
    %v3243 = vunpack.c.h.b16 %v3053
    %v3244 = vunpack.c.l.b16 %v3054
    %v3245 = vunpack.c.h.b16 %v3054
    %v3246 = vunpack.c.l.b16 %v3055
    %v3247 = vunpack.c.h.b16 %v3055
    %v3248 = vunpack.c.l.b16 %v3056
    %v3249 = vunpack.c.h.b16 %v3056
    %v3250 = vunpack.c.l.b16 %v3057
    %v3251 = vunpack.c.h.b16 %v3057
    %v3252 = vunpack.c.l.b16 %v3058
    %v3253 = vunpack.c.h.b16 %v3058
    %v3254 = vunpack.c.l.b16 %v3059
    %v3255 = vunpack.c.h.b16 %v3059
    %v3256 = vunpack.c.l.b16 %v3060
    %v3257 = vunpack.c.h.b16 %v3060
    %v3258 = vunpack.c.l.b16 %v3061
    %v3259 = vunpack.c.h.b16 %v3061
    %v3260 = vunpack.c.l.b16 %v3062
    %v3261 = vunpack.c.h.b16 %v3062
    %v3262 = vunpack.c.l.b16 %v3063
    %v3263 = vunpack.c.h.b16 %v3063
    %v3264 = vpack.c.b16 %v3138, %v3136
    %v3265 = vpack.c.b16 %v3139, %v3137
    %v3266 = vpack.c.b16 %v3142, %v3140
    %v3267 = vpack.c.b16 %v3143, %v3141
    %v3268 = vpack.c.b16 %v3146, %v3144
    %v3269 = vpack.c.b16 %v3147, %v3145
    %v3270 = vpack.c.b16 %v3150, %v3148
    %v3271 = vpack.c.b16 %v3151, %v3149
    %v3272 = vpack.c.b16 %v3154, %v3152
    %v3273 = vpack.c.b16 %v3155, %v3153
    %v3274 = vpack.c.b16 %v3158, %v3156
    %v3275 = vpack.c.b16 %v3159, %v3157
    %v3276 = vpack.c.b16 %v3162, %v3160
    %v3277 = vpack.c.b16 %v3163, %v3161
    %v3278 = vpack.c.b16 %v3166, %v3164
    %v3279 = vpack.c.b16 %v3167, %v3165
    %v3280 = vpack.c.b16 %v3170, %v3168
    %v3281 = vpack.c.b16 %v3171, %v3169
    %v3282 = vpack.c.b16 %v3174, %v3172
    %v3283 = vpack.c.b16 %v3175, %v3173
    %v3284 = vpack.c.b16 %v3178, %v3176
    %v3285 = vpack.c.b16 %v3179, %v3177
    %v3286 = vpack.c.b16 %v3182, %v3180
    %v3287 = vpack.c.b16 %v3183, %v3181
    %v3288 = vpack.c.b16 %v3186, %v3184
    %v3289 = vpack.c.b16 %v3187, %v3185
    %v3290 = vpack.c.b16 %v3190, %v3188
    %v3291 = vpack.c.b16 %v3191, %v3189
    %v3292 = vpack.c.b16 %v3194, %v3192
    %v3293 = vpack.c.b16 %v3195, %v3193
    %v3294 = vpack.c.b16 %v3198, %v3196
    %v3295 = vpack.c.b16 %v3199, %v3197
    %v3296 = vpack.c.b16 %v3202, %v3200
    %v3297 = vpack.c.b16 %v3203, %v3201
    %v3298 = vpack.c.b16 %v3206, %v3204
    %v3299 = vpack.c.b16 %v3207, %v3205
    %v3300 = vpack.c.b16 %v3210, %v3208
    %v3301 = vpack.c.b16 %v3211, %v3209
    %v3302 = vpack.c.b16 %v3214, %v3212
    %v3303 = vpack.c.b16 %v3215, %v3213
    %v3304 = vpack.c.b16 %v3218, %v3216
    %v3305 = vpack.c.b16 %v3219, %v3217
    %v3306 = vpack.c.b16 %v3222, %v3220
    %v3307 = vpack.c.b16 %v3223, %v3221
    %v3308 = vpack.c.b16 %v3226, %v3224
    %v3309 = vpack.c.b16 %v3227, %v3225
    %v3310 = vpack.c.b16 %v3230, %v3228
    %v3311 = vpack.c.b16 %v3231, %v3229
    %v3312 = vpack.c.b16 %v3234, %v3232
    %v3313 = vpack.c.b16 %v3235, %v3233
    %v3314 = vpack.c.b16 %v3238, %v3236
    %v3315 = vpack.c.b16 %v3239, %v3237
    %v3316 = vpack.c.b16 %v3242, %v3240
    %v3317 = vpack.c.b16 %v3243, %v3241
    %v3318 = vpack.c.b16 %v3246, %v3244
    %v3319 = vpack.c.b16 %v3247, %v3245
    %v3320 = vpack.c.b16 %v3250, %v3248
    %v3321 = vpack.c.b16 %v3251, %v3249
    %v3322 = vpack.c.b16 %v3254, %v3252
    %v3323 = vpack.c.b16 %v3255, %v3253
    %v3324 = vpack.c.b16 %v3258, %v3256
    %v3325 = vpack.c.b16 %v3259, %v3257
    %v3326 = vpack.c.b16 %v3262, %v3260
    %v3327 = vpack.c.b16 %v3263, %v3261
    %3392 = vmatprep.subr.bf16.mxu0 %v3265
    %3393 = vmatpush1.bf16.msra.mxu0 %v3264
    %3394 = vmatprep.subr.bf16.mxu0 %v3267
    %3395 = vmatpush1.bf16.msra.mxu0 %v3266
    %3396 = vmatprep.subr.bf16.mxu0 %v3269
    %3397 = vmatpush1.bf16.msra.mxu0 %v3268
    %3398 = vmatprep.subr.bf16.mxu0 %v3271
    %3399 = vmatpush1.bf16.msra.mxu0 %v3270
    %3400 = vmatprep.subr.bf16.mxu0 %v3273
    %3401 = vmatpush1.bf16.msra.mxu0 %v3272
    %3402 = vmatprep.subr.bf16.mxu0 %v3275
    %3403 = vmatpush1.bf16.msra.mxu0 %v3274
    %3404 = vmatprep.subr.bf16.mxu0 %v3277
    %3405 = vmatpush1.bf16.msra.mxu0 %v3276
    %3406 = vmatprep.subr.bf16.mxu0 %v3279
    %3407 = vmatpush1.bf16.msra.mxu0 %v3278
    %3408 = vmatprep.subr.bf16.mxu0 %v3281
    %3409 = vmatpush1.bf16.msra.mxu0 %v3280
    %3410 = vmatprep.subr.bf16.mxu0 %v3283
    %3411 = vmatpush1.bf16.msra.mxu0 %v3282
    %3412 = vmatprep.subr.bf16.mxu0 %v3285
    %3413 = vmatpush1.bf16.msra.mxu0 %v3284
    %3414 = vmatprep.subr.bf16.mxu0 %v3287
    %3415 = vmatpush1.bf16.msra.mxu0 %v3286
    %3416 = vmatprep.subr.bf16.mxu0 %v3289
    %3417 = vmatpush1.bf16.msra.mxu0 %v3288
    %3418 = vmatprep.subr.bf16.mxu0 %v3291
    %3419 = vmatpush1.bf16.msra.mxu0 %v3290
    %3420 = vmatprep.subr.bf16.mxu0 %v3293
    %3421 = vmatpush1.bf16.msra.mxu0 %v3292
    %3422 = vmatprep.subr.bf16.mxu0 %v3295
    %3423 = vmatpush1.bf16.msra.mxu0 %v3294
    %3424 = vmatprep.mubr.bf16.mxu0 %v2997
    %3425 = vmatmul.mubr.bf16.gmra.mrb[0].mxu0 %v2996
    %v3426 = vpop.f32.mrb[0].mxu0
    %v3427 = vadd.f32 %v3067, %v3426
    %v3428 = vpop.f32.mrb[0].mxu0
    %v3429 = vadd.f32 %v3071, %v3428
    %v3430 = vpop.f32.mrb[0].mxu0
    %v3431 = vpop.f32.mrb[0].mxu0
    %3432 = vdwg.mxu0
    %3433 = vmatprep.subr.bf16.mxu0 %v3297
    %3434 = vmatpush1.bf16.msra.mxu0 %v3296
    %3435 = vmatprep.subr.bf16.mxu0 %v3299
    %3436 = vmatpush1.bf16.msra.mxu0 %v3298
    %3437 = vmatprep.subr.bf16.mxu0 %v3301
    %3438 = vmatpush1.bf16.msra.mxu0 %v3300
    %3439 = vmatprep.subr.bf16.mxu0 %v3303
    %3440 = vmatpush1.bf16.msra.mxu0 %v3302
    %3441 = vmatprep.subr.bf16.mxu0 %v3305
    %3442 = vmatpush1.bf16.msra.mxu0 %v3304
    %3443 = vmatprep.subr.bf16.mxu0 %v3307
    %3444 = vmatpush1.bf16.msra.mxu0 %v3306
    %3445 = vmatprep.subr.bf16.mxu0 %v3309
    %3446 = vmatpush1.bf16.msra.mxu0 %v3308
    %3447 = vmatprep.subr.bf16.mxu0 %v3311
    %3448 = vmatpush1.bf16.msra.mxu0 %v3310
    %3449 = vmatprep.subr.bf16.mxu0 %v3313
    %3450 = vmatpush1.bf16.msra.mxu0 %v3312
    %3451 = vmatprep.subr.bf16.mxu0 %v3315
    %3452 = vmatpush1.bf16.msra.mxu0 %v3314
    %3453 = vmatprep.subr.bf16.mxu0 %v3317
    %3454 = vmatpush1.bf16.msra.mxu0 %v3316
    %3455 = vmatprep.subr.bf16.mxu0 %v3319
    %3456 = vmatpush1.bf16.msra.mxu0 %v3318
    %3457 = vmatprep.subr.bf16.mxu0 %v3321
    %3458 = vmatpush1.bf16.msra.mxu0 %v3320
    %3459 = vmatprep.subr.bf16.mxu0 %v3323
    %3460 = vmatpush1.bf16.msra.mxu0 %v3322
    %3461 = vmatprep.subr.bf16.mxu0 %v3325
    %3462 = vmatpush1.bf16.msra.mxu0 %v3324
    %3463 = vmatprep.subr.bf16.mxu0 %v3327
    %3464 = vmatpush1.bf16.msra.mxu0 %v3326
    %3465 = vmatprep.mubr.bf16.mxu0 %v2999
    %3466 = vmatmul.mubr.bf16.gmra.mrb[0].mxu0 %v2998
    %v3467 = vpop.f32.mrb[0].mxu0
    %v3468 = vadd.f32 %v3427, %v3467
    %v3469 = vpop.f32.mrb[0].mxu0
    %v3470 = vadd.f32 %v3429, %v3469
    %v3471 = vpop.f32.mrb[0].mxu0
    %v3472 = vpop.f32.mrb[0].mxu0
    %3473 = vdwg.mxu0
    %v3474 = vmul.f32 %v3468, 0.5
    %v3475 = vmul.f32 %v3470, 0.5
    %v3476 = vmul.f32 %v3468, 0.70710677
    %v3477 = vmul.f32 %v3470, 0.70710677
    %v3478 = verf.f32.pop %v3476
    %v3479 = verf.f32.pop %v3477
    %v3480 = vadd.f32 %v3478, 1.0
    %v3481 = vadd.f32 %v3479, 1.0
    %v3482 = vmul.f32 %v3474, %v3480
    %v3483 = vmul.f32 %v3475, %v3481
    %v3484 = vsel %vm2920, %v3482, 0.0
    %v3485 = vsel %vm2920, %v3483, 0.0
    %v3486 = vadd.f32 %v3484, %v3485
    %3487 = vadd.xlane.f32.xlu0 %v3486
    %v3488 = vpop.xlane.xlu0 %3487
    %v3489 = vrcp.pop 256.0
    %v3490 = vmul.f32 %v3488, %v3489
    %v3491 = vsub.f32 %v3482, %v3490
    %v3492 = vsub.f32 %v3483, %v3490
    %v3493 = vmul.f32 %v3491, %v3491
    %v3494 = vmul.f32 %v3492, %v3492
    %v3495 = vsel %vm2920, %v3493, 0.0
    %v3496 = vsel %vm2920, %v3494, 0.0
    %v3497 = vadd.f32 %v3495, %v3496
    %3498 = vadd.xlane.f32.xlu0 %v3497
    %v3499 = vpop.xlane.xlu0 %3498
    %v3500 = vmul.f32 %v3499, %v3489
    %v3501 = vadd.f32 %v3500, 1e-05
    %v3502 = vrsqrt.pop %v3501
    %v3503 = vmul.f32 %v3491, %v3502
    %v3504 = vmul.f32 %v3492, %v3502
    %v3505 = vlaneseq
    %v3506 = vshrl.u32 %v3505, 7
    %v3507 = vsub.s32 4, %v3506
    %v3508 = vrot.slane %v2746, %v3507
    %v3509 = vlaneseq
    %v3510 = vshrl.u32 %v3509, 7
    %v3511 = vsub.s32 4, %v3510
    %v3512 = vrot.slane %v2747, %v3511
    %v3513 = vmul.f32 %v3503, %v3508
    %v3514 = vmul.f32 %v3504, %v3512
    %v3515 = vlaneseq
    %v3516 = vshrl.u32 %v3515, 7
    %v3517 = vsub.s32 5, %v3516
    %v3518 = vrot.slane %v2746, %v3517
    %v3519 = vlaneseq
    %v3520 = vshrl.u32 %v3519, 7
    %v3521 = vsub.s32 5, %v3520
    %v3522 = vrot.slane %v2747, %v3521
    %v3523 = vadd.f32 %v3513, %v3518
    %v3524 = vadd.f32 %v3514, %v3522
    %v3525 = vpack.c.bf16 %v3523, %v3523
    %v3526 = vpack.c.bf16 %v3524, %v3524
    %v3527 = vld [vmem:[%s8] sm:$0xf]
    %v3528 = vld [vmem:[%s8 + $0x4] sm:$0xf]
    %v3529 = vld [vmem:[%s8 + $0x8] sm:$0xf]
    %v3530 = vld [vmem:[%s8 + $0xc] sm:$0xf]
    %v3531 = vld [vmem:[%s8 + $0x10] sm:$0xf]
    %v3532 = vld [vmem:[%s8 + $0x14] sm:$0xf]
    %v3533 = vld [vmem:[%s8 + $0x18] sm:$0xf]
    %v3534 = vld [vmem:[%s8 + $0x1c] sm:$0xf]
    %v3535 = vld [vmem:[%s8 + $0x20] sm:$0xf]
    %v3536 = vld [vmem:[%s8 + $0x24] sm:$0xf]
    %v3537 = vld [vmem:[%s8 + $0x28] sm:$0xf]
    %v3538 = vld [vmem:[%s8 + $0x2c] sm:$0xf]
    %v3539 = vld [vmem:[%s8 + $0x30] sm:$0xf]
    %v3540 = vld [vmem:[%s8 + $0x34] sm:$0xf]
    %v3541 = vld [vmem:[%s8 + $0x38] sm:$0xf]
    %v3542 = vld [vmem:[%s8 + $0x3c] sm:$0xf]
    %v3543 = vld [vmem:[%s8 + $0x40] sm:$0xf]
    %v3544 = vld [vmem:[%s8 + $0x44] sm:$0xf]
    %v3545 = vld [vmem:[%s8 + $0x48] sm:$0xf]
    %v3546 = vld [vmem:[%s8 + $0x4c] sm:$0xf]
    %v3547 = vld [vmem:[%s8 + $0x50] sm:$0xf]
    %v3548 = vld [vmem:[%s8 + $0x54] sm:$0xf]
    %v3549 = vld [vmem:[%s8 + $0x58] sm:$0xf]
    %v3550 = vld [vmem:[%s8 + $0x5c] sm:$0xf]
    %v3551 = vld [vmem:[%s8 + $0x60] sm:$0xf]
    %v3552 = vld [vmem:[%s8 + $0x64] sm:$0xf]
    %v3553 = vld [vmem:[%s8 + $0x68] sm:$0xf]
    %v3554 = vld [vmem:[%s8 + $0x6c] sm:$0xf]
    %v3555 = vld [vmem:[%s8 + $0x70] sm:$0xf]
    %v3556 = vld [vmem:[%s8 + $0x74] sm:$0xf]
    %v3557 = vld [vmem:[%s8 + $0x78] sm:$0xf]
    %v3558 = vld [vmem:[%s8 + $0x7c] sm:$0xf]
    %v3559 = vlaneseq
    %v3560 = vshrl.u32 %v3559, 7
    %v3561 = vsub.s32 6, %v3560
    %v3562 = vrot.slane %v2746, %v3561
    %v3595 = vunpack.c.l.b16 %v3527
    %v3596 = vunpack.c.l.b16 %v3528
    %v3597 = vunpack.c.l.b16 %v3529
    %v3598 = vunpack.c.l.b16 %v3530
    %v3599 = vunpack.c.l.b16 %v3531
    %v3600 = vunpack.c.l.b16 %v3532
    %v3601 = vunpack.c.l.b16 %v3533
    %v3602 = vunpack.c.l.b16 %v3534
    %v3603 = vunpack.c.l.b16 %v3535
    %v3604 = vunpack.c.l.b16 %v3536
    %v3605 = vunpack.c.l.b16 %v3537
    %v3606 = vunpack.c.l.b16 %v3538
    %v3607 = vunpack.c.l.b16 %v3539
    %v3608 = vunpack.c.l.b16 %v3540
    %v3609 = vunpack.c.l.b16 %v3541
    %v3610 = vunpack.c.l.b16 %v3542
    %v3611 = vunpack.c.l.b16 %v3543
    %v3612 = vunpack.c.l.b16 %v3544
    %v3613 = vunpack.c.l.b16 %v3545
    %v3614 = vunpack.c.l.b16 %v3546
    %v3615 = vunpack.c.l.b16 %v3547
    %v3616 = vunpack.c.l.b16 %v3548
    %v3617 = vunpack.c.l.b16 %v3549
    %v3618 = vunpack.c.l.b16 %v3550
    %v3619 = vunpack.c.l.b16 %v3551
    %v3620 = vunpack.c.l.b16 %v3552
    %v3621 = vunpack.c.l.b16 %v3553
    %v3622 = vunpack.c.l.b16 %v3554
    %v3623 = vunpack.c.l.b16 %v3555
    %v3624 = vunpack.c.l.b16 %v3556
    %v3625 = vunpack.c.l.b16 %v3557
    %v3626 = vunpack.c.l.b16 %v3558
    %v3627 = vpack.c.b16 %v3596, %v3595
    %v3628 = vpack.c.b16 %v3598, %v3597
    %v3629 = vpack.c.b16 %v3600, %v3599
    %v3630 = vpack.c.b16 %v3602, %v3601
    %v3631 = vpack.c.b16 %v3604, %v3603
    %v3632 = vpack.c.b16 %v3606, %v3605
    %v3633 = vpack.c.b16 %v3608, %v3607
    %v3634 = vpack.c.b16 %v3610, %v3609
    %v3635 = vpack.c.b16 %v3612, %v3611
    %v3636 = vpack.c.b16 %v3614, %v3613
    %v3637 = vpack.c.b16 %v3616, %v3615
    %v3638 = vpack.c.b16 %v3618, %v3617
    %v3639 = vpack.c.b16 %v3620, %v3619
    %v3640 = vpack.c.b16 %v3622, %v3621
    %v3641 = vpack.c.b16 %v3624, %v3623
    %v3642 = vpack.c.b16 %v3626, %v3625
    %3659 = vmatprep.subr.bf16.mxu0 0
    %3660 = vmatpush1.bf16.msra.mxu0 %v3627
    %3661 = vmatprep.subr.bf16.mxu0 0
    %3662 = vmatpush1.bf16.msra.mxu0 %v3628
    %3663 = vmatprep.subr.bf16.mxu0 0
    %3664 = vmatpush1.bf16.msra.mxu0 %v3629
    %3665 = vmatprep.subr.bf16.mxu0 0
    %3666 = vmatpush1.bf16.msra.mxu0 %v3630
    %3667 = vmatprep.subr.bf16.mxu0 0
    %3668 = vmatpush1.bf16.msra.mxu0 %v3631
    %3669 = vmatprep.subr.bf16.mxu0 0
    %3670 = vmatpush1.bf16.msra.mxu0 %v3632
    %3671 = vmatprep.subr.bf16.mxu0 0
    %3672 = vmatpush1.bf16.msra.mxu0 %v3633
    %3673 = vmatprep.subr.bf16.mxu0 0
    %3674 = vmatpush1.bf16.msra.mxu0 %v3634
    %3675 = vmatprep.subr.bf16.mxu0 0
    %3676 = vmatpush1.bf16.msra.mxu0 %v3635
    %3677 = vmatprep.subr.bf16.mxu0 0
    %3678 = vmatpush1.bf16.msra.mxu0 %v3636
    %3679 = vmatprep.subr.bf16.mxu0 0
    %3680 = vmatpush1.bf16.msra.mxu0 %v3637
    %3681 = vmatprep.subr.bf16.mxu0 0
    %3682 = vmatpush1.bf16.msra.mxu0 %v3638
    %3683 = vmatprep.subr.bf16.mxu0 0
    %3684 = vmatpush1.bf16.msra.mxu0 %v3639
    %3685 = vmatprep.subr.bf16.mxu0 0
    %3686 = vmatpush1.bf16.msra.mxu0 %v3640
    %3687 = vmatprep.subr.bf16.mxu0 0
    %3688 = vmatpush1.bf16.msra.mxu0 %v3641
    %3689 = vmatprep.subr.bf16.mxu0 0
    %3690 = vmatpush1.bf16.msra.mxu0 %v3642
    %3691 = vmatprep.mubr.bf16.mxu0 %v3526
    %3692 = vmatmul.mubr.bf16.gmra.mrb[0].mxu0 %v3525
    %v3693 = vpop.f32.mrb[0].mxu0
    %v3694 = vadd.f32 %v3562, %v3693
    %v3695 = vpop.f32.mrb[0].mxu0
    %v3696 = vpop.f32.mrb[0].mxu0
    %v3697 = vpop.f32.mrb[0].mxu0
    %3698 = vdwg.mxu0
    %vm3699 = vcmask 9216
    %3700 = vst.msk [vmem:[#allocation5] sm:$0x3] %vm3699, %v3694
    // Predicated region
    $region46: #{forward.1} parent=1 // pred_check
      _
    $region47: #{forward.1} parent=1 // pred_check_branch
      %3702 = sbr.rel (0) target = $region49
    $region48: #{forward.1} parent=1 // pred_region
      %s3704 = ssub.s32 32, 32
      %3705 = vsyncadd [#allocation4], %s3704
      %s3707 = sshll.u32 [#allocation5], 4
      %s3708 = int_to_ptr.vmem [resolvable:$true] %s3707
      %3710 = dma.vmem_to_hbm [thread:$0]  %s3708, 32, %s10, [#allocation4]
    $region49: #{forward.1} parent=1 // pred_fallthru
      _
    // Predicated region
    $region50: #{forward.1} parent=1 // pred_check
      _
    $region51: #{forward.1} parent=1 // pred_check_branch
      %3712 = sbr.rel (0) target = $region53
    $region52: #{forward.1} parent=1 // pred_region
      %3713 = dma.done [#allocation4], 32
    $region53: #{forward.1} parent=1 // pred_fallthru
      _
    %3714 = vsyncpa [#allocation3], 1
    %3715 = vsyncpa [#allocation4], 1

</llo_original>
